<compile_context>
chip_gen: v6e
topology: v6e:2x2x1
jax: 0.10.0
libtpu: 0.0.40
codegen_flags: <defaults>
</compile_context>

<pallas_src>
import functools
import math

import jax
import jax.numpy as jnp
from jax import lax
from jax.experimental import pallas as pl
from jax.experimental.pallas import tpu as pltpu


COUT_PAD = 128  # lane-dense padding of the conv2 (mu) output channels


def _round_up(x, m):
    return ((x + m - 1) // m) * m


# ----------------------------------------------------------------------------
# Fused Pallas kernel: [conv3x3 + bias + temb + SiLU] + [conv3x3 + bias]
# (one batch sample per grid step; time-MLP is computed host-side)
# ----------------------------------------------------------------------------
def _fused_unet_kernel(mask_ref, bt_ref, xcol_ref, w_in_ref, w_out_ref, b_out_ref,
                       o_ref, hpad_ref, hcol_ref, *, me, wp, pad_shift, hidden):
    int0 = pad_shift + wp + 1          # 8-aligned start of the interior rows in hpad
    r_hid = hpad_ref.shape[0]

    # ---- conv1: ONE K=9*cin matmul against the host-built im2col (bf16 MXU, f32 acc) ----
    acc1 = jnp.dot(xcol_ref[...], w_in_ref[...], preferred_element_type=jnp.float32)
    acc1 = acc1 + bt_ref[...]                       # b_in + time-MLP output (f32, per sample)
    # SiLU; reciprocal goes to the EUP slot and co-issues with MXU/VPU work.
    hval = acc1 * pl.reciprocal(1.0 + jnp.exp(-acc1), approx=True)
    hval = hval * mask_ref[...]                     # zero the pad-column garbage rows

    # ---- stage hidden activation in a halo-padded VMEM scratch (never leaves VMEM) ----
    # Zero ONLY the halo rows; the interior is fully overwritten every grid step.
    # Unconditional on purpose: scratch is per-core under v7x megacore.
    hpad_ref[pl.ds(0, int0), :] = jnp.zeros((int0, hidden), jnp.float32)
    hpad_ref[pl.ds(int0 + me, r_hid - int0 - me), :] = jnp.zeros(
        (r_hid - int0 - me, hidden), jnp.float32)
    hpad_ref[pl.ds(int0, me), :] = hval             # aligned interior store (f32)

    # ---- conv2 im2col stacked along K: pack the 9 shifted windows into (me, 9*hidden) ----
    # Windows are unaligned-sublane f32 loads; they are concatenated into 128-lane
    # groups, cast to bf16 once per group, and stored at lane-tile-aligned offsets.
    # (hidden divides 128 here, so every group store is tile-aligned.)
    g = 128 // hidden if (hidden <= 128 and 128 % hidden == 0) else 1
    for g0 in range(0, 9, g):
        ks = range(g0, min(g0 + g, 9))
        pieces = [hpad_ref[pl.ds(pad_shift + (k // 3) * wp + (k % 3), me), :] for k in ks]
        blk = pieces[0] if len(pieces) == 1 else jnp.concatenate(pieces, axis=-1)
        hcol_ref[pl.ds(0, me), pl.ds(g0 * hidden, blk.shape[-1])] = blk.astype(jnp.bfloat16)

    # ---- conv2: ONE K=9*hidden matmul (mu channels only, lane-padded to 128) ----
    acc2 = jnp.dot(hcol_ref[pl.ds(0, me), :], w_out_ref[...],
                   preferred_element_type=jnp.float32)
    o_ref[...] = (acc2 + b_out_ref[...]).astype(o_ref.dtype)


# ----------------------------------------------------------------------------
# Parameters (PyTorch layouts) + kernel-layout preparation
# ----------------------------------------------------------------------------
def timestep_embedding(t, dim):
    half = dim // 2
    freqs = jnp.exp(-math.log(10000.0) * jnp.arange(half, dtype=jnp.float32) / half)
    args = t.astype(jnp.float32)[:, None] * freqs[None, :]
    return jnp.concatenate([jnp.cos(args), jnp.sin(args)], axis=-1)


def init_params(key, c_in, hidden, temb_dim):
    """Synthetic UNet params in PyTorch layouts (conv weight: (Cout, Cin, kh, kw))."""
    c3 = 3 * c_in
    c_out_full = 2 * c3
    ks = jax.random.split(key, 6)
    s = 0.05
    return {
        "w_in_torch": s * jax.random.normal(ks[0], (hidden, c3, 3, 3), jnp.float32),
        "b_in": s * jax.random.normal(ks[2], (hidden,), jnp.float32),
        "w_out_torch": s * jax.random.normal(ks[1], (c_out_full, hidden, 3, 3), jnp.float32),
        "b_out": s * jax.random.normal(ks[3], (c_out_full,), jnp.float32),
        "w1": s * jax.random.normal(ks[4], (temb_dim, hidden), jnp.float32),
        "b1": jnp.zeros((hidden,), jnp.float32),
        "w2": s * jax.random.normal(ks[5], (hidden, hidden), jnp.float32),
        "b2": jnp.zeros((hidden,), jnp.float32),
    }


def _prep_conv_weights(params, c_rep, expand_dims):
    """Torch conv layouts -> stacked-K matmul layouts, with the wrapper algebra folded in."""
    hidden = params["b_in"].shape[0]
    c_mu = params["w_out_torch"].shape[0] // 2      # wrapper keeps only the mu half

    w_in_t = params["w_in_torch"]                   # (hidden, 3*c_rep, 3, 3)
    if expand_dims:
        # conv(cat([x,x,x]), W) == conv(x, sum over the three Cin replica groups).
        # NOTE: the replica-sum is done in f32 then cast to bf16, which rounds
        # differently than summing three bf16 products -> expected small drift.
        w_in_t = w_in_t.reshape(hidden, 3, c_rep, 3, 3).sum(axis=1)
    cin = w_in_t.shape[1]
    # (hidden, cin, 3, 3) -> (3, 3, cin, hidden) -> (9*cin, hidden); row = k*cin + c
    w_in_mat = jnp.transpose(w_in_t, (2, 3, 1, 0)).reshape(9 * cin, hidden)
    w_in_mat = w_in_mat.astype(jnp.bfloat16)

    # keep only mu out-channels, zero-pad them to 128 lanes for dense stores
    w_mu = params["w_out_torch"][:c_mu]             # (c_mu, hidden, 3, 3)
    w_mu_mat = jnp.transpose(w_mu, (2, 3, 1, 0)).reshape(9 * hidden, c_mu)
    w_out_mat = jnp.zeros((9 * hidden, COUT_PAD), jnp.float32)
    w_out_mat = w_out_mat.at[:, :c_mu].set(w_mu_mat).astype(jnp.bfloat16)

    b_out_pad = jnp.zeros((1, COUT_PAD), jnp.float32)
    b_out_pad = b_out_pad.at[0, :c_mu].set(params["b_out"][:c_mu])
    return w_in_mat, w_out_mat, b_out_pad, cin, c_mu


# ----------------------------------------------------------------------------
# UNetWrapper.forward (NCHW in -> NCHW mu out)
# ----------------------------------------------------------------------------
def unet_wrapper_forward(params, x_nchw, t, temb_dim, expand_dims=True):
    n, c_x, h, w = x_nchw.shape
    hidden = params["b_in"].shape[0]
    hp, wp = h + 2, w + 2
    me = h * wp                                    # expanded rows per sample (valid + pad cols)
    pad_shift = (-(wp + 1)) % 8                    # makes the interior scratch store aligned
    r_hid = _round_up(pad_shift + 2 * wp + 2 + me, 8)
    me_pad = _round_up(me, 8)

    w_in_mat, w_out_mat, b_out_pad, cin, c_mu = _prep_conv_weights(params, c_x, expand_dims)
    kc1 = 9 * cin

    # ---- conv1 im2col built host-side (tiny), already bf16 for the MXU ----
    x_nhwc = jnp.transpose(x_nchw, (0, 2, 3, 1))
    xpad = jnp.pad(x_nhwc, ((0, 0), (1, 1), (1, 1), (0, 0)))       # (n, hp, wp, cin)
    xflat = xpad.reshape(n, hp * wp, cin)
    need = me + 2 * wp + 2
    if need > hp * wp:
        xflat = jnp.pad(xflat, ((0, 0), (0, need - hp * wp), (0, 0)))
    offs = [ki * wp + kj for ki in range(3) for kj in range(3)]
    xcol = jnp.concatenate([xflat[:, o:o + me, :] for o in offs],
                           axis=-1).astype(jnp.bfloat16)           # (n, me, 9*cin)

    # ---- time-embedding MLP in plain XLA; pre-add conv1 bias ----
    temb = timestep_embedding(t, temb_dim)
    h1 = temb @ params["w1"] + params["b1"]
    h1 = h1 * jax.nn.sigmoid(h1)
    temb_h = h1 @ params["w2"] + params["b2"]
    bt = (temb_h + params["b_in"][None, :]).reshape(n, 1, hidden)  # (n, 1, hidden) f32

    mask = (jnp.arange(me) % wp < w).astype(jnp.float32).reshape(me, 1)

    kernel = functools.partial(_fused_unet_kernel, me=me, wp=wp,
                               pad_shift=pad_shift, hidden=hidden)

    out = pl.pallas_call(
        kernel,
        out_shape=jax.ShapeDtypeStruct((n, me, COUT_PAD), jnp.bfloat16),
        grid_spec=pltpu.PrefetchScalarGridSpec(
            num_scalar_prefetch=0,
            grid=(n,),
            in_specs=[
                pl.BlockSpec((me, 1), lambda i: (0, 0)),                 # valid-column mask
                pl.BlockSpec((None, 1, hidden), lambda i: (i, 0, 0)),    # b_in + temb_h (per sample)
                pl.BlockSpec((None, me, kc1), lambda i: (i, 0, 0)),      # conv1 im2col (bf16)
                pl.BlockSpec((kc1, hidden), lambda i: (0, 0)),           # conv1 weight matrix (bf16)
                pl.BlockSpec((9 * hidden, COUT_PAD), lambda i: (0, 0)),  # conv2 weight (bf16, mu only)
                pl.BlockSpec((1, COUT_PAD), lambda i: (0, 0)),           # conv2 bias (padded)
            ],
            out_specs=pl.BlockSpec((None, me, COUT_PAD), lambda i: (i, 0, 0)),
            scratch_shapes=[
                pltpu.VMEM((r_hid, hidden), jnp.float32),          # halo-padded hidden activation
                pltpu.VMEM((me_pad, 9 * hidden), jnp.bfloat16),    # conv2 stacked-K im2col
            ],
        ),
        compiler_params=pltpu.CompilerParams(
            dimension_semantics=("parallel",),
            vmem_limit_bytes=32 * 1024 * 1024,
        ),
    )(mask, bt, xcol, w_in_mat, w_out_mat, b_out_pad)

    # drop pad columns and lane padding, back to NCHW (f32)
    out = out.reshape(n, h, wp, COUT_PAD)[:, :, :w, :c_mu].astype(jnp.float32)
    return jnp.transpose(out, (0, 3, 1, 2))


# ----------------------------------------------------------------------------
# Pure-JAX reference (faithful cat -> unet -> split; conv operands in bf16 to
# match the kernel's MXU input precision, f32 accumulation)
# ----------------------------------------------------------------------------
def reference_forward(params, x_nchw, t, temb_dim, expand_dims=True):
    x3 = jnp.concatenate([x_nchw] * 3, axis=1) if expand_dims else x_nchw
    c3 = x3.shape[1]
    x_nhwc = jnp.transpose(x3, (0, 2, 3, 1))

    temb = timestep_embedding(t, temb_dim)
    h1 = temb @ params["w1"] + params["b1"]
    h1 = h1 * jax.nn.sigmoid(h1)
    temb_h = h1 @ params["w2"] + params["b2"]

    def conv(x, w_torch, b):
        w_hwio = jnp.transpose(w_torch, (2, 3, 1, 0)).astype(jnp.bfloat16)
        y = lax.conv_general_dilated(
            x.astype(jnp.bfloat16), w_hwio, window_strides=(1, 1), padding="SAME",
            dimension_numbers=("NHWC", "HWIO", "NHWC"),
            preferred_element_type=jnp.float32)
        return y + b[None, None, None, :]

    hh = conv(x_nhwc, params["w_in_torch"], params["b_in"]) + temb_h[:, None, None, :]
    hh = hh * jax.nn.sigmoid(hh)
    out = conv(hh, params["w_out_torch"], params["b_out"])
    out_nchw = jnp.transpose(out, (0, 3, 1, 2))
    return out_nchw[:, :c3]


# ----------------------------------------------------------------------------
# Main
# ----------------------------------------------------------------------------
if __name__ == "__main__":
    N, C, H, W = 2, 4, 16, 16
    HIDDEN = 32
    TEMB_DIM = 32

    key = jax.random.PRNGKey(0)
    k_x, k_t, k_p = jax.random.split(key, 3)

    x = jax.random.normal(k_x, (N, C, H, W), jnp.float32)
    t = jax.random.randint(k_t, (N,), 0, 1000).astype(jnp.float32)
    params = init_params(k_p, C, HIDDEN, TEMB_DIM)

    noise_mu = unet_wrapper_forward(params, x, t, TEMB_DIM, expand_dims=True)
    noise_mu = jax.block_until_ready(noise_mu)
    assert noise_mu.shape == (N, 3 * C, H, W), noise_mu.shape

    ref = reference_forward(params, x, t, TEMB_DIM, expand_dims=True)
    max_err = float(jnp.max(jnp.abs(noise_mu - ref)))
    # tolerance covers bf16 MXU operands, collapsed-weight rounding, approx
    # reciprocal in SiLU and the bf16 output; structural bugs produce errors
    # >10x this threshold.
    assert jnp.allclose(noise_mu, ref, rtol=3e-2, atol=3e-2), max_err

    print("KERNEL_OK")
</pallas_src>

<mosaic_0001>
module attributes {stable_mosaic.version = 11 : i64} {
  func.func @_fused_unet_kernel(%arg0: i32, %arg1: memref<288x1xf32, #tpu.memory_space<vmem>>, %arg2: memref<1x1x32xf32, #tpu.memory_space<vmem>>, %arg3: memref<1x288x36xbf16, #tpu.memory_space<vmem>>, %arg4: memref<36x32xbf16, #tpu.memory_space<vmem>>, %arg5: memref<288x128xbf16, #tpu.memory_space<vmem>>, %arg6: memref<1x128xf32, #tpu.memory_space<vmem>>, %arg7: memref<1x288x128xbf16, #tpu.memory_space<vmem>>, %arg8: memref<336x32xf32, #tpu.memory_space<vmem>>, %arg9: memref<288x288xbf16, #tpu.memory_space<vmem>>) attributes {dimension_semantics = [#tpu.dimension_semantics<parallel>], iteration_bounds = array<i64: 2>, scalar_prefetch = 0 : i64, scratch_operands = 2 : i64, tpu.core_type = #tpu.core_type<tc>, window_params = [{pipeline_mode = #tpu.pipeline_mode<synchronous>, transform_indices = @transform_0, window_bounds = array<i64: 288, 1>}, {transform_indices = @transform_1, window_bounds = array<i64: 1, 1, 32>}, {transform_indices = @transform_2, window_bounds = array<i64: 1, 288, 36>}, {pipeline_mode = #tpu.pipeline_mode<synchronous>, transform_indices = @transform_3, window_bounds = array<i64: 36, 32>}, {pipeline_mode = #tpu.pipeline_mode<synchronous>, transform_indices = @transform_4, window_bounds = array<i64: 288, 128>}, {pipeline_mode = #tpu.pipeline_mode<synchronous>, transform_indices = @transform_5, window_bounds = array<i64: 1, 128>}, {transform_indices = @transform_6, window_bounds = array<i64: 1, 288, 128>}]} {
    %c0 = arith.constant 0 : index
    %c0_0 = arith.constant 0 : index
    %c0_1 = arith.constant 0 : index
    %0 = vector.load %arg3[%c0, %c0_0, %c0_1] : memref<1x288x36xbf16, #tpu.memory_space<vmem>>, vector<1x288x36xbf16>
    %1 = vector.shape_cast %0 : vector<1x288x36xbf16> to vector<288x36xbf16>
    %c0_2 = arith.constant 0 : index
    %c0_3 = arith.constant 0 : index
    %2 = vector.load %arg4[%c0_2, %c0_3] : memref<36x32xbf16, #tpu.memory_space<vmem>>, vector<36x32xbf16>
    %cst = arith.constant dense<0.000000e+00> : vector<288x32xf32>
    %3 = tpu.matmul %1, %2, %cst {dimension_numbers = #tpu.dot_dimension_numbers<[1], [0], [0], [1], [0, 0, 1, 1], [], []>} : vector<288x36xbf16>, vector<36x32xbf16>, vector<288x32xf32> -> vector<288x32xf32>
    %c0_4 = arith.constant 0 : index
    %c0_5 = arith.constant 0 : index
    %c0_6 = arith.constant 0 : index
    %4 = vector.load %arg2[%c0_4, %c0_5, %c0_6] : memref<1x1x32xf32, #tpu.memory_space<vmem>>, vector<1x1x32xf32>
    %5 = vector.shape_cast %4 : vector<1x1x32xf32> to vector<1x32xf32>
    %6 = vector.broadcast %5 : vector<1x32xf32> to vector<288x32xf32>
    %7 = arith.addf %3, %6 : vector<288x32xf32>
    %cst_7 = arith.constant 0.000000e+00 : f32
    %8 = vector.broadcast %cst_7 : f32 to vector<288x32xf32>
    %9 = arith.subf %8, %7 : vector<288x32xf32>
    %10 = math.exp %9 : vector<288x32xf32>
    %cst_8 = arith.constant 1.000000e+00 : f32
    %11 = vector.broadcast %cst_8 : f32 to vector<288x32xf32>
    %12 = arith.addf %11, %10 : vector<288x32xf32>
    %13 = tpu.reciprocal %12 {approx = true} : vector<288x32xf32> -> vector<288x32xf32>
    %14 = arith.mulf %7, %13 : vector<288x32xf32>
    %c0_9 = arith.constant 0 : index
    %c0_10 = arith.constant 0 : index
    %15 = vector.load %arg1[%c0_9, %c0_10] : memref<288x1xf32, #tpu.memory_space<vmem>>, vector<288x1xf32>
    %16 = vector.broadcast %15 : vector<288x1xf32> to vector<288x32xf32>
    %17 = arith.mulf %14, %16 : vector<288x32xf32>
    %cst_11 = arith.constant 0.000000e+00 : f32
    %18 = vector.broadcast %cst_11 : f32 to vector<24x32xf32>
    %c0_12 = arith.constant 0 : index
    %c0_13 = arith.constant 0 : index
    %19 = vector.load %arg8[%c0_12, %c0_13] : memref<336x32xf32, #tpu.memory_space<vmem>>, vector<24x32xf32>
    tpu.vector_store %arg8[%c0_12, %c0_13], %18 {strides = array<i32>} : memref<336x32xf32, #tpu.memory_space<vmem>>, vector<24x32xf32>,
    %cst_14 = arith.constant 0.000000e+00 : f32
    %20 = vector.broadcast %cst_14 : f32 to vector<24x32xf32>
    %c312 = arith.constant 312 : index
    %c0_15 = arith.constant 0 : index
    %21 = vector.load %arg8[%c312, %c0_15] : memref<336x32xf32, #tpu.memory_space<vmem>>, vector<24x32xf32>
    tpu.vector_store %arg8[%c312, %c0_15], %20 {strides = array<i32>} : memref<336x32xf32, #tpu.memory_space<vmem>>, vector<24x32xf32>,
    %c24 = arith.constant 24 : index
    %c0_16 = arith.constant 0 : index
    %22 = vector.load %arg8[%c24, %c0_16] : memref<336x32xf32, #tpu.memory_space<vmem>>, vector<288x32xf32>
    tpu.vector_store %arg8[%c24, %c0_16], %17 {strides = array<i32>} : memref<336x32xf32, #tpu.memory_space<vmem>>, vector<288x32xf32>,
    %c5 = arith.constant 5 : index
    %c0_17 = arith.constant 0 : index
    %23 = vector.load %arg8[%c5, %c0_17] : memref<336x32xf32, #tpu.memory_space<vmem>>, vector<288x32xf32>
    %c6 = arith.constant 6 : index
    %c0_18 = arith.constant 0 : index
    %24 = vector.load %arg8[%c6, %c0_18] : memref<336x32xf32, #tpu.memory_space<vmem>>, vector<288x32xf32>
    %c7 = arith.constant 7 : index
    %c0_19 = arith.constant 0 : index
    %25 = vector.load %arg8[%c7, %c0_19] : memref<336x32xf32, #tpu.memory_space<vmem>>, vector<288x32xf32>
    %c23 = arith.constant 23 : index
    %c0_20 = arith.constant 0 : index
    %26 = vector.load %arg8[%c23, %c0_20] : memref<336x32xf32, #tpu.memory_space<vmem>>, vector<288x32xf32>
    %27 = tpu.concatenate %23, %24, %25, %26 in 1 : vector<288x32xf32>, vector<288x32xf32>, vector<288x32xf32>, vector<288x32xf32> -> vector<288x128xf32>
    %28 = arith.truncf %27 : vector<288x128xf32> to vector<288x128xbf16>
    %c0_21 = arith.constant 0 : index
    %c0_22 = arith.constant 0 : index
    %29 = vector.load %arg9[%c0_21, %c0_22] : memref<288x288xbf16, #tpu.memory_space<vmem>>, vector<288x128xbf16>
    tpu.vector_store %arg9[%c0_21, %c0_22], %28 {strides = array<i32>} : memref<288x288xbf16, #tpu.memory_space<vmem>>, vector<288x128xbf16>,
    %c24_23 = arith.constant 24 : index
    %c0_24 = arith.constant 0 : index
    %30 = vector.load %arg8[%c24_23, %c0_24] : memref<336x32xf32, #tpu.memory_space<vmem>>, vector<288x32xf32>
    %c25 = arith.constant 25 : index
    %c0_25 = arith.constant 0 : index
    %31 = vector.load %arg8[%c25, %c0_25] : memref<336x32xf32, #tpu.memory_space<vmem>>, vector<288x32xf32>
    %c41 = arith.constant 41 : index
    %c0_26 = arith.constant 0 : index
    %32 = vector.load %arg8[%c41, %c0_26] : memref<336x32xf32, #tpu.memory_space<vmem>>, vector<288x32xf32>
    %c42 = arith.constant 42 : index
    %c0_27 = arith.constant 0 : index
    %33 = vector.load %arg8[%c42, %c0_27] : memref<336x32xf32, #tpu.memory_space<vmem>>, vector<288x32xf32>
    %34 = tpu.concatenate %30, %31, %32, %33 in 1 : vector<288x32xf32>, vector<288x32xf32>, vector<288x32xf32>, vector<288x32xf32> -> vector<288x128xf32>
    %35 = arith.truncf %34 : vector<288x128xf32> to vector<288x128xbf16>
    %c0_28 = arith.constant 0 : index
    %c128 = arith.constant 128 : index
    %36 = vector.load %arg9[%c0_28, %c128] : memref<288x288xbf16, #tpu.memory_space<vmem>>, vector<288x128xbf16>
    tpu.vector_store %arg9[%c0_28, %c128], %35 {strides = array<i32>} : memref<288x288xbf16, #tpu.memory_space<vmem>>, vector<288x128xbf16>,
    %c43 = arith.constant 43 : index
    %c0_29 = arith.constant 0 : index
    %37 = vector.load %arg8[%c43, %c0_29] : memref<336x32xf32, #tpu.memory_space<vmem>>, vector<288x32xf32>
    %38 = arith.truncf %37 : vector<288x32xf32> to vector<288x32xbf16>
    %c0_30 = arith.constant 0 : index
    %c256 = arith.constant 256 : index
    %39 = vector.load %arg9[%c0_30, %c256] : memref<288x288xbf16, #tpu.memory_space<vmem>>, vector<288x32xbf16>
    tpu.vector_store %arg9[%c0_30, %c256], %38 {strides = array<i32>} : memref<288x288xbf16, #tpu.memory_space<vmem>>, vector<288x32xbf16>,
    %c0_31 = arith.constant 0 : index
    %c0_32 = arith.constant 0 : index
    %40 = vector.load %arg9[%c0_31, %c0_32] : memref<288x288xbf16, #tpu.memory_space<vmem>>, vector<288x288xbf16>
    %c0_33 = arith.constant 0 : index
    %c0_34 = arith.constant 0 : index
    %41 = vector.load %arg5[%c0_33, %c0_34] : memref<288x128xbf16, #tpu.memory_space<vmem>>, vector<288x128xbf16>
    %cst_35 = arith.constant dense<0.000000e+00> : vector<288x128xf32>
    %42 = tpu.matmul %40, %41, %cst_35 {dimension_numbers = #tpu.dot_dimension_numbers<[1], [0], [0], [1], [0, 0, 1, 1], [], []>} : vector<288x288xbf16>, vector<288x128xbf16>, vector<288x128xf32> -> vector<288x128xf32>
    %c0_36 = arith.constant 0 : index
    %c0_37 = arith.constant 0 : index
    %43 = vector.load %arg6[%c0_36, %c0_37] : memref<1x128xf32, #tpu.memory_space<vmem>>, vector<1x128xf32>
    %44 = vector.broadcast %43 : vector<1x128xf32> to vector<288x128xf32>
    %45 = arith.addf %42, %44 : vector<288x128xf32>
    %46 = arith.truncf %45 : vector<288x128xf32> to vector<288x128xbf16>
    %c0_38 = arith.constant 0 : index
    %c0_39 = arith.constant 0 : index
    %c0_40 = arith.constant 0 : index
    %47 = vector.load %arg7[%c0_38, %c0_39, %c0_40] : memref<1x288x128xbf16, #tpu.memory_space<vmem>>, vector<1x288x128xbf16>
    %48 = vector.shape_cast %47 : vector<1x288x128xbf16> to vector<288x128xbf16>
    %49 = vector.shape_cast %46 : vector<288x128xbf16> to vector<1x288x128xbf16>
    tpu.vector_store %arg7[%c0_38, %c0_39, %c0_40], %49 {strides = array<i32>} : memref<1x288x128xbf16, #tpu.memory_space<vmem>>, vector<1x288x128xbf16>,
    return
  }
  func.func @transform_0(%arg0: i32) -> (i32, i32) {
    %c0_i32 = arith.constant 0 : i32
    %c0_i32_0 = arith.constant 0 : i32
    %c0_i32_1 = arith.constant 0 : i32
    return %c0_i32, %c0_i32_0 : i32, i32
  }
  func.func @transform_1(%arg0: i32) -> (i32, i32, i32) {
    %c0_i32 = arith.constant 0 : i32
    %c0_i32_0 = arith.constant 0 : i32
    %c0_i32_1 = arith.constant 0 : i32
    return %arg0, %c0_i32, %c0_i32_0 : i32, i32, i32
  }
  func.func @transform_2(%arg0: i32) -> (i32, i32, i32) {
    %c0_i32 = arith.constant 0 : i32
    %c0_i32_0 = arith.constant 0 : i32
    %c0_i32_1 = arith.constant 0 : i32
    return %arg0, %c0_i32, %c0_i32_0 : i32, i32, i32
  }
  func.func @transform_3(%arg0: i32) -> (i32, i32) {
    %c0_i32 = arith.constant 0 : i32
    %c0_i32_0 = arith.constant 0 : i32
    %c0_i32_1 = arith.constant 0 : i32
    return %c0_i32, %c0_i32_0 : i32, i32
  }
  func.func @transform_4(%arg0: i32) -> (i32, i32) {
    %c0_i32 = arith.constant 0 : i32
    %c0_i32_0 = arith.constant 0 : i32
    %c0_i32_1 = arith.constant 0 : i32
    return %c0_i32, %c0_i32_0 : i32, i32
  }
  func.func @transform_5(%arg0: i32) -> (i32, i32) {
    %c0_i32 = arith.constant 0 : i32
    %c0_i32_0 = arith.constant 0 : i32
    %c0_i32_1 = arith.constant 0 : i32
    return %c0_i32, %c0_i32_0 : i32, i32
  }
  func.func @transform_6(%arg0: i32) -> (i32, i32, i32) {
    %c0_i32 = arith.constant 0 : i32
    %c0_i32_0 = arith.constant 0 : i32
    %c0_i32_1 = arith.constant 0 : i32
    return %arg0, %c0_i32, %c0_i32_0 : i32, i32, i32
  }
}

</mosaic_0001>

<llo_original>
// kernel: tpu_custom_call.1
$region0: #{tpu_custom_call.1}
  #allocation0 [shape = 'u32[]', space=smem, size = 0x4, offset = 0x4, fixed_abs, tag = 'smem constant byte address 0x4 - core index']
  #allocation1 [shape = 'u32[144,128]{1,0:T(1,128)}', space=vmem, size = 0x12000, scoped, tag = 'internal scratch']
  #allocation2 [shape = 'f32[336,32]{1,0:T(8,128)}', space=vmem, size = 0x2a000, scoped, tag = 'scratch operand']
  #allocation3 [shape = 'bf16[288,288]{1,0:T(8,128)(2,1)}', space=vmem, size = 0x36000, scoped, tag = 'scratch operand']
  %s0 = inlined_call_operand.vmem [shape: f32[288,1], index: 0, kind: input, shape index: {}]
  %s1 = inlined_call_operand.vmem [shape: f32[2,1,32], index: 1, kind: input, shape index: {}]
  %s2 = inlined_call_operand.vmem [shape: bf16[2,288,36], index: 2, kind: input, shape index: {}]
  %s3 = inlined_call_operand.vmem [shape: bf16[36,32], index: 3, kind: input, shape index: {}]
  %s4 = inlined_call_operand.vmem [shape: bf16[288,128], index: 4, kind: input, shape index: {}]
  %s5 = inlined_call_operand.vmem [shape: f32[1,128], index: 5, kind: input, shape index: {}]
  %s6 = inlined_call_operand.hbm [shape: bf16[2,288,128], index: 6, kind: output, shape index: {}]
  %s7 = sld [smem:[#allocation0]]
  $region57: #{tpu_custom_call.1} parent=0
    _
  %s9 = ssub.s32 1, %s7
  %s10 = scalar_select 0, %s9, %s7
  $region1: #{tpu_custom_call.1} parent=0
    #allocation4 [shape = 'u8[147456]{0}', space=vmem, size = 0x24000, scoped, tag = 'output window, operand 0']
    #allocation5 [shape = 's32[2]{0}', space=sflag, size = 0x8, scoped, tag = 'scoped memory for tpu_custom_call.1']
    %11 = vsyncpa [#allocation5], 0
    %s12 = scalar_lea.sflag [#allocation5], 1
    %13 = vsyncpa %s12, 0
    loop: start=0, step=1, limit=4
    $region2: #{tpu_custom_call.1} parent=1 // loop_pre_header
      _
    $region3: #{tpu_custom_call.1} parent=1 // loop_header
      %s15 = sphi 0, %s19
      %p16 = scmp.ge.s32.totalorder %s15, 4
      %s23 = sphi 0, %s23
      %s25 = sphi 0, %s23
      %s26 = sphi 0, %s25
      %s40 = sphi 0, %s26
      %s46 = sphi 0, %s48
      %s49 = sphi 0, %s46
      %s50 = sphi 0, %s49
      %s66 = sphi 0, %s50
      %s72 = sphi 0, %s74
      %s75 = sphi 0, %s72
      %s76 = sphi 0, %s75
      %s92 = sphi 0, %s76
      %s96 = sphi 0, %s96
      %s98 = sphi 0, %s96
      %s99 = sphi 0, %s98
      %s113 = sphi 0, %s99
      %s117 = sphi 0, %s117
      %s119 = sphi 0, %s117
      %s120 = sphi 0, %s119
      %s134 = sphi 0, %s120
      %s138 = sphi 0, %s138
      %s140 = sphi 0, %s138
      %s141 = sphi 0, %s140
      %s155 = sphi 0, %s141
      %s161 = sphi 0, %s163
      %s164 = sphi 0, %s161
      %s165 = sphi 0, %s164
      %s181 = sphi 0, %s165
    $region4: #{tpu_custom_call.1} parent=1 // loop_header_branch
      %18 = sbr.rel (%p16) target = $region8
    $region5: #{tpu_custom_call.1} parent=1 // loop_body
      %s20 = ssub.s32 %s15, 1
      %s21 = ssub.s32 %s15, 2
      %s22 = sadd.s32 %s15, 1
      %s24 = sadd.s32 %s23, 1
      %p27 = scmp.eq.s32.totalorder %s15, 1
      %p28 = scmp.ne.s32.totalorder %s23, %s25
      %p29 = scmp.eq.s32.totalorder %s15, 0
      %p30 = por %p28, %p29
      %p31 = scmp.ne.s32.totalorder %s23, %s25
      %p32 = scmp.eq.s32.totalorder %s20, 1
      %p33 = por %p31, %p32
      %p34 = scmp.ne.s32.totalorder %s25, %s26
      %p35 = scmp.eq.s32.totalorder %s20, 0
      %p36 = por %p34, %p35
      %p37 = scmp.ne.s32.totalorder %s25, %s26
      %p38 = scmp.eq.s32.totalorder %s21, 1
      %p39 = por %p37, %p38
      %p41 = scmp.ne.s32.totalorder %s26, %s40
      %p42 = scmp.eq.s32.totalorder %s21, 0
      %p43 = por %p41, %p42
      %s44 = ssub.s32 %s15, %s22
      %p45 = scmp.eq.s32.totalorder %s44, 0
      %s47 = sadd.s32 %s46, 1
      %s48 = scalar_select %p45, %s46, %s47
      %p51 = pneg %p45
      %p52 = scmp.eq.s32.totalorder %s15, 1
      %p53 = por %p51, %p52
      %p54 = scmp.ne.s32.totalorder %s46, %s49
      %p55 = scmp.eq.s32.totalorder %s15, 0
      %p56 = por %p54, %p55
      %p57 = scmp.ne.s32.totalorder %s46, %s49
      %p58 = scmp.eq.s32.totalorder %s20, 1
      %p59 = por %p57, %p58
      %p60 = scmp.ne.s32.totalorder %s49, %s50
      %p61 = scmp.eq.s32.totalorder %s20, 0
      %p62 = por %p60, %p61
      %p63 = scmp.ne.s32.totalorder %s49, %s50
      %p64 = scmp.eq.s32.totalorder %s21, 1
      %p65 = por %p63, %p64
      %p67 = scmp.ne.s32.totalorder %s50, %s66
      %p68 = scmp.eq.s32.totalorder %s21, 0
      %p69 = por %p67, %p68
      %s70 = ssub.s32 %s15, %s22
      %p71 = scmp.eq.s32.totalorder %s70, 0
      %s73 = sadd.s32 %s72, 1
      %s74 = scalar_select %p71, %s72, %s73
      %p77 = pneg %p71
      %p78 = scmp.eq.s32.totalorder %s15, 1
      %p79 = por %p77, %p78
      %p80 = scmp.ne.s32.totalorder %s72, %s75
      %p81 = scmp.eq.s32.totalorder %s15, 0
      %p82 = por %p80, %p81
      %p83 = scmp.ne.s32.totalorder %s72, %s75
      %p84 = scmp.eq.s32.totalorder %s20, 1
      %p85 = por %p83, %p84
      %p86 = scmp.ne.s32.totalorder %s75, %s76
      %p87 = scmp.eq.s32.totalorder %s20, 0
      %p88 = por %p86, %p87
      %p89 = scmp.ne.s32.totalorder %s75, %s76
      %p90 = scmp.eq.s32.totalorder %s21, 1
      %p91 = por %p89, %p90
      %p93 = scmp.ne.s32.totalorder %s76, %s92
      %p94 = scmp.eq.s32.totalorder %s21, 0
      %p95 = por %p93, %p94
      %s97 = sadd.s32 %s96, 1
      %p100 = scmp.eq.s32.totalorder %s15, 1
      %p101 = scmp.ne.s32.totalorder %s96, %s98
      %p102 = scmp.eq.s32.totalorder %s15, 0
      %p103 = por %p101, %p102
      %p104 = scmp.ne.s32.totalorder %s96, %s98
      %p105 = scmp.eq.s32.totalorder %s20, 1
      %p106 = por %p104, %p105
      %p107 = scmp.ne.s32.totalorder %s98, %s99
      %p108 = scmp.eq.s32.totalorder %s20, 0
      %p109 = por %p107, %p108
      %p110 = scmp.ne.s32.totalorder %s98, %s99
      %p111 = scmp.eq.s32.totalorder %s21, 1
      %p112 = por %p110, %p111
      %p114 = scmp.ne.s32.totalorder %s99, %s113
      %p115 = scmp.eq.s32.totalorder %s21, 0
      %p116 = por %p114, %p115
      %s118 = sadd.s32 %s117, 1
      %p121 = scmp.eq.s32.totalorder %s15, 1
      %p122 = scmp.ne.s32.totalorder %s117, %s119
      %p123 = scmp.eq.s32.totalorder %s15, 0
      %p124 = por %p122, %p123
      %p125 = scmp.ne.s32.totalorder %s117, %s119
      %p126 = scmp.eq.s32.totalorder %s20, 1
      %p127 = por %p125, %p126
      %p128 = scmp.ne.s32.totalorder %s119, %s120
      %p129 = scmp.eq.s32.totalorder %s20, 0
      %p130 = por %p128, %p129
      %p131 = scmp.ne.s32.totalorder %s119, %s120
      %p132 = scmp.eq.s32.totalorder %s21, 1
      %p133 = por %p131, %p132
      %p135 = scmp.ne.s32.totalorder %s120, %s134
      %p136 = scmp.eq.s32.totalorder %s21, 0
      %p137 = por %p135, %p136
      %s139 = sadd.s32 %s138, 1
      %p142 = scmp.eq.s32.totalorder %s15, 1
      %p143 = scmp.ne.s32.totalorder %s138, %s140
      %p144 = scmp.eq.s32.totalorder %s15, 0
      %p145 = por %p143, %p144
      %p146 = scmp.ne.s32.totalorder %s138, %s140
      %p147 = scmp.eq.s32.totalorder %s20, 1
      %p148 = por %p146, %p147
      %p149 = scmp.ne.s32.totalorder %s140, %s141
      %p150 = scmp.eq.s32.totalorder %s20, 0
      %p151 = por %p149, %p150
      %p152 = scmp.ne.s32.totalorder %s140, %s141
      %p153 = scmp.eq.s32.totalorder %s21, 1
      %p154 = por %p152, %p153
      %p156 = scmp.ne.s32.totalorder %s141, %s155
      %p157 = scmp.eq.s32.totalorder %s21, 0
      %p158 = por %p156, %p157
      %s159 = ssub.s32 %s15, %s22
      %p160 = scmp.eq.s32.totalorder %s159, 0
      %s162 = sadd.s32 %s161, 1
      %s163 = scalar_select %p160, %s161, %s162
      %p166 = pneg %p160
      %p167 = scmp.eq.s32.totalorder %s15, 1
      %p168 = por %p166, %p167
      %p169 = scmp.ne.s32.totalorder %s161, %s164
      %p170 = scmp.eq.s32.totalorder %s15, 0
      %p171 = por %p169, %p170
      %p172 = scmp.ne.s32.totalorder %s161, %s164
      %p173 = scmp.eq.s32.totalorder %s20, 1
      %p174 = por %p172, %p173
      %p175 = scmp.ne.s32.totalorder %s164, %s165
      %p176 = scmp.eq.s32.totalorder %s20, 0
      %p177 = por %p175, %p176
      %p178 = scmp.ne.s32.totalorder %s164, %s165
      %p179 = scmp.eq.s32.totalorder %s21, 1
      %p180 = por %p178, %p179
      %p182 = scmp.ne.s32.totalorder %s165, %s181
      %p183 = scmp.eq.s32.totalorder %s21, 0
      %p184 = por %p182, %p183
      %p185 = scmp.le.s32.totalorder 1, %s15
      %p186 = scmp.lt.s32.totalorder %s15, 3
      %p187 = pnand %p185, %p186
      %p188 = pneg %p187
      // Predicated region
      $region9: #{tpu_custom_call.1} parent=5 // pred_check
        _
      $region10: #{tpu_custom_call.1} parent=5 // pred_check_branch
        %190 = sbr.rel (%p187) target = $region12
      $region11: #{tpu_custom_call.1} parent=5 // pred_region
        %s191 = ssub.s32 %s15, 1
        // Predicated region
        $region13: #{tpu_custom_call.1} parent=11 // pred_check
          %p192 = pneg %p36
        $region14: #{tpu_custom_call.1} parent=11 // pred_check_branch
          %194 = sbr.rel (%p192) target = $region16
        $region15: #{tpu_custom_call.1} parent=11 // pred_region
          _
        $region16: #{tpu_custom_call.1} parent=11 // pred_fallthru
          _
        // Predicated region
        $region17: #{tpu_custom_call.1} parent=11 // pred_check
          %p195 = pneg %p109
        $region18: #{tpu_custom_call.1} parent=11 // pred_check_branch
          %197 = sbr.rel (%p195) target = $region20
        $region19: #{tpu_custom_call.1} parent=11 // pred_region
          _
        $region20: #{tpu_custom_call.1} parent=11 // pred_fallthru
          _
        // Predicated region
        $region21: #{tpu_custom_call.1} parent=11 // pred_check
          %p198 = pneg %p130
        $region22: #{tpu_custom_call.1} parent=11 // pred_check_branch
          %200 = sbr.rel (%p198) target = $region24
        $region23: #{tpu_custom_call.1} parent=11 // pred_region
          _
        $region24: #{tpu_custom_call.1} parent=11 // pred_fallthru
          _
        // Predicated region
        $region25: #{tpu_custom_call.1} parent=11 // pred_check
          %p201 = pneg %p151
        $region26: #{tpu_custom_call.1} parent=11 // pred_check_branch
          %203 = sbr.rel (%p201) target = $region28
        $region27: #{tpu_custom_call.1} parent=11 // pred_region
          _
        $region28: #{tpu_custom_call.1} parent=11 // pred_fallthru
          _
      $region12: #{tpu_custom_call.1} parent=5 // pred_fallthru
        _
      %p204 = scmp.lt.s32.totalorder %s15, 2
      // Predicated region
      $region29: #{tpu_custom_call.1} parent=5 // pred_check
        %p205 = pneg %p204
      $region30: #{tpu_custom_call.1} parent=5 // pred_check_branch
        %207 = sbr.rel (%p205) target = $region32
      $region31: #{tpu_custom_call.1} parent=5 // pred_region
        // Predicated region
        $region33: #{tpu_custom_call.1} parent=31 // pred_check
          %p208 = pneg %p56
        $region34: #{tpu_custom_call.1} parent=31 // pred_check_branch
          %210 = sbr.rel (%p208) target = $region36
        $region35: #{tpu_custom_call.1} parent=31 // pred_region
          %p211 = scmp.lt.s32.totalorder %s15, 1
          %s212 = scalar_select %p211, %s15, 1
          %s213 = scalar_lea.vmem %s1, %s212
        $region36: #{tpu_custom_call.1} parent=31 // pred_fallthru
          _
        // Predicated region
        $region37: #{tpu_custom_call.1} parent=31 // pred_check
          %p214 = pneg %p82
        $region38: #{tpu_custom_call.1} parent=31 // pred_check_branch
          %216 = sbr.rel (%p214) target = $region40
        $region39: #{tpu_custom_call.1} parent=31 // pred_region
          %p217 = scmp.lt.s32.totalorder %s15, 1
          %s218 = scalar_select %p217, %s15, 1
          %s219 = smul.addr %s218, 36
          %s220 = smul.addr %s219, 4
          %s221 = scalar_lea.vmem %s2, %s220
        $region40: #{tpu_custom_call.1} parent=31 // pred_fallthru
          _
      $region32: #{tpu_custom_call.1} parent=5 // pred_fallthru
        _
      %p222 = scmp.le.s32.totalorder 1, %s15
      %p223 = scmp.lt.s32.totalorder %s15, 3
      %p224 = pnand %p222, %p223
      %p225 = pneg %p224
      // Predicated region
      $region41: #{tpu_custom_call.1} parent=5 // pred_check
        _
      $region42: #{tpu_custom_call.1} parent=5 // pred_check_branch
        %227 = sbr.rel (%p224) target = $region44
      $region43: #{tpu_custom_call.1} parent=5 // pred_region
        %s228 = ssub.s32 %s15, 1
        %p229 = pneg %p36
        %p230 = pneg %p33
        %p231 = scmp.lt.s32.totalorder %s20, 1
        %s232 = scalar_select %p231, %s20, 1
        %s233 = scalar_lea.vmem %s1, %s232
        %p234 = pneg %p62
        %p235 = pneg %p59
        %p236 = scmp.lt.s32.totalorder %s20, 1
        %s237 = scalar_select %p236, %s20, 1
        %s238 = smul.addr %s237, 36
        %s239 = smul.addr %s238, 4
        %s240 = scalar_lea.vmem %s2, %s239
        %p241 = pneg %p88
        %p242 = pneg %p85
        %p243 = pneg %p109
        %p244 = pneg %p106
        %p245 = pneg %p130
        %p246 = pneg %p127
        %p247 = pneg %p151
        %p248 = pneg %p148
        %p249 = pneg %p177
        %p250 = pneg %p174
        %s251 = sand.u32 %s164, 1
        %s252 = scalar_lea.sflag [#allocation5], %s251
        %s253 = sand.u32 %s164, 1
        %s254 = smul.addr %s253, 144
        %s255 = scalar_lea.vmem [#allocation4], %s254
        %p256 = scmp.lt.s32.totalorder %s20, 1
        %s257 = scalar_select %p256, %s20, 1
        %s258 = scalar_lea.vmem %s1, %s257
        %p259 = scmp.lt.s32.totalorder %s20, 1
        %s260 = scalar_select %p259, %s20, 1
        %s261 = smul.addr %s260, 36
        %s262 = smul.addr %s261, 4
        %s263 = scalar_lea.vmem %s2, %s262
        %v265 = vld [vmem:[%s263] sm:$0xf]
        %v266 = vld [vmem:[%s263 + $0x4] sm:$0xf]
        %v267 = vld [vmem:[%s263 + $0x8] sm:$0xf]
        %v268 = vld [vmem:[%s263 + $0xc] sm:$0xf]
        %v269 = vld [vmem:[%s263 + $0x10] sm:$0xf]
        %v270 = vld [vmem:[%s263 + $0x14] sm:$0xf]
        %v271 = vld [vmem:[%s263 + $0x18] sm:$0xf]
        %v272 = vld [vmem:[%s263 + $0x1c] sm:$0xf]
        %v273 = vld [vmem:[%s263 + $0x20] sm:$0xf]
        %v274 = vld [vmem:[%s263 + $0x24] sm:$0xf]
        %v275 = vld [vmem:[%s263 + $0x28] sm:$0xf]
        %v276 = vld [vmem:[%s263 + $0x2c] sm:$0xf]
        %v277 = vld [vmem:[%s263 + $0x30] sm:$0xf]
        %v278 = vld [vmem:[%s263 + $0x34] sm:$0xf]
        %v279 = vld [vmem:[%s263 + $0x38] sm:$0xf]
        %v280 = vld [vmem:[%s263 + $0x3c] sm:$0xf]
        %v281 = vld [vmem:[%s263 + $0x40] sm:$0xf]
        %v282 = vld [vmem:[%s263 + $0x44] sm:$0xf]
        %v283 = vld [vmem:[%s263 + $0x48] sm:$0xf]
        %v284 = vld [vmem:[%s263 + $0x4c] sm:$0xf]
        %v285 = vld [vmem:[%s263 + $0x50] sm:$0xf]
        %v286 = vld [vmem:[%s263 + $0x54] sm:$0xf]
        %v287 = vld [vmem:[%s263 + $0x58] sm:$0xf]
        %v288 = vld [vmem:[%s263 + $0x5c] sm:$0xf]
        %v289 = vld [vmem:[%s263 + $0x60] sm:$0xf]
        %v290 = vld [vmem:[%s263 + $0x64] sm:$0xf]
        %v291 = vld [vmem:[%s263 + $0x68] sm:$0xf]
        %v292 = vld [vmem:[%s263 + $0x6c] sm:$0xf]
        %v293 = vld [vmem:[%s263 + $0x70] sm:$0xf]
        %v294 = vld [vmem:[%s263 + $0x74] sm:$0xf]
        %v295 = vld [vmem:[%s263 + $0x78] sm:$0xf]
        %v296 = vld [vmem:[%s263 + $0x7c] sm:$0xf]
        %v297 = vld [vmem:[%s263 + $0x80] sm:$0xf]
        %v298 = vld [vmem:[%s263 + $0x84] sm:$0xf]
        %v299 = vld [vmem:[%s263 + $0x88] sm:$0xf]
        %v300 = vld [vmem:[%s263 + $0x8c] sm:$0xf]
        %v301 = vld [vmem:[%s3] sm:$0xf]
        %v302 = vld [vmem:[%s3 + $0x4] sm:$0xf]
        %v303 = vld [vmem:[%s3 + $0x8] sm:$0xf]
        %v304 = vld [vmem:[%s3 + $0xc] sm:$0xf]
        %v305 = vld [vmem:[%s3 + $0x10] sm:$0x3]
        %v306 = vld [vmem:[%s258] sm:$0x1]
        %v308 = vlaneseq
        %v309 = vshrl.u32 %v308, 7
        %v310 = vsub.s32 0, %v309
        %v311 = vrot.slane %v306, %v310
        %v349 = vunpack.c.l.b16 %v265
        %v350 = vunpack.c.l.b16 %v266
        %v351 = vunpack.c.l.b16 %v267
        %v352 = vunpack.c.l.b16 %v268
        %v353 = vunpack.c.l.b16 %v269
        %v354 = vunpack.c.l.b16 %v270
        %v355 = vunpack.c.l.b16 %v271
        %v356 = vunpack.c.l.b16 %v272
        %v357 = vunpack.c.l.b16 %v273
        %v358 = vunpack.c.l.b16 %v274
        %v359 = vunpack.c.l.b16 %v275
        %v360 = vunpack.c.l.b16 %v276
        %v361 = vunpack.c.l.b16 %v277
        %v362 = vunpack.c.l.b16 %v278
        %v363 = vunpack.c.l.b16 %v279
        %v364 = vunpack.c.l.b16 %v280
        %v365 = vunpack.c.l.b16 %v281
        %v366 = vunpack.c.l.b16 %v282
        %v367 = vunpack.c.l.b16 %v283
        %v368 = vunpack.c.l.b16 %v284
        %v369 = vunpack.c.l.b16 %v285
        %v370 = vunpack.c.l.b16 %v286
        %v371 = vunpack.c.l.b16 %v287
        %v372 = vunpack.c.l.b16 %v288
        %v373 = vunpack.c.l.b16 %v289
        %v374 = vunpack.c.l.b16 %v290
        %v375 = vunpack.c.l.b16 %v291
        %v376 = vunpack.c.l.b16 %v292
        %v377 = vunpack.c.l.b16 %v293
        %v378 = vunpack.c.l.b16 %v294
        %v379 = vunpack.c.l.b16 %v295
        %v380 = vunpack.c.l.b16 %v296
        %v381 = vunpack.c.l.b16 %v297
        %v382 = vunpack.c.l.b16 %v298
        %v383 = vunpack.c.l.b16 %v299
        %v384 = vunpack.c.l.b16 %v300
        %v385 = vpack.c.b16 %v350, %v349
        %v386 = vpack.c.b16 %v352, %v351
        %v387 = vpack.c.b16 %v354, %v353
        %v388 = vpack.c.b16 %v356, %v355
        %v389 = vpack.c.b16 %v358, %v357
        %v390 = vpack.c.b16 %v360, %v359
        %v391 = vpack.c.b16 %v362, %v361
        %v392 = vpack.c.b16 %v364, %v363
        %v393 = vpack.c.b16 %v366, %v365
        %v394 = vpack.c.b16 %v368, %v367
        %v395 = vpack.c.b16 %v370, %v369
        %v396 = vpack.c.b16 %v372, %v371
        %v397 = vpack.c.b16 %v374, %v373
        %v398 = vpack.c.b16 %v376, %v375
        %v399 = vpack.c.b16 %v378, %v377
        %v400 = vpack.c.b16 %v380, %v379
        %v401 = vpack.c.b16 %v382, %v381
        %v402 = vpack.c.b16 %v384, %v383
        %v408 = vunpack.c.l.b16 %v301
        %v409 = vunpack.c.l.b16 %v302
        %v410 = vunpack.c.l.b16 %v303
        %v411 = vunpack.c.l.b16 %v304
        %v412 = vunpack.c.l.b16 %v305
        %v413 = vpack.c.b16 %v409, %v408
        %v414 = vpack.c.b16 %v411, %v410
        %v415 = vpack.c.b16 %v412, %v412
        %vm418 = vcmask 293888
        %v420 = vsel %vm418, %v385, 0
        %v423 = vsel %vm418, %v386, 0
        %v426 = vsel %vm418, %v387, 0
        %v429 = vsel %vm418, %v388, 0
        %v432 = vsel %vm418, %v389, 0
        %v435 = vsel %vm418, %v390, 0
        %v438 = vsel %vm418, %v391, 0
        %v441 = vsel %vm418, %v392, 0
        %v444 = vsel %vm418, %v393, 0
        %v447 = vsel %vm418, %v394, 0
        %v450 = vsel %vm418, %v395, 0
        %v453 = vsel %vm418, %v396, 0
        %v456 = vsel %vm418, %v397, 0
        %v459 = vsel %vm418, %v398, 0
        %v462 = vsel %vm418, %v399, 0
        %v465 = vsel %vm418, %v400, 0
        %v468 = vsel %vm418, %v401, 0
        %v471 = vsel %vm418, %v402, 0
        %vm473 = vcmask 1041408
        %v475 = vsel %vm473, %v415, 0
        %477 = vmatprep.subr.bf16.mxu0 0
        %478 = vmatpush1.bf16.msra.mxu0 0
        %479 = vmatprep.subr.bf16.mxu0 0
        %480 = vmatpush1.bf16.msra.mxu0 0
        %481 = vmatprep.subr.bf16.mxu0 0
        %482 = vmatpush1.bf16.msra.mxu0 0
        %483 = vmatprep.subr.bf16.mxu0 0
        %484 = vmatpush1.bf16.msra.mxu0 0
        %485 = vmatprep.subr.bf16.mxu0 0
        %486 = vmatpush1.bf16.msra.mxu0 0
        %487 = vmatprep.subr.bf16.mxu0 0
        %488 = vmatpush1.bf16.msra.mxu0 %v475
        %489 = vmatprep.subr.bf16.mxu0 0
        %490 = vmatpush1.bf16.msra.mxu0 %v414
        %491 = vmatprep.subr.bf16.mxu0 0
        %492 = vmatpush1.bf16.msra.mxu0 %v413
        %493 = vmatprep.subr.bf16.mxu0 0
        %494 = vmatpush2.bf16.msra.mxu0 0
        %495 = vmatprep.subr.bf16.mxu0 0
        %496 = vmatpush2.bf16.msra.mxu0 0
        %497 = vmatprep.subr.bf16.mxu0 0
        %498 = vmatpush2.bf16.msra.mxu0 0
        %499 = vmatprep.subr.bf16.mxu0 0
        %500 = vmatpush2.bf16.msra.mxu0 0
        %501 = vmatprep.subr.bf16.mxu0 0
        %502 = vmatpush2.bf16.msra.mxu0 0
        %503 = vmatprep.subr.bf16.mxu0 0
        %504 = vmatpush2.bf16.msra.mxu0 0
        %505 = vmatprep.subr.bf16.mxu0 0
        %506 = vmatpush2.bf16.msra.mxu0 0
        %507 = vmatprep.subr.bf16.mxu0 0
        %508 = vmatpush2.bf16.msra.mxu0 0
        %509 = vmatprep.mubr.bf16.mxu0 0
        %510 = vmatmul.mubr.bf16.gmra.mxu0 %v420
        %v511 = vpop.f32.mrf.mxu0
        %v512 = vadd.f32 %v311, %v511
        %v513 = vpop.f32.mrf.mxu0
        %v514 = vpop.f32.mrf.mxu0
        %v515 = vadd.f32 %v311, %v514
        %v516 = vpop.f32.mrf.mxu0
        %517 = vmatprep.mubr.bf16.mxu0 0
        %518 = vmatmul.mubr.bf16.gmra.mxu0 %v423
        %v519 = vpop.f32.mrf.mxu0
        %v520 = vadd.f32 %v311, %v519
        %v521 = vpop.f32.mrf.mxu0
        %v522 = vpop.f32.mrf.mxu0
        %v523 = vadd.f32 %v311, %v522
        %v524 = vpop.f32.mrf.mxu0
        %525 = vmatprep.mubr.bf16.mxu0 0
        %526 = vmatmul.mubr.bf16.gmra.mxu0 %v426
        %v527 = vpop.f32.mrf.mxu0
        %v528 = vadd.f32 %v311, %v527
        %v529 = vpop.f32.mrf.mxu0
        %v530 = vpop.f32.mrf.mxu0
        %v531 = vadd.f32 %v311, %v530
        %v532 = vpop.f32.mrf.mxu0
        %533 = vmatprep.mubr.bf16.mxu0 0
        %534 = vmatmul.mubr.bf16.gmra.mxu0 %v429
        %v535 = vpop.f32.mrf.mxu0
        %v536 = vadd.f32 %v311, %v535
        %v537 = vpop.f32.mrf.mxu0
        %v538 = vpop.f32.mrf.mxu0
        %v539 = vadd.f32 %v311, %v538
        %v540 = vpop.f32.mrf.mxu0
        %541 = vmatprep.mubr.bf16.mxu0 0
        %542 = vmatmul.mubr.bf16.gmra.mxu0 %v432
        %v543 = vpop.f32.mrf.mxu0
        %v544 = vadd.f32 %v311, %v543
        %v545 = vpop.f32.mrf.mxu0
        %v546 = vpop.f32.mrf.mxu0
        %v547 = vadd.f32 %v311, %v546
        %v548 = vpop.f32.mrf.mxu0
        %549 = vmatprep.mubr.bf16.mxu0 0
        %550 = vmatmul.mubr.bf16.gmra.mxu0 %v435
        %v551 = vpop.f32.mrf.mxu0
        %v552 = vadd.f32 %v311, %v551
        %v553 = vpop.f32.mrf.mxu0
        %v554 = vpop.f32.mrf.mxu0
        %v555 = vadd.f32 %v311, %v554
        %v556 = vpop.f32.mrf.mxu0
        %557 = vmatprep.mubr.bf16.mxu0 0
        %558 = vmatmul.mubr.bf16.gmra.mxu0 %v438
        %v559 = vpop.f32.mrf.mxu0
        %v560 = vadd.f32 %v311, %v559
        %v561 = vpop.f32.mrf.mxu0
        %v562 = vpop.f32.mrf.mxu0
        %v563 = vadd.f32 %v311, %v562
        %v564 = vpop.f32.mrf.mxu0
        %565 = vmatprep.mubr.bf16.mxu0 0
        %566 = vmatmul.mubr.bf16.gmra.mxu0 %v441
        %v567 = vpop.f32.mrf.mxu0
        %v568 = vadd.f32 %v311, %v567
        %v569 = vpop.f32.mrf.mxu0
        %v570 = vpop.f32.mrf.mxu0
        %v571 = vadd.f32 %v311, %v570
        %v572 = vpop.f32.mrf.mxu0
        %573 = vmatprep.mubr.bf16.mxu0 0
        %574 = vmatmul.mubr.bf16.gmra.mxu0 %v444
        %v575 = vpop.f32.mrf.mxu0
        %v576 = vadd.f32 %v311, %v575
        %v577 = vpop.f32.mrf.mxu0
        %v578 = vpop.f32.mrf.mxu0
        %v579 = vadd.f32 %v311, %v578
        %v580 = vpop.f32.mrf.mxu0
        %581 = vmatprep.mubr.bf16.mxu0 0
        %582 = vmatmul.mubr.bf16.gmra.mxu0 %v447
        %v583 = vpop.f32.mrf.mxu0
        %v584 = vadd.f32 %v311, %v583
        %v585 = vpop.f32.mrf.mxu0
        %v586 = vpop.f32.mrf.mxu0
        %v587 = vadd.f32 %v311, %v586
        %v588 = vpop.f32.mrf.mxu0
        %589 = vmatprep.mubr.bf16.mxu0 0
        %590 = vmatmul.mubr.bf16.gmra.mxu0 %v450
        %v591 = vpop.f32.mrf.mxu0
        %v592 = vadd.f32 %v311, %v591
        %v593 = vpop.f32.mrf.mxu0
        %v594 = vpop.f32.mrf.mxu0
        %v595 = vadd.f32 %v311, %v594
        %v596 = vpop.f32.mrf.mxu0
        %597 = vmatprep.mubr.bf16.mxu0 0
        %598 = vmatmul.mubr.bf16.gmra.mxu0 %v453
        %v599 = vpop.f32.mrf.mxu0
        %v600 = vadd.f32 %v311, %v599
        %v601 = vpop.f32.mrf.mxu0
        %v602 = vpop.f32.mrf.mxu0
        %v603 = vadd.f32 %v311, %v602
        %v604 = vpop.f32.mrf.mxu0
        %605 = vmatprep.mubr.bf16.mxu0 0
        %606 = vmatmul.mubr.bf16.gmra.mxu0 %v456
        %v607 = vpop.f32.mrf.mxu0
        %v608 = vadd.f32 %v311, %v607
        %v609 = vpop.f32.mrf.mxu0
        %v610 = vpop.f32.mrf.mxu0
        %v611 = vadd.f32 %v311, %v610
        %v612 = vpop.f32.mrf.mxu0
        %613 = vmatprep.mubr.bf16.mxu0 0
        %614 = vmatmul.mubr.bf16.gmra.mxu0 %v459
        %v615 = vpop.f32.mrf.mxu0
        %v616 = vadd.f32 %v311, %v615
        %v617 = vpop.f32.mrf.mxu0
        %v618 = vpop.f32.mrf.mxu0
        %v619 = vadd.f32 %v311, %v618
        %v620 = vpop.f32.mrf.mxu0
        %621 = vmatprep.mubr.bf16.mxu0 0
        %622 = vmatmul.mubr.bf16.gmra.mxu0 %v462
        %v623 = vpop.f32.mrf.mxu0
        %v624 = vadd.f32 %v311, %v623
        %v625 = vpop.f32.mrf.mxu0
        %v626 = vpop.f32.mrf.mxu0
        %v627 = vadd.f32 %v311, %v626
        %v628 = vpop.f32.mrf.mxu0
        %629 = vmatprep.mubr.bf16.mxu0 0
        %630 = vmatmul.mubr.bf16.gmra.mxu0 %v465
        %v631 = vpop.f32.mrf.mxu0
        %v632 = vadd.f32 %v311, %v631
        %v633 = vpop.f32.mrf.mxu0
        %v634 = vpop.f32.mrf.mxu0
        %v635 = vadd.f32 %v311, %v634
        %v636 = vpop.f32.mrf.mxu0
        %637 = vmatprep.mubr.bf16.mxu0 0
        %638 = vmatmul.mubr.bf16.gmra.mxu0 %v468
        %v639 = vpop.f32.mrf.mxu0
        %v640 = vadd.f32 %v311, %v639
        %v641 = vpop.f32.mrf.mxu0
        %v642 = vpop.f32.mrf.mxu0
        %v643 = vadd.f32 %v311, %v642
        %v644 = vpop.f32.mrf.mxu0
        %645 = vmatprep.mubr.bf16.mxu0 0
        %646 = vmatmul.mubr.bf16.gmra.mxu0 %v471
        %v647 = vpop.f32.mrf.mxu0
        %v648 = vadd.f32 %v311, %v647
        %v649 = vpop.f32.mrf.mxu0
        %v650 = vpop.f32.mrf.mxu0
        %v651 = vadd.f32 %v311, %v650
        %v652 = vpop.f32.mrf.mxu0
        %653 = vdwg.mxu0
        %v654 = vsub.f32 0.0, %v512
        %v655 = vsub.f32 0.0, %v515
        %v656 = vsub.f32 0.0, %v520
        %v657 = vsub.f32 0.0, %v523
        %v658 = vsub.f32 0.0, %v528
        %v659 = vsub.f32 0.0, %v531
        %v660 = vsub.f32 0.0, %v536
        %v661 = vsub.f32 0.0, %v539
        %v662 = vsub.f32 0.0, %v544
        %v663 = vsub.f32 0.0, %v547
        %v664 = vsub.f32 0.0, %v552
        %v665 = vsub.f32 0.0, %v555
        %v666 = vsub.f32 0.0, %v560
        %v667 = vsub.f32 0.0, %v563
        %v668 = vsub.f32 0.0, %v568
        %v669 = vsub.f32 0.0, %v571
        %v670 = vsub.f32 0.0, %v576
        %v671 = vsub.f32 0.0, %v579
        %v672 = vsub.f32 0.0, %v584
        %v673 = vsub.f32 0.0, %v587
        %v674 = vsub.f32 0.0, %v592
        %v675 = vsub.f32 0.0, %v595
        %v676 = vsub.f32 0.0, %v600
        %v677 = vsub.f32 0.0, %v603
        %v678 = vsub.f32 0.0, %v608
        %v679 = vsub.f32 0.0, %v611
        %v680 = vsub.f32 0.0, %v616
        %v681 = vsub.f32 0.0, %v619
        %v682 = vsub.f32 0.0, %v624
        %v683 = vsub.f32 0.0, %v627
        %v684 = vsub.f32 0.0, %v632
        %v685 = vsub.f32 0.0, %v635
        %v686 = vsub.f32 0.0, %v640
        %v687 = vsub.f32 0.0, %v643
        %v688 = vsub.f32 0.0, %v648
        %v689 = vsub.f32 0.0, %v651
        %v690 = vmul.f32 %v654, 1.442695
        %v691 = vpow.pop %v690
        %v692 = vmul.f32 %v655, 1.442695
        %v693 = vpow.pop %v692
        %v694 = vmul.f32 %v656, 1.442695
        %v695 = vpow.pop %v694
        %v696 = vmul.f32 %v657, 1.442695
        %v697 = vpow.pop %v696
        %v698 = vmul.f32 %v658, 1.442695
        %v699 = vpow.pop %v698
        %v700 = vmul.f32 %v659, 1.442695
        %v701 = vpow.pop %v700
        %v702 = vmul.f32 %v660, 1.442695
        %v703 = vpow.pop %v702
        %v704 = vmul.f32 %v661, 1.442695
        %v705 = vpow.pop %v704
        %v706 = vmul.f32 %v662, 1.442695
        %v707 = vpow.pop %v706
        %v708 = vmul.f32 %v663, 1.442695
        %v709 = vpow.pop %v708
        %v710 = vmul.f32 %v664, 1.442695
        %v711 = vpow.pop %v710
        %v712 = vmul.f32 %v665, 1.442695
        %v713 = vpow.pop %v712
        %v714 = vmul.f32 %v666, 1.442695
        %v715 = vpow.pop %v714
        %v716 = vmul.f32 %v667, 1.442695
        %v717 = vpow.pop %v716
        %v718 = vmul.f32 %v668, 1.442695
        %v719 = vpow.pop %v718
        %v720 = vmul.f32 %v669, 1.442695
        %v721 = vpow.pop %v720
        %v722 = vmul.f32 %v670, 1.442695
        %v723 = vpow.pop %v722
        %v724 = vmul.f32 %v671, 1.442695
        %v725 = vpow.pop %v724
        %v726 = vmul.f32 %v672, 1.442695
        %v727 = vpow.pop %v726
        %v728 = vmul.f32 %v673, 1.442695
        %v729 = vpow.pop %v728
        %v730 = vmul.f32 %v674, 1.442695
        %v731 = vpow.pop %v730
        %v732 = vmul.f32 %v675, 1.442695
        %v733 = vpow.pop %v732
        %v734 = vmul.f32 %v676, 1.442695
        %v735 = vpow.pop %v734
        %v736 = vmul.f32 %v677, 1.442695
        %v737 = vpow.pop %v736
        %v738 = vmul.f32 %v678, 1.442695
        %v739 = vpow.pop %v738
        %v740 = vmul.f32 %v679, 1.442695
        %v741 = vpow.pop %v740
        %v742 = vmul.f32 %v680, 1.442695
        %v743 = vpow.pop %v742
        %v744 = vmul.f32 %v681, 1.442695
        %v745 = vpow.pop %v744
        %v746 = vmul.f32 %v682, 1.442695
        %v747 = vpow.pop %v746
        %v748 = vmul.f32 %v683, 1.442695
        %v749 = vpow.pop %v748
        %v750 = vmul.f32 %v684, 1.442695
        %v751 = vpow.pop %v750
        %v752 = vmul.f32 %v685, 1.442695
        %v753 = vpow.pop %v752
        %v754 = vmul.f32 %v686, 1.442695
        %v755 = vpow.pop %v754
        %v756 = vmul.f32 %v687, 1.442695
        %v757 = vpow.pop %v756
        %v758 = vmul.f32 %v688, 1.442695
        %v759 = vpow.pop %v758
        %v760 = vmul.f32 %v689, 1.442695
        %v761 = vpow.pop %v760
        %v762 = vadd.f32 %v691, 1.0
        %v763 = vadd.f32 %v693, 1.0
        %v764 = vadd.f32 %v695, 1.0
        %v765 = vadd.f32 %v697, 1.0
        %v766 = vadd.f32 %v699, 1.0
        %v767 = vadd.f32 %v701, 1.0
        %v768 = vadd.f32 %v703, 1.0
        %v769 = vadd.f32 %v705, 1.0
        %v770 = vadd.f32 %v707, 1.0
        %v771 = vadd.f32 %v709, 1.0
        %v772 = vadd.f32 %v711, 1.0
        %v773 = vadd.f32 %v713, 1.0
        %v774 = vadd.f32 %v715, 1.0
        %v775 = vadd.f32 %v717, 1.0
        %v776 = vadd.f32 %v719, 1.0
        %v777 = vadd.f32 %v721, 1.0
        %v778 = vadd.f32 %v723, 1.0
        %v779 = vadd.f32 %v725, 1.0
        %v780 = vadd.f32 %v727, 1.0
        %v781 = vadd.f32 %v729, 1.0
        %v782 = vadd.f32 %v731, 1.0
        %v783 = vadd.f32 %v733, 1.0
        %v784 = vadd.f32 %v735, 1.0
        %v785 = vadd.f32 %v737, 1.0
        %v786 = vadd.f32 %v739, 1.0
        %v787 = vadd.f32 %v741, 1.0
        %v788 = vadd.f32 %v743, 1.0
        %v789 = vadd.f32 %v745, 1.0
        %v790 = vadd.f32 %v747, 1.0
        %v791 = vadd.f32 %v749, 1.0
        %v792 = vadd.f32 %v751, 1.0
        %v793 = vadd.f32 %v753, 1.0
        %v794 = vadd.f32 %v755, 1.0
        %v795 = vadd.f32 %v757, 1.0
        %v796 = vadd.f32 %v759, 1.0
        %v797 = vadd.f32 %v761, 1.0
        %v798 = vrcp.pop %v762
        %v799 = vrcp.pop %v763
        %v800 = vrcp.pop %v764
        %v801 = vrcp.pop %v765
        %v802 = vrcp.pop %v766
        %v803 = vrcp.pop %v767
        %v804 = vrcp.pop %v768
        %v805 = vrcp.pop %v769
        %v806 = vrcp.pop %v770
        %v807 = vrcp.pop %v771
        %v808 = vrcp.pop %v772
        %v809 = vrcp.pop %v773
        %v810 = vrcp.pop %v774
        %v811 = vrcp.pop %v775
        %v812 = vrcp.pop %v776
        %v813 = vrcp.pop %v777
        %v814 = vrcp.pop %v778
        %v815 = vrcp.pop %v779
        %v816 = vrcp.pop %v780
        %v817 = vrcp.pop %v781
        %v818 = vrcp.pop %v782
        %v819 = vrcp.pop %v783
        %v820 = vrcp.pop %v784
        %v821 = vrcp.pop %v785
        %v822 = vrcp.pop %v786
        %v823 = vrcp.pop %v787
        %v824 = vrcp.pop %v788
        %v825 = vrcp.pop %v789
        %v826 = vrcp.pop %v790
        %v827 = vrcp.pop %v791
        %v828 = vrcp.pop %v792
        %v829 = vrcp.pop %v793
        %v830 = vrcp.pop %v794
        %v831 = vrcp.pop %v795
        %v832 = vrcp.pop %v796
        %v833 = vrcp.pop %v797
        %v834 = vmul.f32 %v512, %v798
        %v835 = vmul.f32 %v515, %v799
        %v836 = vmul.f32 %v520, %v800
        %v837 = vmul.f32 %v523, %v801
        %v838 = vmul.f32 %v528, %v802
        %v839 = vmul.f32 %v531, %v803
        %v840 = vmul.f32 %v536, %v804
        %v841 = vmul.f32 %v539, %v805
        %v842 = vmul.f32 %v544, %v806
        %v843 = vmul.f32 %v547, %v807
        %v844 = vmul.f32 %v552, %v808
        %v845 = vmul.f32 %v555, %v809
        %v846 = vmul.f32 %v560, %v810
        %v847 = vmul.f32 %v563, %v811
        %v848 = vmul.f32 %v568, %v812
        %v849 = vmul.f32 %v571, %v813
        %v850 = vmul.f32 %v576, %v814
        %v851 = vmul.f32 %v579, %v815
        %v852 = vmul.f32 %v584, %v816
        %v853 = vmul.f32 %v587, %v817
        %v854 = vmul.f32 %v592, %v818
        %v855 = vmul.f32 %v595, %v819
        %v856 = vmul.f32 %v600, %v820
        %v857 = vmul.f32 %v603, %v821
        %v858 = vmul.f32 %v608, %v822
        %v859 = vmul.f32 %v611, %v823
        %v860 = vmul.f32 %v616, %v824
        %v861 = vmul.f32 %v619, %v825
        %v862 = vmul.f32 %v624, %v826
        %v863 = vmul.f32 %v627, %v827
        %v864 = vmul.f32 %v632, %v828
        %v865 = vmul.f32 %v635, %v829
        %v866 = vmul.f32 %v640, %v830
        %v867 = vmul.f32 %v643, %v831
        %v868 = vmul.f32 %v648, %v832
        %v869 = vmul.f32 %v651, %v833
        %v870 = vld [vmem:[%s0] sm:$0xff]
        %v871 = vld [vmem:[%s0 + $0x8] sm:$0xff]
        %v872 = vld [vmem:[%s0 + $0x10] sm:$0xff]
        %v873 = vld [vmem:[%s0 + $0x18] sm:$0xff]
        %v874 = vld [vmem:[%s0 + $0x20] sm:$0xff]
        %v875 = vld [vmem:[%s0 + $0x28] sm:$0xff]
        %v876 = vld [vmem:[%s0 + $0x30] sm:$0xff]
        %v877 = vld [vmem:[%s0 + $0x38] sm:$0xff]
        %v878 = vld [vmem:[%s0 + $0x40] sm:$0xff]
        %v879 = vld [vmem:[%s0 + $0x48] sm:$0xff]
        %v880 = vld [vmem:[%s0 + $0x50] sm:$0xff]
        %v881 = vld [vmem:[%s0 + $0x58] sm:$0xff]
        %v882 = vld [vmem:[%s0 + $0x60] sm:$0xff]
        %v883 = vld [vmem:[%s0 + $0x68] sm:$0xff]
        %v884 = vld [vmem:[%s0 + $0x70] sm:$0xff]
        %v885 = vld [vmem:[%s0 + $0x78] sm:$0xff]
        %v886 = vld [vmem:[%s0 + $0x80] sm:$0xff]
        %v887 = vld [vmem:[%s0 + $0x88] sm:$0xff]
        %v888 = vld [vmem:[%s0 + $0x90] sm:$0xff]
        %v889 = vld [vmem:[%s0 + $0x98] sm:$0xff]
        %v890 = vld [vmem:[%s0 + $0xa0] sm:$0xff]
        %v891 = vld [vmem:[%s0 + $0xa8] sm:$0xff]
        %v892 = vld [vmem:[%s0 + $0xb0] sm:$0xff]
        %v893 = vld [vmem:[%s0 + $0xb8] sm:$0xff]
        %v894 = vld [vmem:[%s0 + $0xc0] sm:$0xff]
        %v895 = vld [vmem:[%s0 + $0xc8] sm:$0xff]
        %v896 = vld [vmem:[%s0 + $0xd0] sm:$0xff]
        %v897 = vld [vmem:[%s0 + $0xd8] sm:$0xff]
        %v898 = vld [vmem:[%s0 + $0xe0] sm:$0xff]
        %v899 = vld [vmem:[%s0 + $0xe8] sm:$0xff]
        %v900 = vld [vmem:[%s0 + $0xf0] sm:$0xff]
        %v901 = vld [vmem:[%s0 + $0xf8] sm:$0xff]
        %v902 = vld [vmem:[%s0 + $0x100] sm:$0xff]
        %v903 = vld [vmem:[%s0 + $0x108] sm:$0xff]
        %v904 = vld [vmem:[%s0 + $0x110] sm:$0xff]
        %v905 = vld [vmem:[%s0 + $0x118] sm:$0xff]
        %907 = vset.pattern.permute.xlu0 0
        %908 = vperm.xlu0 %907, %v870
        %v909 = vpop.permute.xlu0 %908
        %912 = vset.pattern.permute.xlu0 0
        %913 = vperm.xlu0 %912, %v871
        %v914 = vpop.permute.xlu0 %913
        %917 = vset.pattern.permute.xlu0 0
        %918 = vperm.xlu0 %917, %v872
        %v919 = vpop.permute.xlu0 %918
        %922 = vset.pattern.permute.xlu0 0
        %923 = vperm.xlu0 %922, %v873
        %v924 = vpop.permute.xlu0 %923
        %927 = vset.pattern.permute.xlu0 0
        %928 = vperm.xlu0 %927, %v874
        %v929 = vpop.permute.xlu0 %928
        %932 = vset.pattern.permute.xlu0 0
        %933 = vperm.xlu0 %932, %v875
        %v934 = vpop.permute.xlu0 %933
        %937 = vset.pattern.permute.xlu0 0
        %938 = vperm.xlu0 %937, %v876
        %v939 = vpop.permute.xlu0 %938
        %942 = vset.pattern.permute.xlu0 0
        %943 = vperm.xlu0 %942, %v877
        %v944 = vpop.permute.xlu0 %943
        %947 = vset.pattern.permute.xlu0 0
        %948 = vperm.xlu0 %947, %v878
        %v949 = vpop.permute.xlu0 %948
        %952 = vset.pattern.permute.xlu0 0
        %953 = vperm.xlu0 %952, %v879
        %v954 = vpop.permute.xlu0 %953
        %957 = vset.pattern.permute.xlu0 0
        %958 = vperm.xlu0 %957, %v880
        %v959 = vpop.permute.xlu0 %958
        %962 = vset.pattern.permute.xlu0 0
        %963 = vperm.xlu0 %962, %v881
        %v964 = vpop.permute.xlu0 %963
        %967 = vset.pattern.permute.xlu0 0
        %968 = vperm.xlu0 %967, %v882
        %v969 = vpop.permute.xlu0 %968
        %972 = vset.pattern.permute.xlu0 0
        %973 = vperm.xlu0 %972, %v883
        %v974 = vpop.permute.xlu0 %973
        %977 = vset.pattern.permute.xlu0 0
        %978 = vperm.xlu0 %977, %v884
        %v979 = vpop.permute.xlu0 %978
        %982 = vset.pattern.permute.xlu0 0
        %983 = vperm.xlu0 %982, %v885
        %v984 = vpop.permute.xlu0 %983
        %987 = vset.pattern.permute.xlu0 0
        %988 = vperm.xlu0 %987, %v886
        %v989 = vpop.permute.xlu0 %988
        %992 = vset.pattern.permute.xlu0 0
        %993 = vperm.xlu0 %992, %v887
        %v994 = vpop.permute.xlu0 %993
        %997 = vset.pattern.permute.xlu0 0
        %998 = vperm.xlu0 %997, %v888
        %v999 = vpop.permute.xlu0 %998
        %1002 = vset.pattern.permute.xlu0 0
        %1003 = vperm.xlu0 %1002, %v889
        %v1004 = vpop.permute.xlu0 %1003
        %1007 = vset.pattern.permute.xlu0 0
        %1008 = vperm.xlu0 %1007, %v890
        %v1009 = vpop.permute.xlu0 %1008
        %1012 = vset.pattern.permute.xlu0 0
        %1013 = vperm.xlu0 %1012, %v891
        %v1014 = vpop.permute.xlu0 %1013
        %1017 = vset.pattern.permute.xlu0 0
        %1018 = vperm.xlu0 %1017, %v892
        %v1019 = vpop.permute.xlu0 %1018
        %1022 = vset.pattern.permute.xlu0 0
        %1023 = vperm.xlu0 %1022, %v893
        %v1024 = vpop.permute.xlu0 %1023
        %1027 = vset.pattern.permute.xlu0 0
        %1028 = vperm.xlu0 %1027, %v894
        %v1029 = vpop.permute.xlu0 %1028
        %1032 = vset.pattern.permute.xlu0 0
        %1033 = vperm.xlu0 %1032, %v895
        %v1034 = vpop.permute.xlu0 %1033
        %1037 = vset.pattern.permute.xlu0 0
        %1038 = vperm.xlu0 %1037, %v896
        %v1039 = vpop.permute.xlu0 %1038
        %1042 = vset.pattern.permute.xlu0 0
        %1043 = vperm.xlu0 %1042, %v897
        %v1044 = vpop.permute.xlu0 %1043
        %1047 = vset.pattern.permute.xlu0 0
        %1048 = vperm.xlu0 %1047, %v898
        %v1049 = vpop.permute.xlu0 %1048
        %1052 = vset.pattern.permute.xlu0 0
        %1053 = vperm.xlu0 %1052, %v899
        %v1054 = vpop.permute.xlu0 %1053
        %1057 = vset.pattern.permute.xlu0 0
        %1058 = vperm.xlu0 %1057, %v900
        %v1059 = vpop.permute.xlu0 %1058
        %1062 = vset.pattern.permute.xlu0 0
        %1063 = vperm.xlu0 %1062, %v901
        %v1064 = vpop.permute.xlu0 %1063
        %1067 = vset.pattern.permute.xlu0 0
        %1068 = vperm.xlu0 %1067, %v902
        %v1069 = vpop.permute.xlu0 %1068
        %1072 = vset.pattern.permute.xlu0 0
        %1073 = vperm.xlu0 %1072, %v903
        %v1074 = vpop.permute.xlu0 %1073
        %1077 = vset.pattern.permute.xlu0 0
        %1078 = vperm.xlu0 %1077, %v904
        %v1079 = vpop.permute.xlu0 %1078
        %1082 = vset.pattern.permute.xlu0 0
        %1083 = vperm.xlu0 %1082, %v905
        %v1084 = vpop.permute.xlu0 %1083
        %v1086 = vmul.f32 %v834, %v909
        %v1087 = vmul.f32 %v835, %v914
        %v1088 = vmul.f32 %v836, %v919
        %v1089 = vmul.f32 %v837, %v924
        %v1090 = vmul.f32 %v838, %v929
        %v1091 = vmul.f32 %v839, %v934
        %v1092 = vmul.f32 %v840, %v939
        %v1093 = vmul.f32 %v841, %v944
        %v1094 = vmul.f32 %v842, %v949
        %v1095 = vmul.f32 %v843, %v954
        %v1096 = vmul.f32 %v844, %v959
        %v1097 = vmul.f32 %v845, %v964
        %v1098 = vmul.f32 %v846, %v969
        %v1099 = vmul.f32 %v847, %v974
        %v1100 = vmul.f32 %v848, %v979
        %v1101 = vmul.f32 %v849, %v984
        %v1102 = vmul.f32 %v850, %v989
        %v1103 = vmul.f32 %v851, %v994
        %v1104 = vmul.f32 %v852, %v999
        %v1105 = vmul.f32 %v853, %v1004
        %v1106 = vmul.f32 %v854, %v1009
        %v1107 = vmul.f32 %v855, %v1014
        %v1108 = vmul.f32 %v856, %v1019
        %v1109 = vmul.f32 %v857, %v1024
        %v1110 = vmul.f32 %v858, %v1029
        %v1111 = vmul.f32 %v859, %v1034
        %v1112 = vmul.f32 %v860, %v1039
        %v1113 = vmul.f32 %v861, %v1044
        %v1114 = vmul.f32 %v862, %v1049
        %v1115 = vmul.f32 %v863, %v1054
        %v1116 = vmul.f32 %v864, %v1059
        %v1117 = vmul.f32 %v865, %v1064
        %v1118 = vmul.f32 %v866, %v1069
        %v1119 = vmul.f32 %v867, %v1074
        %v1120 = vmul.f32 %v868, %v1079
        %v1121 = vmul.f32 %v869, %v1084
        %vm1122 = vcmask 261120
        %1123 = vst.msk [vmem:[#allocation2] sm:$0xff] %vm1122, 0.0
        %1124 = vst.msk [vmem:[#allocation2 + $0x8] sm:$0xff] %vm1122, 0.0
        %1125 = vst.msk [vmem:[#allocation2 + $0x10] sm:$0xff] %vm1122, 0.0
        %1126 = vst.msk [vmem:[#allocation2 + $0x138] sm:$0xff] %vm1122, 0.0
        %1127 = vst.msk [vmem:[#allocation2 + $0x140] sm:$0xff] %vm1122, 0.0
        %1128 = vst.msk [vmem:[#allocation2 + $0x148] sm:$0xff] %vm1122, 0.0
        %1129 = vst.msk [vmem:[#allocation2 + $0x18] sm:$0xff] %vm1122, %v1086
        %1130 = vst.msk [vmem:[#allocation2 + $0x20] sm:$0xff] %vm1122, %v1087
        %1131 = vst.msk [vmem:[#allocation2 + $0x28] sm:$0xff] %vm1122, %v1088
        %1132 = vst.msk [vmem:[#allocation2 + $0x30] sm:$0xff] %vm1122, %v1089
        %1133 = vst.msk [vmem:[#allocation2 + $0x38] sm:$0xff] %vm1122, %v1090
        %1134 = vst.msk [vmem:[#allocation2 + $0x40] sm:$0xff] %vm1122, %v1091
        %1135 = vst.msk [vmem:[#allocation2 + $0x48] sm:$0xff] %vm1122, %v1092
        %1136 = vst.msk [vmem:[#allocation2 + $0x50] sm:$0xff] %vm1122, %v1093
        %1137 = vst.msk [vmem:[#allocation2 + $0x58] sm:$0xff] %vm1122, %v1094
        %1138 = vst.msk [vmem:[#allocation2 + $0x60] sm:$0xff] %vm1122, %v1095
        %1139 = vst.msk [vmem:[#allocation2 + $0x68] sm:$0xff] %vm1122, %v1096
        %1140 = vst.msk [vmem:[#allocation2 + $0x70] sm:$0xff] %vm1122, %v1097
        %1141 = vst.msk [vmem:[#allocation2 + $0x78] sm:$0xff] %vm1122, %v1098
        %1142 = vst.msk [vmem:[#allocation2 + $0x80] sm:$0xff] %vm1122, %v1099
        %1143 = vst.msk [vmem:[#allocation2 + $0x88] sm:$0xff] %vm1122, %v1100
        %1144 = vst.msk [vmem:[#allocation2 + $0x90] sm:$0xff] %vm1122, %v1101
        %1145 = vst.msk [vmem:[#allocation2 + $0x98] sm:$0xff] %vm1122, %v1102
        %1146 = vst.msk [vmem:[#allocation2 + $0xa0] sm:$0xff] %vm1122, %v1103
        %1147 = vst.msk [vmem:[#allocation2 + $0xa8] sm:$0xff] %vm1122, %v1104
        %1148 = vst.msk [vmem:[#allocation2 + $0xb0] sm:$0xff] %vm1122, %v1105
        %1149 = vst.msk [vmem:[#allocation2 + $0xb8] sm:$0xff] %vm1122, %v1106
        %1150 = vst.msk [vmem:[#allocation2 + $0xc0] sm:$0xff] %vm1122, %v1107
        %1151 = vst.msk [vmem:[#allocation2 + $0xc8] sm:$0xff] %vm1122, %v1108
        %1152 = vst.msk [vmem:[#allocation2 + $0xd0] sm:$0xff] %vm1122, %v1109
        %1153 = vst.msk [vmem:[#allocation2 + $0xd8] sm:$0xff] %vm1122, %v1110
        %1154 = vst.msk [vmem:[#allocation2 + $0xe0] sm:$0xff] %vm1122, %v1111
        %1155 = vst.msk [vmem:[#allocation2 + $0xe8] sm:$0xff] %vm1122, %v1112
        %1156 = vst.msk [vmem:[#allocation2 + $0xf0] sm:$0xff] %vm1122, %v1113
        %1157 = vst.msk [vmem:[#allocation2 + $0xf8] sm:$0xff] %vm1122, %v1114
        %1158 = vst.msk [vmem:[#allocation2 + $0x100] sm:$0xff] %vm1122, %v1115
        %1159 = vst.msk [vmem:[#allocation2 + $0x108] sm:$0xff] %vm1122, %v1116
        %1160 = vst.msk [vmem:[#allocation2 + $0x110] sm:$0xff] %vm1122, %v1117
        %1161 = vst.msk [vmem:[#allocation2 + $0x118] sm:$0xff] %vm1122, %v1118
        %1162 = vst.msk [vmem:[#allocation2 + $0x120] sm:$0xff] %vm1122, %v1119
        %1163 = vst.msk [vmem:[#allocation2 + $0x128] sm:$0xff] %vm1122, %v1120
        %1164 = vst.msk [vmem:[#allocation2 + $0x130] sm:$0xff] %vm1122, %v1121
        %v1165 = vld [vmem:[#allocation2 + $0x5] sm:$0xff]
        %v1166 = vld [vmem:[#allocation2 + $0xd] sm:$0xff]
        %v1167 = vld [vmem:[#allocation2 + $0x15] sm:$0xff]
        %v1168 = vld [vmem:[#allocation2 + $0x1d] sm:$0xff]
        %v1169 = vld [vmem:[#allocation2 + $0x25] sm:$0xff]
        %v1170 = vld [vmem:[#allocation2 + $0x2d] sm:$0xff]
        %v1171 = vld [vmem:[#allocation2 + $0x35] sm:$0xff]
        %v1172 = vld [vmem:[#allocation2 + $0x3d] sm:$0xff]
        %v1173 = vld [vmem:[#allocation2 + $0x45] sm:$0xff]
        %v1174 = vld [vmem:[#allocation2 + $0x4d] sm:$0xff]
        %v1175 = vld [vmem:[#allocation2 + $0x55] sm:$0xff]
        %v1176 = vld [vmem:[#allocation2 + $0x5d] sm:$0xff]
        %v1177 = vld [vmem:[#allocation2 + $0x65] sm:$0xff]
        %v1178 = vld [vmem:[#allocation2 + $0x6d] sm:$0xff]
        %v1179 = vld [vmem:[#allocation2 + $0x75] sm:$0xff]
        %v1180 = vld [vmem:[#allocation2 + $0x7d] sm:$0xff]
        %v1181 = vld [vmem:[#allocation2 + $0x85] sm:$0xff]
        %v1182 = vld [vmem:[#allocation2 + $0x8d] sm:$0xff]
        %v1183 = vld [vmem:[#allocation2 + $0x95] sm:$0xff]
        %v1184 = vld [vmem:[#allocation2 + $0x9d] sm:$0xff]
        %v1185 = vld [vmem:[#allocation2 + $0xa5] sm:$0xff]
        %v1186 = vld [vmem:[#allocation2 + $0xad] sm:$0xff]
        %v1187 = vld [vmem:[#allocation2 + $0xb5] sm:$0xff]
        %v1188 = vld [vmem:[#allocation2 + $0xbd] sm:$0xff]
        %v1189 = vld [vmem:[#allocation2 + $0xc5] sm:$0xff]
        %v1190 = vld [vmem:[#allocation2 + $0xcd] sm:$0xff]
        %v1191 = vld [vmem:[#allocation2 + $0xd5] sm:$0xff]
        %v1192 = vld [vmem:[#allocation2 + $0xdd] sm:$0xff]
        %v1193 = vld [vmem:[#allocation2 + $0xe5] sm:$0xff]
        %v1194 = vld [vmem:[#allocation2 + $0xed] sm:$0xff]
        %v1195 = vld [vmem:[#allocation2 + $0xf5] sm:$0xff]
        %v1196 = vld [vmem:[#allocation2 + $0xfd] sm:$0xff]
        %v1197 = vld [vmem:[#allocation2 + $0x105] sm:$0xff]
        %v1198 = vld [vmem:[#allocation2 + $0x10d] sm:$0xff]
        %v1199 = vld [vmem:[#allocation2 + $0x115] sm:$0xff]
        %v1200 = vld [vmem:[#allocation2 + $0x11d] sm:$0xff]
        %v1201 = vld [vmem:[#allocation2 + $0x6] sm:$0xff]
        %v1202 = vld [vmem:[#allocation2 + $0xe] sm:$0xff]
        %v1203 = vld [vmem:[#allocation2 + $0x16] sm:$0xff]
        %v1204 = vld [vmem:[#allocation2 + $0x1e] sm:$0xff]
        %v1205 = vld [vmem:[#allocation2 + $0x26] sm:$0xff]
        %v1206 = vld [vmem:[#allocation2 + $0x2e] sm:$0xff]
        %v1207 = vld [vmem:[#allocation2 + $0x36] sm:$0xff]
        %v1208 = vld [vmem:[#allocation2 + $0x3e] sm:$0xff]
        %v1209 = vld [vmem:[#allocation2 + $0x46] sm:$0xff]
        %v1210 = vld [vmem:[#allocation2 + $0x4e] sm:$0xff]
        %v1211 = vld [vmem:[#allocation2 + $0x56] sm:$0xff]
        %v1212 = vld [vmem:[#allocation2 + $0x5e] sm:$0xff]
        %v1213 = vld [vmem:[#allocation2 + $0x66] sm:$0xff]
        %v1214 = vld [vmem:[#allocation2 + $0x6e] sm:$0xff]
        %v1215 = vld [vmem:[#allocation2 + $0x76] sm:$0xff]
        %v1216 = vld [vmem:[#allocation2 + $0x7e] sm:$0xff]
        %v1217 = vld [vmem:[#allocation2 + $0x86] sm:$0xff]
        %v1218 = vld [vmem:[#allocation2 + $0x8e] sm:$0xff]
        %v1219 = vld [vmem:[#allocation2 + $0x96] sm:$0xff]
        %v1220 = vld [vmem:[#allocation2 + $0x9e] sm:$0xff]
        %v1221 = vld [vmem:[#allocation2 + $0xa6] sm:$0xff]
        %v1222 = vld [vmem:[#allocation2 + $0xae] sm:$0xff]
        %v1223 = vld [vmem:[#allocation2 + $0xb6] sm:$0xff]
        %v1224 = vld [vmem:[#allocation2 + $0xbe] sm:$0xff]
        %v1225 = vld [vmem:[#allocation2 + $0xc6] sm:$0xff]
        %v1226 = vld [vmem:[#allocation2 + $0xce] sm:$0xff]
        %v1227 = vld [vmem:[#allocation2 + $0xd6] sm:$0xff]
        %v1228 = vld [vmem:[#allocation2 + $0xde] sm:$0xff]
        %v1229 = vld [vmem:[#allocation2 + $0xe6] sm:$0xff]
        %v1230 = vld [vmem:[#allocation2 + $0xee] sm:$0xff]
        %v1231 = vld [vmem:[#allocation2 + $0xf6] sm:$0xff]
        %v1232 = vld [vmem:[#allocation2 + $0xfe] sm:$0xff]
        %v1233 = vld [vmem:[#allocation2 + $0x106] sm:$0xff]
        %v1234 = vld [vmem:[#allocation2 + $0x10e] sm:$0xff]
        %v1235 = vld [vmem:[#allocation2 + $0x116] sm:$0xff]
        %v1236 = vld [vmem:[#allocation2 + $0x11e] sm:$0xff]
        %v1237 = vld [vmem:[#allocation2 + $0x7] sm:$0xff]
        %v1238 = vld [vmem:[#allocation2 + $0xf] sm:$0xff]
        %v1239 = vld [vmem:[#allocation2 + $0x17] sm:$0xff]
        %v1240 = vld [vmem:[#allocation2 + $0x1f] sm:$0xff]
        %v1241 = vld [vmem:[#allocation2 + $0x27] sm:$0xff]
        %v1242 = vld [vmem:[#allocation2 + $0x2f] sm:$0xff]
        %v1243 = vld [vmem:[#allocation2 + $0x37] sm:$0xff]
        %v1244 = vld [vmem:[#allocation2 + $0x3f] sm:$0xff]
        %v1245 = vld [vmem:[#allocation2 + $0x47] sm:$0xff]
        %v1246 = vld [vmem:[#allocation2 + $0x4f] sm:$0xff]
        %v1247 = vld [vmem:[#allocation2 + $0x57] sm:$0xff]
        %v1248 = vld [vmem:[#allocation2 + $0x5f] sm:$0xff]
        %v1249 = vld [vmem:[#allocation2 + $0x67] sm:$0xff]
        %v1250 = vld [vmem:[#allocation2 + $0x6f] sm:$0xff]
        %v1251 = vld [vmem:[#allocation2 + $0x77] sm:$0xff]
        %v1252 = vld [vmem:[#allocation2 + $0x7f] sm:$0xff]
        %v1253 = vld [vmem:[#allocation2 + $0x87] sm:$0xff]
        %v1254 = vld [vmem:[#allocation2 + $0x8f] sm:$0xff]
        %v1255 = vld [vmem:[#allocation2 + $0x97] sm:$0xff]
        %v1256 = vld [vmem:[#allocation2 + $0x9f] sm:$0xff]
        %v1257 = vld [vmem:[#allocation2 + $0xa7] sm:$0xff]
        %v1258 = vld [vmem:[#allocation2 + $0xaf] sm:$0xff]
        %v1259 = vld [vmem:[#allocation2 + $0xb7] sm:$0xff]
        %v1260 = vld [vmem:[#allocation2 + $0xbf] sm:$0xff]
        %v1261 = vld [vmem:[#allocation2 + $0xc7] sm:$0xff]
        %v1262 = vld [vmem:[#allocation2 + $0xcf] sm:$0xff]
        %v1263 = vld [vmem:[#allocation2 + $0xd7] sm:$0xff]
        %v1264 = vld [vmem:[#allocation2 + $0xdf] sm:$0xff]
        %v1265 = vld [vmem:[#allocation2 + $0xe7] sm:$0xff]
        %v1266 = vld [vmem:[#allocation2 + $0xef] sm:$0xff]
        %v1267 = vld [vmem:[#allocation2 + $0xf7] sm:$0xff]
        %v1268 = vld [vmem:[#allocation2 + $0xff] sm:$0xff]
        %v1269 = vld [vmem:[#allocation2 + $0x107] sm:$0xff]
        %v1270 = vld [vmem:[#allocation2 + $0x10f] sm:$0xff]
        %v1271 = vld [vmem:[#allocation2 + $0x117] sm:$0xff]
        %v1272 = vld [vmem:[#allocation2 + $0x11f] sm:$0xff]
        %v1273 = vld [vmem:[#allocation2 + $0x127] sm:$0xff]
        %v1274 = vld [vmem:[#allocation2 + $0x12f] sm:$0xff]
        %1311 = vrot.lane.b32.xlu0 %v1201, 32
        %v1312 = vpop.permute.xlu0 %1311
        %1313 = vrot.lane.b32.xlu0 %v1202, 32
        %v1314 = vpop.permute.xlu0 %1313
        %1315 = vrot.lane.b32.xlu0 %v1203, 32
        %v1316 = vpop.permute.xlu0 %1315
        %1317 = vrot.lane.b32.xlu0 %v1204, 32
        %v1318 = vpop.permute.xlu0 %1317
        %1319 = vrot.lane.b32.xlu0 %v1205, 32
        %v1320 = vpop.permute.xlu0 %1319
        %1321 = vrot.lane.b32.xlu0 %v1206, 32
        %v1322 = vpop.permute.xlu0 %1321
        %1323 = vrot.lane.b32.xlu0 %v1207, 32
        %v1324 = vpop.permute.xlu0 %1323
        %1325 = vrot.lane.b32.xlu0 %v1208, 32
        %v1326 = vpop.permute.xlu0 %1325
        %1327 = vrot.lane.b32.xlu0 %v1209, 32
        %v1328 = vpop.permute.xlu0 %1327
        %1329 = vrot.lane.b32.xlu0 %v1210, 32
        %v1330 = vpop.permute.xlu0 %1329
        %1331 = vrot.lane.b32.xlu0 %v1211, 32
        %v1332 = vpop.permute.xlu0 %1331
        %1333 = vrot.lane.b32.xlu0 %v1212, 32
        %v1334 = vpop.permute.xlu0 %1333
        %1335 = vrot.lane.b32.xlu0 %v1213, 32
        %v1336 = vpop.permute.xlu0 %1335
        %1337 = vrot.lane.b32.xlu0 %v1214, 32
        %v1338 = vpop.permute.xlu0 %1337
        %1339 = vrot.lane.b32.xlu0 %v1215, 32
        %v1340 = vpop.permute.xlu0 %1339
        %1341 = vrot.lane.b32.xlu0 %v1216, 32
        %v1342 = vpop.permute.xlu0 %1341
        %1343 = vrot.lane.b32.xlu0 %v1217, 32
        %v1344 = vpop.permute.xlu0 %1343
        %1345 = vrot.lane.b32.xlu0 %v1218, 32
        %v1346 = vpop.permute.xlu0 %1345
        %1347 = vrot.lane.b32.xlu0 %v1219, 32
        %v1348 = vpop.permute.xlu0 %1347
        %1349 = vrot.lane.b32.xlu0 %v1220, 32
        %v1350 = vpop.permute.xlu0 %1349
        %1351 = vrot.lane.b32.xlu0 %v1221, 32
        %v1352 = vpop.permute.xlu0 %1351
        %1353 = vrot.lane.b32.xlu0 %v1222, 32
        %v1354 = vpop.permute.xlu0 %1353
        %1355 = vrot.lane.b32.xlu0 %v1223, 32
        %v1356 = vpop.permute.xlu0 %1355
        %1357 = vrot.lane.b32.xlu0 %v1224, 32
        %v1358 = vpop.permute.xlu0 %1357
        %1359 = vrot.lane.b32.xlu0 %v1225, 32
        %v1360 = vpop.permute.xlu0 %1359
        %1361 = vrot.lane.b32.xlu0 %v1226, 32
        %v1362 = vpop.permute.xlu0 %1361
        %1363 = vrot.lane.b32.xlu0 %v1227, 32
        %v1364 = vpop.permute.xlu0 %1363
        %1365 = vrot.lane.b32.xlu0 %v1228, 32
        %v1366 = vpop.permute.xlu0 %1365
        %1367 = vrot.lane.b32.xlu0 %v1229, 32
        %v1368 = vpop.permute.xlu0 %1367
        %1369 = vrot.lane.b32.xlu0 %v1230, 32
        %v1370 = vpop.permute.xlu0 %1369
        %1371 = vrot.lane.b32.xlu0 %v1231, 32
        %v1372 = vpop.permute.xlu0 %1371
        %1373 = vrot.lane.b32.xlu0 %v1232, 32
        %v1374 = vpop.permute.xlu0 %1373
        %1375 = vrot.lane.b32.xlu0 %v1233, 32
        %v1376 = vpop.permute.xlu0 %1375
        %1377 = vrot.lane.b32.xlu0 %v1234, 32
        %v1378 = vpop.permute.xlu0 %1377
        %1379 = vrot.lane.b32.xlu0 %v1235, 32
        %v1380 = vpop.permute.xlu0 %1379
        %1381 = vrot.lane.b32.xlu0 %v1236, 32
        %v1382 = vpop.permute.xlu0 %1381
        %1455 = vrot.lane.b32.xlu0 %v1237, 64
        %v1456 = vpop.permute.xlu0 %1455
        %1457 = vrot.lane.b32.xlu0 %v1238, 64
        %v1458 = vpop.permute.xlu0 %1457
        %1459 = vrot.lane.b32.xlu0 %v1239, 64
        %v1460 = vpop.permute.xlu0 %1459
        %1461 = vrot.lane.b32.xlu0 %v1240, 64
        %v1462 = vpop.permute.xlu0 %1461
        %1463 = vrot.lane.b32.xlu0 %v1241, 64
        %v1464 = vpop.permute.xlu0 %1463
        %1465 = vrot.lane.b32.xlu0 %v1242, 64
        %v1466 = vpop.permute.xlu0 %1465
        %1467 = vrot.lane.b32.xlu0 %v1243, 64
        %v1468 = vpop.permute.xlu0 %1467
        %1469 = vrot.lane.b32.xlu0 %v1244, 64
        %v1470 = vpop.permute.xlu0 %1469
        %1471 = vrot.lane.b32.xlu0 %v1245, 64
        %v1472 = vpop.permute.xlu0 %1471
        %1473 = vrot.lane.b32.xlu0 %v1246, 64
        %v1474 = vpop.permute.xlu0 %1473
        %1475 = vrot.lane.b32.xlu0 %v1247, 64
        %v1476 = vpop.permute.xlu0 %1475
        %1477 = vrot.lane.b32.xlu0 %v1248, 64
        %v1478 = vpop.permute.xlu0 %1477
        %1479 = vrot.lane.b32.xlu0 %v1249, 64
        %v1480 = vpop.permute.xlu0 %1479
        %1481 = vrot.lane.b32.xlu0 %v1250, 64
        %v1482 = vpop.permute.xlu0 %1481
        %1483 = vrot.lane.b32.xlu0 %v1251, 64
        %v1484 = vpop.permute.xlu0 %1483
        %1485 = vrot.lane.b32.xlu0 %v1252, 64
        %v1486 = vpop.permute.xlu0 %1485
        %1487 = vrot.lane.b32.xlu0 %v1253, 64
        %v1488 = vpop.permute.xlu0 %1487
        %1489 = vrot.lane.b32.xlu0 %v1254, 64
        %v1490 = vpop.permute.xlu0 %1489
        %1491 = vrot.lane.b32.xlu0 %v1255, 64
        %v1492 = vpop.permute.xlu0 %1491
        %1493 = vrot.lane.b32.xlu0 %v1256, 64
        %v1494 = vpop.permute.xlu0 %1493
        %1495 = vrot.lane.b32.xlu0 %v1257, 64
        %v1496 = vpop.permute.xlu0 %1495
        %1497 = vrot.lane.b32.xlu0 %v1258, 64
        %v1498 = vpop.permute.xlu0 %1497
        %1499 = vrot.lane.b32.xlu0 %v1259, 64
        %v1500 = vpop.permute.xlu0 %1499
        %1501 = vrot.lane.b32.xlu0 %v1260, 64
        %v1502 = vpop.permute.xlu0 %1501
        %1503 = vrot.lane.b32.xlu0 %v1261, 64
        %v1504 = vpop.permute.xlu0 %1503
        %1505 = vrot.lane.b32.xlu0 %v1262, 64
        %v1506 = vpop.permute.xlu0 %1505
        %1507 = vrot.lane.b32.xlu0 %v1263, 64
        %v1508 = vpop.permute.xlu0 %1507
        %1509 = vrot.lane.b32.xlu0 %v1264, 64
        %v1510 = vpop.permute.xlu0 %1509
        %1511 = vrot.lane.b32.xlu0 %v1265, 64
        %v1512 = vpop.permute.xlu0 %1511
        %1513 = vrot.lane.b32.xlu0 %v1266, 64
        %v1514 = vpop.permute.xlu0 %1513
        %1515 = vrot.lane.b32.xlu0 %v1267, 64
        %v1516 = vpop.permute.xlu0 %1515
        %1517 = vrot.lane.b32.xlu0 %v1268, 64
        %v1518 = vpop.permute.xlu0 %1517
        %1519 = vrot.lane.b32.xlu0 %v1269, 64
        %v1520 = vpop.permute.xlu0 %1519
        %1521 = vrot.lane.b32.xlu0 %v1270, 64
        %v1522 = vpop.permute.xlu0 %1521
        %1523 = vrot.lane.b32.xlu0 %v1271, 64
        %v1524 = vpop.permute.xlu0 %1523
        %1525 = vrot.lane.b32.xlu0 %v1272, 64
        %v1526 = vpop.permute.xlu0 %1525
        %1565 = vrot.lane.b32.xlu0 %v1239, 96
        %v1566 = vpop.permute.xlu0 %1565
        %1567 = vrot.lane.b32.xlu0 %v1240, 96
        %v1568 = vpop.permute.xlu0 %1567
        %1569 = vrot.lane.b32.xlu0 %v1241, 96
        %v1570 = vpop.permute.xlu0 %1569
        %1571 = vrot.lane.b32.xlu0 %v1242, 96
        %v1572 = vpop.permute.xlu0 %1571
        %1573 = vrot.lane.b32.xlu0 %v1243, 96
        %v1574 = vpop.permute.xlu0 %1573
        %1575 = vrot.lane.b32.xlu0 %v1244, 96
        %v1576 = vpop.permute.xlu0 %1575
        %1577 = vrot.lane.b32.xlu0 %v1245, 96
        %v1578 = vpop.permute.xlu0 %1577
        %1579 = vrot.lane.b32.xlu0 %v1246, 96
        %v1580 = vpop.permute.xlu0 %1579
        %1581 = vrot.lane.b32.xlu0 %v1247, 96
        %v1582 = vpop.permute.xlu0 %1581
        %1583 = vrot.lane.b32.xlu0 %v1248, 96
        %v1584 = vpop.permute.xlu0 %1583
        %1585 = vrot.lane.b32.xlu0 %v1249, 96
        %v1586 = vpop.permute.xlu0 %1585
        %1587 = vrot.lane.b32.xlu0 %v1250, 96
        %v1588 = vpop.permute.xlu0 %1587
        %1589 = vrot.lane.b32.xlu0 %v1251, 96
        %v1590 = vpop.permute.xlu0 %1589
        %1591 = vrot.lane.b32.xlu0 %v1252, 96
        %v1592 = vpop.permute.xlu0 %1591
        %1593 = vrot.lane.b32.xlu0 %v1253, 96
        %v1594 = vpop.permute.xlu0 %1593
        %1595 = vrot.lane.b32.xlu0 %v1254, 96
        %v1596 = vpop.permute.xlu0 %1595
        %1597 = vrot.lane.b32.xlu0 %v1255, 96
        %v1598 = vpop.permute.xlu0 %1597
        %1599 = vrot.lane.b32.xlu0 %v1256, 96
        %v1600 = vpop.permute.xlu0 %1599
        %1601 = vrot.lane.b32.xlu0 %v1257, 96
        %v1602 = vpop.permute.xlu0 %1601
        %1603 = vrot.lane.b32.xlu0 %v1258, 96
        %v1604 = vpop.permute.xlu0 %1603
        %1605 = vrot.lane.b32.xlu0 %v1259, 96
        %v1606 = vpop.permute.xlu0 %1605
        %1607 = vrot.lane.b32.xlu0 %v1260, 96
        %v1608 = vpop.permute.xlu0 %1607
        %1609 = vrot.lane.b32.xlu0 %v1261, 96
        %v1610 = vpop.permute.xlu0 %1609
        %1611 = vrot.lane.b32.xlu0 %v1262, 96
        %v1612 = vpop.permute.xlu0 %1611
        %1613 = vrot.lane.b32.xlu0 %v1263, 96
        %v1614 = vpop.permute.xlu0 %1613
        %1615 = vrot.lane.b32.xlu0 %v1264, 96
        %v1616 = vpop.permute.xlu0 %1615
        %1617 = vrot.lane.b32.xlu0 %v1265, 96
        %v1618 = vpop.permute.xlu0 %1617
        %1619 = vrot.lane.b32.xlu0 %v1266, 96
        %v1620 = vpop.permute.xlu0 %1619
        %1621 = vrot.lane.b32.xlu0 %v1267, 96
        %v1622 = vpop.permute.xlu0 %1621
        %1623 = vrot.lane.b32.xlu0 %v1268, 96
        %v1624 = vpop.permute.xlu0 %1623
        %1625 = vrot.lane.b32.xlu0 %v1269, 96
        %v1626 = vpop.permute.xlu0 %1625
        %1627 = vrot.lane.b32.xlu0 %v1270, 96
        %v1628 = vpop.permute.xlu0 %1627
        %1629 = vrot.lane.b32.xlu0 %v1271, 96
        %v1630 = vpop.permute.xlu0 %1629
        %1631 = vrot.lane.b32.xlu0 %v1272, 96
        %v1632 = vpop.permute.xlu0 %1631
        %1633 = vrot.lane.b32.xlu0 %v1273, 96
        %v1634 = vpop.permute.xlu0 %1633
        %1635 = vrot.lane.b32.xlu0 %v1274, 96
        %v1636 = vpop.permute.xlu0 %1635
        %v1673 = vsel %vm1122, %v1165, %v1312
        %v1674 = vsel %vm1122, %v1166, %v1314
        %v1675 = vsel %vm1122, %v1167, %v1316
        %v1676 = vsel %vm1122, %v1168, %v1318
        %v1677 = vsel %vm1122, %v1169, %v1320
        %v1678 = vsel %vm1122, %v1170, %v1322
        %v1679 = vsel %vm1122, %v1171, %v1324
        %v1680 = vsel %vm1122, %v1172, %v1326
        %v1681 = vsel %vm1122, %v1173, %v1328
        %v1682 = vsel %vm1122, %v1174, %v1330
        %v1683 = vsel %vm1122, %v1175, %v1332
        %v1684 = vsel %vm1122, %v1176, %v1334
        %v1685 = vsel %vm1122, %v1177, %v1336
        %v1686 = vsel %vm1122, %v1178, %v1338
        %v1687 = vsel %vm1122, %v1179, %v1340
        %v1688 = vsel %vm1122, %v1180, %v1342
        %v1689 = vsel %vm1122, %v1181, %v1344
        %v1690 = vsel %vm1122, %v1182, %v1346
        %v1691 = vsel %vm1122, %v1183, %v1348
        %v1692 = vsel %vm1122, %v1184, %v1350
        %v1693 = vsel %vm1122, %v1185, %v1352
        %v1694 = vsel %vm1122, %v1186, %v1354
        %v1695 = vsel %vm1122, %v1187, %v1356
        %v1696 = vsel %vm1122, %v1188, %v1358
        %v1697 = vsel %vm1122, %v1189, %v1360
        %v1698 = vsel %vm1122, %v1190, %v1362
        %v1699 = vsel %vm1122, %v1191, %v1364
        %v1700 = vsel %vm1122, %v1192, %v1366
        %v1701 = vsel %vm1122, %v1193, %v1368
        %v1702 = vsel %vm1122, %v1194, %v1370
        %v1703 = vsel %vm1122, %v1195, %v1372
        %v1704 = vsel %vm1122, %v1196, %v1374
        %v1705 = vsel %vm1122, %v1197, %v1376
        %v1706 = vsel %vm1122, %v1198, %v1378
        %v1707 = vsel %vm1122, %v1199, %v1380
        %v1708 = vsel %vm1122, %v1200, %v1382
        %vm1709 = vcmask 523264
        %v1710 = vsel %vm1709, %v1673, %v1456
        %v1711 = vsel %vm1709, %v1674, %v1458
        %v1712 = vsel %vm1709, %v1675, %v1460
        %v1713 = vsel %vm1709, %v1676, %v1462
        %v1714 = vsel %vm1709, %v1677, %v1464
        %v1715 = vsel %vm1709, %v1678, %v1466
        %v1716 = vsel %vm1709, %v1679, %v1468
        %v1717 = vsel %vm1709, %v1680, %v1470
        %v1718 = vsel %vm1709, %v1681, %v1472
        %v1719 = vsel %vm1709, %v1682, %v1474
        %v1720 = vsel %vm1709, %v1683, %v1476
        %v1721 = vsel %vm1709, %v1684, %v1478
        %v1722 = vsel %vm1709, %v1685, %v1480
        %v1723 = vsel %vm1709, %v1686, %v1482
        %v1724 = vsel %vm1709, %v1687, %v1484
        %v1725 = vsel %vm1709, %v1688, %v1486
        %v1726 = vsel %vm1709, %v1689, %v1488
        %v1727 = vsel %vm1709, %v1690, %v1490
        %v1728 = vsel %vm1709, %v1691, %v1492
        %v1729 = vsel %vm1709, %v1692, %v1494
        %v1730 = vsel %vm1709, %v1693, %v1496
        %v1731 = vsel %vm1709, %v1694, %v1498
        %v1732 = vsel %vm1709, %v1695, %v1500
        %v1733 = vsel %vm1709, %v1696, %v1502
        %v1734 = vsel %vm1709, %v1697, %v1504
        %v1735 = vsel %vm1709, %v1698, %v1506
        %v1736 = vsel %vm1709, %v1699, %v1508
        %v1737 = vsel %vm1709, %v1700, %v1510
        %v1738 = vsel %vm1709, %v1701, %v1512
        %v1739 = vsel %vm1709, %v1702, %v1514
        %v1740 = vsel %vm1709, %v1703, %v1516
        %v1741 = vsel %vm1709, %v1704, %v1518
        %v1742 = vsel %vm1709, %v1705, %v1520
        %v1743 = vsel %vm1709, %v1706, %v1522
        %v1744 = vsel %vm1709, %v1707, %v1524
        %v1745 = vsel %vm1709, %v1708, %v1526
        %vm1746 = vcmask 785408
        %v1747 = vsel %vm1746, %v1710, %v1566
        %v1748 = vsel %vm1746, %v1711, %v1568
        %v1749 = vsel %vm1746, %v1712, %v1570
        %v1750 = vsel %vm1746, %v1713, %v1572
        %v1751 = vsel %vm1746, %v1714, %v1574
        %v1752 = vsel %vm1746, %v1715, %v1576
        %v1753 = vsel %vm1746, %v1716, %v1578
        %v1754 = vsel %vm1746, %v1717, %v1580
        %v1755 = vsel %vm1746, %v1718, %v1582
        %v1756 = vsel %vm1746, %v1719, %v1584
        %v1757 = vsel %vm1746, %v1720, %v1586
        %v1758 = vsel %vm1746, %v1721, %v1588
        %v1759 = vsel %vm1746, %v1722, %v1590
        %v1760 = vsel %vm1746, %v1723, %v1592
        %v1761 = vsel %vm1746, %v1724, %v1594
        %v1762 = vsel %vm1746, %v1725, %v1596
        %v1763 = vsel %vm1746, %v1726, %v1598
        %v1764 = vsel %vm1746, %v1727, %v1600
        %v1765 = vsel %vm1746, %v1728, %v1602
        %v1766 = vsel %vm1746, %v1729, %v1604
        %v1767 = vsel %vm1746, %v1730, %v1606
        %v1768 = vsel %vm1746, %v1731, %v1608
        %v1769 = vsel %vm1746, %v1732, %v1610
        %v1770 = vsel %vm1746, %v1733, %v1612
        %v1771 = vsel %vm1746, %v1734, %v1614
        %v1772 = vsel %vm1746, %v1735, %v1616
        %v1773 = vsel %vm1746, %v1736, %v1618
        %v1774 = vsel %vm1746, %v1737, %v1620
        %v1775 = vsel %vm1746, %v1738, %v1622
        %v1776 = vsel %vm1746, %v1739, %v1624
        %v1777 = vsel %vm1746, %v1740, %v1626
        %v1778 = vsel %vm1746, %v1741, %v1628
        %v1779 = vsel %vm1746, %v1742, %v1630
        %v1780 = vsel %vm1746, %v1743, %v1632
        %v1781 = vsel %vm1746, %v1744, %v1634
        %v1782 = vsel %vm1746, %v1745, %v1636
        %v1783 = vpack.c.bf16 %v1748, %v1747
        %v1784 = vpack.c.bf16 %v1750, %v1749
        %v1785 = vpack.c.bf16 %v1752, %v1751
        %v1786 = vpack.c.bf16 %v1754, %v1753
        %v1787 = vpack.c.bf16 %v1756, %v1755
        %v1788 = vpack.c.bf16 %v1758, %v1757
        %v1789 = vpack.c.bf16 %v1760, %v1759
        %v1790 = vpack.c.bf16 %v1762, %v1761
        %v1791 = vpack.c.bf16 %v1764, %v1763
        %v1792 = vpack.c.bf16 %v1766, %v1765
        %v1793 = vpack.c.bf16 %v1768, %v1767
        %v1794 = vpack.c.bf16 %v1770, %v1769
        %v1795 = vpack.c.bf16 %v1772, %v1771
        %v1796 = vpack.c.bf16 %v1774, %v1773
        %v1797 = vpack.c.bf16 %v1776, %v1775
        %v1798 = vpack.c.bf16 %v1778, %v1777
        %v1799 = vpack.c.bf16 %v1780, %v1779
        %v1800 = vpack.c.bf16 %v1782, %v1781
        %v1819 = vunpack.c.l.b16 %v1783
        %v1820 = vunpack.c.h.b16 %v1783
        %v1821 = vunpack.c.l.b16 %v1784
        %v1822 = vunpack.c.h.b16 %v1784
        %v1823 = vunpack.c.l.b16 %v1785
        %v1824 = vunpack.c.h.b16 %v1785
        %v1825 = vunpack.c.l.b16 %v1786
        %v1826 = vunpack.c.h.b16 %v1786
        %v1827 = vunpack.c.l.b16 %v1787
        %v1828 = vunpack.c.h.b16 %v1787
        %v1829 = vunpack.c.l.b16 %v1788
        %v1830 = vunpack.c.h.b16 %v1788
        %v1831 = vunpack.c.l.b16 %v1789
        %v1832 = vunpack.c.h.b16 %v1789
        %v1833 = vunpack.c.l.b16 %v1790
        %v1834 = vunpack.c.h.b16 %v1790
        %v1835 = vunpack.c.l.b16 %v1791
        %v1836 = vunpack.c.h.b16 %v1791
        %v1837 = vunpack.c.l.b16 %v1792
        %v1838 = vunpack.c.h.b16 %v1792
        %v1839 = vunpack.c.l.b16 %v1793
        %v1840 = vunpack.c.h.b16 %v1793
        %v1841 = vunpack.c.l.b16 %v1794
        %v1842 = vunpack.c.h.b16 %v1794
        %v1843 = vunpack.c.l.b16 %v1795
        %v1844 = vunpack.c.h.b16 %v1795
        %v1845 = vunpack.c.l.b16 %v1796
        %v1846 = vunpack.c.h.b16 %v1796
        %v1847 = vunpack.c.l.b16 %v1797
        %v1848 = vunpack.c.h.b16 %v1797
        %v1849 = vunpack.c.l.b16 %v1798
        %v1850 = vunpack.c.h.b16 %v1798
        %v1851 = vunpack.c.l.b16 %v1799
        %v1852 = vunpack.c.h.b16 %v1799
        %v1853 = vunpack.c.l.b16 %v1800
        %v1854 = vunpack.c.h.b16 %v1800
        %v1855 = vpack.c.b16 %v1819, %v1819
        %v1856 = vpack.c.b16 %v1820, %v1820
        %v1857 = vpack.c.b16 %v1821, %v1821
        %v1858 = vpack.c.b16 %v1822, %v1822
        %v1859 = vpack.c.b16 %v1823, %v1823
        %v1860 = vpack.c.b16 %v1824, %v1824
        %v1861 = vpack.c.b16 %v1825, %v1825
        %v1862 = vpack.c.b16 %v1826, %v1826
        %v1863 = vpack.c.b16 %v1827, %v1827
        %v1864 = vpack.c.b16 %v1828, %v1828
        %v1865 = vpack.c.b16 %v1829, %v1829
        %v1866 = vpack.c.b16 %v1830, %v1830
        %v1867 = vpack.c.b16 %v1831, %v1831
        %v1868 = vpack.c.b16 %v1832, %v1832
        %v1869 = vpack.c.b16 %v1833, %v1833
        %v1870 = vpack.c.b16 %v1834, %v1834
        %v1871 = vpack.c.b16 %v1835, %v1835
        %v1872 = vpack.c.b16 %v1836, %v1836
        %v1873 = vpack.c.b16 %v1837, %v1837
        %v1874 = vpack.c.b16 %v1838, %v1838
        %v1875 = vpack.c.b16 %v1839, %v1839
        %v1876 = vpack.c.b16 %v1840, %v1840
        %v1877 = vpack.c.b16 %v1841, %v1841
        %v1878 = vpack.c.b16 %v1842, %v1842
        %v1879 = vpack.c.b16 %v1843, %v1843
        %v1880 = vpack.c.b16 %v1844, %v1844
        %v1881 = vpack.c.b16 %v1845, %v1845
        %v1882 = vpack.c.b16 %v1846, %v1846
        %v1883 = vpack.c.b16 %v1847, %v1847
        %v1884 = vpack.c.b16 %v1848, %v1848
        %v1885 = vpack.c.b16 %v1849, %v1849
        %v1886 = vpack.c.b16 %v1850, %v1850
        %v1887 = vpack.c.b16 %v1851, %v1851
        %v1888 = vpack.c.b16 %v1852, %v1852
        %v1889 = vpack.c.b16 %v1853, %v1853
        %v1890 = vpack.c.b16 %v1854, %v1854
        %1927 = vst [vmem:[#allocation3] sm:$0xf] %v1855
        %1928 = vst [vmem:[#allocation3 + $0xc] sm:$0xf] %v1856
        %1929 = vst [vmem:[#allocation3 + $0x18] sm:$0xf] %v1857
        %1930 = vst [vmem:[#allocation3 + $0x24] sm:$0xf] %v1858
        %1931 = vst [vmem:[#allocation3 + $0x30] sm:$0xf] %v1859
        %1932 = vst [vmem:[#allocation3 + $0x3c] sm:$0xf] %v1860
        %1933 = vst [vmem:[#allocation3 + $0x48] sm:$0xf] %v1861
        %1934 = vst [vmem:[#allocation3 + $0x54] sm:$0xf] %v1862
        %1935 = vst [vmem:[#allocation3 + $0x60] sm:$0xf] %v1863
        %1936 = vst [vmem:[#allocation3 + $0x6c] sm:$0xf] %v1864
        %1937 = vst [vmem:[#allocation3 + $0x78] sm:$0xf] %v1865
        %1938 = vst [vmem:[#allocation3 + $0x84] sm:$0xf] %v1866
        %1939 = vst [vmem:[#allocation3 + $0x90] sm:$0xf] %v1867
        %1940 = vst [vmem:[#allocation3 + $0x9c] sm:$0xf] %v1868
        %1941 = vst [vmem:[#allocation3 + $0xa8] sm:$0xf] %v1869
        %1942 = vst [vmem:[#allocation3 + $0xb4] sm:$0xf] %v1870
        %1943 = vst [vmem:[#allocation3 + $0xc0] sm:$0xf] %v1871
        %1944 = vst [vmem:[#allocation3 + $0xcc] sm:$0xf] %v1872
        %1945 = vst [vmem:[#allocation3 + $0xd8] sm:$0xf] %v1873
        %1946 = vst [vmem:[#allocation3 + $0xe4] sm:$0xf] %v1874
        %1947 = vst [vmem:[#allocation3 + $0xf0] sm:$0xf] %v1875
        %1948 = vst [vmem:[#allocation3 + $0xfc] sm:$0xf] %v1876
        %1949 = vst [vmem:[#allocation3 + $0x108] sm:$0xf] %v1877
        %1950 = vst [vmem:[#allocation3 + $0x114] sm:$0xf] %v1878
        %1951 = vst [vmem:[#allocation3 + $0x120] sm:$0xf] %v1879
        %1952 = vst [vmem:[#allocation3 + $0x12c] sm:$0xf] %v1880
        %1953 = vst [vmem:[#allocation3 + $0x138] sm:$0xf] %v1881
        %1954 = vst [vmem:[#allocation3 + $0x144] sm:$0xf] %v1882
        %1955 = vst [vmem:[#allocation3 + $0x150] sm:$0xf] %v1883
        %1956 = vst [vmem:[#allocation3 + $0x15c] sm:$0xf] %v1884
        %1957 = vst [vmem:[#allocation3 + $0x168] sm:$0xf] %v1885
        %1958 = vst [vmem:[#allocation3 + $0x174] sm:$0xf] %v1886
        %1959 = vst [vmem:[#allocation3 + $0x180] sm:$0xf] %v1887
        %1960 = vst [vmem:[#allocation3 + $0x18c] sm:$0xf] %v1888
        %1961 = vst [vmem:[#allocation3 + $0x198] sm:$0xf] %v1889
        %1962 = vst [vmem:[#allocation3 + $0x1a4] sm:$0xf] %v1890
        %v1963 = vld [vmem:[#allocation2 + $0x18] sm:$0xff]
        %v1964 = vld [vmem:[#allocation2 + $0x20] sm:$0xff]
        %v1965 = vld [vmem:[#allocation2 + $0x28] sm:$0xff]
        %v1966 = vld [vmem:[#allocation2 + $0x30] sm:$0xff]
        %v1967 = vld [vmem:[#allocation2 + $0x38] sm:$0xff]
        %v1968 = vld [vmem:[#allocation2 + $0x40] sm:$0xff]
        %v1969 = vld [vmem:[#allocation2 + $0x48] sm:$0xff]
        %v1970 = vld [vmem:[#allocation2 + $0x50] sm:$0xff]
        %v1971 = vld [vmem:[#allocation2 + $0x58] sm:$0xff]
        %v1972 = vld [vmem:[#allocation2 + $0x60] sm:$0xff]
        %v1973 = vld [vmem:[#allocation2 + $0x68] sm:$0xff]
        %v1974 = vld [vmem:[#allocation2 + $0x70] sm:$0xff]
        %v1975 = vld [vmem:[#allocation2 + $0x78] sm:$0xff]
        %v1976 = vld [vmem:[#allocation2 + $0x80] sm:$0xff]
        %v1977 = vld [vmem:[#allocation2 + $0x88] sm:$0xff]
        %v1978 = vld [vmem:[#allocation2 + $0x90] sm:$0xff]
        %v1979 = vld [vmem:[#allocation2 + $0x98] sm:$0xff]
        %v1980 = vld [vmem:[#allocation2 + $0xa0] sm:$0xff]
        %v1981 = vld [vmem:[#allocation2 + $0xa8] sm:$0xff]
        %v1982 = vld [vmem:[#allocation2 + $0xb0] sm:$0xff]
        %v1983 = vld [vmem:[#allocation2 + $0xb8] sm:$0xff]
        %v1984 = vld [vmem:[#allocation2 + $0xc0] sm:$0xff]
        %v1985 = vld [vmem:[#allocation2 + $0xc8] sm:$0xff]
        %v1986 = vld [vmem:[#allocation2 + $0xd0] sm:$0xff]
        %v1987 = vld [vmem:[#allocation2 + $0xd8] sm:$0xff]
        %v1988 = vld [vmem:[#allocation2 + $0xe0] sm:$0xff]
        %v1989 = vld [vmem:[#allocation2 + $0xe8] sm:$0xff]
        %v1990 = vld [vmem:[#allocation2 + $0xf0] sm:$0xff]
        %v1991 = vld [vmem:[#allocation2 + $0xf8] sm:$0xff]
        %v1992 = vld [vmem:[#allocation2 + $0x100] sm:$0xff]
        %v1993 = vld [vmem:[#allocation2 + $0x108] sm:$0xff]
        %v1994 = vld [vmem:[#allocation2 + $0x110] sm:$0xff]
        %v1995 = vld [vmem:[#allocation2 + $0x118] sm:$0xff]
        %v1996 = vld [vmem:[#allocation2 + $0x120] sm:$0xff]
        %v1997 = vld [vmem:[#allocation2 + $0x128] sm:$0xff]
        %v1998 = vld [vmem:[#allocation2 + $0x130] sm:$0xff]
        %v1999 = vld [vmem:[#allocation2 + $0x19] sm:$0xff]
        %v2000 = vld [vmem:[#allocation2 + $0x21] sm:$0xff]
        %v2001 = vld [vmem:[#allocation2 + $0x29] sm:$0xff]
        %v2002 = vld [vmem:[#allocation2 + $0x31] sm:$0xff]
        %v2003 = vld [vmem:[#allocation2 + $0x39] sm:$0xff]
        %v2004 = vld [vmem:[#allocation2 + $0x41] sm:$0xff]
        %v2005 = vld [vmem:[#allocation2 + $0x49] sm:$0xff]
        %v2006 = vld [vmem:[#allocation2 + $0x51] sm:$0xff]
        %v2007 = vld [vmem:[#allocation2 + $0x59] sm:$0xff]
        %v2008 = vld [vmem:[#allocation2 + $0x61] sm:$0xff]
        %v2009 = vld [vmem:[#allocation2 + $0x69] sm:$0xff]
        %v2010 = vld [vmem:[#allocation2 + $0x71] sm:$0xff]
        %v2011 = vld [vmem:[#allocation2 + $0x79] sm:$0xff]
        %v2012 = vld [vmem:[#allocation2 + $0x81] sm:$0xff]
        %v2013 = vld [vmem:[#allocation2 + $0x89] sm:$0xff]
        %v2014 = vld [vmem:[#allocation2 + $0x91] sm:$0xff]
        %v2015 = vld [vmem:[#allocation2 + $0x99] sm:$0xff]
        %v2016 = vld [vmem:[#allocation2 + $0xa1] sm:$0xff]
        %v2017 = vld [vmem:[#allocation2 + $0xa9] sm:$0xff]
        %v2018 = vld [vmem:[#allocation2 + $0xb1] sm:$0xff]
        %v2019 = vld [vmem:[#allocation2 + $0xb9] sm:$0xff]
        %v2020 = vld [vmem:[#allocation2 + $0xc1] sm:$0xff]
        %v2021 = vld [vmem:[#allocation2 + $0xc9] sm:$0xff]
        %v2022 = vld [vmem:[#allocation2 + $0xd1] sm:$0xff]
        %v2023 = vld [vmem:[#allocation2 + $0xd9] sm:$0xff]
        %v2024 = vld [vmem:[#allocation2 + $0xe1] sm:$0xff]
        %v2025 = vld [vmem:[#allocation2 + $0xe9] sm:$0xff]
        %v2026 = vld [vmem:[#allocation2 + $0xf1] sm:$0xff]
        %v2027 = vld [vmem:[#allocation2 + $0xf9] sm:$0xff]
        %v2028 = vld [vmem:[#allocation2 + $0x101] sm:$0xff]
        %v2029 = vld [vmem:[#allocation2 + $0x109] sm:$0xff]
        %v2030 = vld [vmem:[#allocation2 + $0x111] sm:$0xff]
        %v2031 = vld [vmem:[#allocation2 + $0x119] sm:$0xff]
        %v2032 = vld [vmem:[#allocation2 + $0x121] sm:$0xff]
        %v2033 = vld [vmem:[#allocation2 + $0x129] sm:$0xff]
        %v2034 = vld [vmem:[#allocation2 + $0x131] sm:$0xff]
        %v2035 = vld [vmem:[#allocation2 + $0x139] sm:$0xff]
        %v2036 = vld [vmem:[#allocation2 + $0x141] sm:$0xff]
        %v2037 = vld [vmem:[#allocation2 + $0x2a] sm:$0xff]
        %v2038 = vld [vmem:[#allocation2 + $0x32] sm:$0xff]
        %v2039 = vld [vmem:[#allocation2 + $0x3a] sm:$0xff]
        %v2040 = vld [vmem:[#allocation2 + $0x42] sm:$0xff]
        %v2041 = vld [vmem:[#allocation2 + $0x4a] sm:$0xff]
        %v2042 = vld [vmem:[#allocation2 + $0x52] sm:$0xff]
        %v2043 = vld [vmem:[#allocation2 + $0x5a] sm:$0xff]
        %v2044 = vld [vmem:[#allocation2 + $0x62] sm:$0xff]
        %v2045 = vld [vmem:[#allocation2 + $0x6a] sm:$0xff]
        %v2046 = vld [vmem:[#allocation2 + $0x72] sm:$0xff]
        %v2047 = vld [vmem:[#allocation2 + $0x7a] sm:$0xff]
        %v2048 = vld [vmem:[#allocation2 + $0x82] sm:$0xff]
        %v2049 = vld [vmem:[#allocation2 + $0x8a] sm:$0xff]
        %v2050 = vld [vmem:[#allocation2 + $0x92] sm:$0xff]
        %v2051 = vld [vmem:[#allocation2 + $0x9a] sm:$0xff]
        %v2052 = vld [vmem:[#allocation2 + $0xa2] sm:$0xff]
        %v2053 = vld [vmem:[#allocation2 + $0xaa] sm:$0xff]
        %v2054 = vld [vmem:[#allocation2 + $0xb2] sm:$0xff]
        %v2055 = vld [vmem:[#allocation2 + $0xba] sm:$0xff]
        %v2056 = vld [vmem:[#allocation2 + $0xc2] sm:$0xff]
        %v2057 = vld [vmem:[#allocation2 + $0xca] sm:$0xff]
        %v2058 = vld [vmem:[#allocation2 + $0xd2] sm:$0xff]
        %v2059 = vld [vmem:[#allocation2 + $0xda] sm:$0xff]
        %v2060 = vld [vmem:[#allocation2 + $0xe2] sm:$0xff]
        %v2061 = vld [vmem:[#allocation2 + $0xea] sm:$0xff]
        %v2062 = vld [vmem:[#allocation2 + $0xf2] sm:$0xff]
        %v2063 = vld [vmem:[#allocation2 + $0xfa] sm:$0xff]
        %v2064 = vld [vmem:[#allocation2 + $0x102] sm:$0xff]
        %v2065 = vld [vmem:[#allocation2 + $0x10a] sm:$0xff]
        %v2066 = vld [vmem:[#allocation2 + $0x112] sm:$0xff]
        %v2067 = vld [vmem:[#allocation2 + $0x11a] sm:$0xff]
        %v2068 = vld [vmem:[#allocation2 + $0x122] sm:$0xff]
        %v2069 = vld [vmem:[#allocation2 + $0x12a] sm:$0xff]
        %v2070 = vld [vmem:[#allocation2 + $0x132] sm:$0xff]
        %v2071 = vld [vmem:[#allocation2 + $0x13a] sm:$0xff]
        %v2072 = vld [vmem:[#allocation2 + $0x142] sm:$0xff]
        %2109 = vrot.lane.b32.xlu0 %v1999, 32
        %v2110 = vpop.permute.xlu0 %2109
        %2111 = vrot.lane.b32.xlu0 %v2000, 32
        %v2112 = vpop.permute.xlu0 %2111
        %2113 = vrot.lane.b32.xlu0 %v2001, 32
        %v2114 = vpop.permute.xlu0 %2113
        %2115 = vrot.lane.b32.xlu0 %v2002, 32
        %v2116 = vpop.permute.xlu0 %2115
        %2117 = vrot.lane.b32.xlu0 %v2003, 32
        %v2118 = vpop.permute.xlu0 %2117
        %2119 = vrot.lane.b32.xlu0 %v2004, 32
        %v2120 = vpop.permute.xlu0 %2119
        %2121 = vrot.lane.b32.xlu0 %v2005, 32
        %v2122 = vpop.permute.xlu0 %2121
        %2123 = vrot.lane.b32.xlu0 %v2006, 32
        %v2124 = vpop.permute.xlu0 %2123
        %2125 = vrot.lane.b32.xlu0 %v2007, 32
        %v2126 = vpop.permute.xlu0 %2125
        %2127 = vrot.lane.b32.xlu0 %v2008, 32
        %v2128 = vpop.permute.xlu0 %2127
        %2129 = vrot.lane.b32.xlu0 %v2009, 32
        %v2130 = vpop.permute.xlu0 %2129
        %2131 = vrot.lane.b32.xlu0 %v2010, 32
        %v2132 = vpop.permute.xlu0 %2131
        %2133 = vrot.lane.b32.xlu0 %v2011, 32
        %v2134 = vpop.permute.xlu0 %2133
        %2135 = vrot.lane.b32.xlu0 %v2012, 32
        %v2136 = vpop.permute.xlu0 %2135
        %2137 = vrot.lane.b32.xlu0 %v2013, 32
        %v2138 = vpop.permute.xlu0 %2137
        %2139 = vrot.lane.b32.xlu0 %v2014, 32
        %v2140 = vpop.permute.xlu0 %2139
        %2141 = vrot.lane.b32.xlu0 %v2015, 32
        %v2142 = vpop.permute.xlu0 %2141
        %2143 = vrot.lane.b32.xlu0 %v2016, 32
        %v2144 = vpop.permute.xlu0 %2143
        %2145 = vrot.lane.b32.xlu0 %v2017, 32
        %v2146 = vpop.permute.xlu0 %2145
        %2147 = vrot.lane.b32.xlu0 %v2018, 32
        %v2148 = vpop.permute.xlu0 %2147
        %2149 = vrot.lane.b32.xlu0 %v2019, 32
        %v2150 = vpop.permute.xlu0 %2149
        %2151 = vrot.lane.b32.xlu0 %v2020, 32
        %v2152 = vpop.permute.xlu0 %2151
        %2153 = vrot.lane.b32.xlu0 %v2021, 32
        %v2154 = vpop.permute.xlu0 %2153
        %2155 = vrot.lane.b32.xlu0 %v2022, 32
        %v2156 = vpop.permute.xlu0 %2155
        %2157 = vrot.lane.b32.xlu0 %v2023, 32
        %v2158 = vpop.permute.xlu0 %2157
        %2159 = vrot.lane.b32.xlu0 %v2024, 32
        %v2160 = vpop.permute.xlu0 %2159
        %2161 = vrot.lane.b32.xlu0 %v2025, 32
        %v2162 = vpop.permute.xlu0 %2161
        %2163 = vrot.lane.b32.xlu0 %v2026, 32
        %v2164 = vpop.permute.xlu0 %2163
        %2165 = vrot.lane.b32.xlu0 %v2027, 32
        %v2166 = vpop.permute.xlu0 %2165
        %2167 = vrot.lane.b32.xlu0 %v2028, 32
        %v2168 = vpop.permute.xlu0 %2167
        %2169 = vrot.lane.b32.xlu0 %v2029, 32
        %v2170 = vpop.permute.xlu0 %2169
        %2171 = vrot.lane.b32.xlu0 %v2030, 32
        %v2172 = vpop.permute.xlu0 %2171
        %2173 = vrot.lane.b32.xlu0 %v2031, 32
        %v2174 = vpop.permute.xlu0 %2173
        %2175 = vrot.lane.b32.xlu0 %v2032, 32
        %v2176 = vpop.permute.xlu0 %2175
        %2177 = vrot.lane.b32.xlu0 %v2033, 32
        %v2178 = vpop.permute.xlu0 %2177
        %2179 = vrot.lane.b32.xlu0 %v2034, 32
        %v2180 = vpop.permute.xlu0 %2179
        %2219 = vrot.lane.b32.xlu0 %v2001, 64
        %v2220 = vpop.permute.xlu0 %2219
        %2221 = vrot.lane.b32.xlu0 %v2002, 64
        %v2222 = vpop.permute.xlu0 %2221
        %2223 = vrot.lane.b32.xlu0 %v2003, 64
        %v2224 = vpop.permute.xlu0 %2223
        %2225 = vrot.lane.b32.xlu0 %v2004, 64
        %v2226 = vpop.permute.xlu0 %2225
        %2227 = vrot.lane.b32.xlu0 %v2005, 64
        %v2228 = vpop.permute.xlu0 %2227
        %2229 = vrot.lane.b32.xlu0 %v2006, 64
        %v2230 = vpop.permute.xlu0 %2229
        %2231 = vrot.lane.b32.xlu0 %v2007, 64
        %v2232 = vpop.permute.xlu0 %2231
        %2233 = vrot.lane.b32.xlu0 %v2008, 64
        %v2234 = vpop.permute.xlu0 %2233
        %2235 = vrot.lane.b32.xlu0 %v2009, 64
        %v2236 = vpop.permute.xlu0 %2235
        %2237 = vrot.lane.b32.xlu0 %v2010, 64
        %v2238 = vpop.permute.xlu0 %2237
        %2239 = vrot.lane.b32.xlu0 %v2011, 64
        %v2240 = vpop.permute.xlu0 %2239
        %2241 = vrot.lane.b32.xlu0 %v2012, 64
        %v2242 = vpop.permute.xlu0 %2241
        %2243 = vrot.lane.b32.xlu0 %v2013, 64
        %v2244 = vpop.permute.xlu0 %2243
        %2245 = vrot.lane.b32.xlu0 %v2014, 64
        %v2246 = vpop.permute.xlu0 %2245
        %2247 = vrot.lane.b32.xlu0 %v2015, 64
        %v2248 = vpop.permute.xlu0 %2247
        %2249 = vrot.lane.b32.xlu0 %v2016, 64
        %v2250 = vpop.permute.xlu0 %2249
        %2251 = vrot.lane.b32.xlu0 %v2017, 64
        %v2252 = vpop.permute.xlu0 %2251
        %2253 = vrot.lane.b32.xlu0 %v2018, 64
        %v2254 = vpop.permute.xlu0 %2253
        %2255 = vrot.lane.b32.xlu0 %v2019, 64
        %v2256 = vpop.permute.xlu0 %2255
        %2257 = vrot.lane.b32.xlu0 %v2020, 64
        %v2258 = vpop.permute.xlu0 %2257
        %2259 = vrot.lane.b32.xlu0 %v2021, 64
        %v2260 = vpop.permute.xlu0 %2259
        %2261 = vrot.lane.b32.xlu0 %v2022, 64
        %v2262 = vpop.permute.xlu0 %2261
        %2263 = vrot.lane.b32.xlu0 %v2023, 64
        %v2264 = vpop.permute.xlu0 %2263
        %2265 = vrot.lane.b32.xlu0 %v2024, 64
        %v2266 = vpop.permute.xlu0 %2265
        %2267 = vrot.lane.b32.xlu0 %v2025, 64
        %v2268 = vpop.permute.xlu0 %2267
        %2269 = vrot.lane.b32.xlu0 %v2026, 64
        %v2270 = vpop.permute.xlu0 %2269
        %2271 = vrot.lane.b32.xlu0 %v2027, 64
        %v2272 = vpop.permute.xlu0 %2271
        %2273 = vrot.lane.b32.xlu0 %v2028, 64
        %v2274 = vpop.permute.xlu0 %2273
        %2275 = vrot.lane.b32.xlu0 %v2029, 64
        %v2276 = vpop.permute.xlu0 %2275
        %2277 = vrot.lane.b32.xlu0 %v2030, 64
        %v2278 = vpop.permute.xlu0 %2277
        %2279 = vrot.lane.b32.xlu0 %v2031, 64
        %v2280 = vpop.permute.xlu0 %2279
        %2281 = vrot.lane.b32.xlu0 %v2032, 64
        %v2282 = vpop.permute.xlu0 %2281
        %2283 = vrot.lane.b32.xlu0 %v2033, 64
        %v2284 = vpop.permute.xlu0 %2283
        %2285 = vrot.lane.b32.xlu0 %v2034, 64
        %v2286 = vpop.permute.xlu0 %2285
        %2287 = vrot.lane.b32.xlu0 %v2035, 64
        %v2288 = vpop.permute.xlu0 %2287
        %2289 = vrot.lane.b32.xlu0 %v2036, 64
        %v2290 = vpop.permute.xlu0 %2289
        %2363 = vrot.lane.b32.xlu0 %v2037, 96
        %v2364 = vpop.permute.xlu0 %2363
        %2365 = vrot.lane.b32.xlu0 %v2038, 96
        %v2366 = vpop.permute.xlu0 %2365
        %2367 = vrot.lane.b32.xlu0 %v2039, 96
        %v2368 = vpop.permute.xlu0 %2367
        %2369 = vrot.lane.b32.xlu0 %v2040, 96
        %v2370 = vpop.permute.xlu0 %2369
        %2371 = vrot.lane.b32.xlu0 %v2041, 96
        %v2372 = vpop.permute.xlu0 %2371
        %2373 = vrot.lane.b32.xlu0 %v2042, 96
        %v2374 = vpop.permute.xlu0 %2373
        %2375 = vrot.lane.b32.xlu0 %v2043, 96
        %v2376 = vpop.permute.xlu0 %2375
        %2377 = vrot.lane.b32.xlu0 %v2044, 96
        %v2378 = vpop.permute.xlu0 %2377
        %2379 = vrot.lane.b32.xlu0 %v2045, 96
        %v2380 = vpop.permute.xlu0 %2379
        %2381 = vrot.lane.b32.xlu0 %v2046, 96
        %v2382 = vpop.permute.xlu0 %2381
        %2383 = vrot.lane.b32.xlu0 %v2047, 96
        %v2384 = vpop.permute.xlu0 %2383
        %2385 = vrot.lane.b32.xlu0 %v2048, 96
        %v2386 = vpop.permute.xlu0 %2385
        %2387 = vrot.lane.b32.xlu0 %v2049, 96
        %v2388 = vpop.permute.xlu0 %2387
        %2389 = vrot.lane.b32.xlu0 %v2050, 96
        %v2390 = vpop.permute.xlu0 %2389
        %2391 = vrot.lane.b32.xlu0 %v2051, 96
        %v2392 = vpop.permute.xlu0 %2391
        %2393 = vrot.lane.b32.xlu0 %v2052, 96
        %v2394 = vpop.permute.xlu0 %2393
        %2395 = vrot.lane.b32.xlu0 %v2053, 96
        %v2396 = vpop.permute.xlu0 %2395
        %2397 = vrot.lane.b32.xlu0 %v2054, 96
        %v2398 = vpop.permute.xlu0 %2397
        %2399 = vrot.lane.b32.xlu0 %v2055, 96
        %v2400 = vpop.permute.xlu0 %2399
        %2401 = vrot.lane.b32.xlu0 %v2056, 96
        %v2402 = vpop.permute.xlu0 %2401
        %2403 = vrot.lane.b32.xlu0 %v2057, 96
        %v2404 = vpop.permute.xlu0 %2403
        %2405 = vrot.lane.b32.xlu0 %v2058, 96
        %v2406 = vpop.permute.xlu0 %2405
        %2407 = vrot.lane.b32.xlu0 %v2059, 96
        %v2408 = vpop.permute.xlu0 %2407
        %2409 = vrot.lane.b32.xlu0 %v2060, 96
        %v2410 = vpop.permute.xlu0 %2409
        %2411 = vrot.lane.b32.xlu0 %v2061, 96
        %v2412 = vpop.permute.xlu0 %2411
        %2413 = vrot.lane.b32.xlu0 %v2062, 96
        %v2414 = vpop.permute.xlu0 %2413
        %2415 = vrot.lane.b32.xlu0 %v2063, 96
        %v2416 = vpop.permute.xlu0 %2415
        %2417 = vrot.lane.b32.xlu0 %v2064, 96
        %v2418 = vpop.permute.xlu0 %2417
        %2419 = vrot.lane.b32.xlu0 %v2065, 96
        %v2420 = vpop.permute.xlu0 %2419
        %2421 = vrot.lane.b32.xlu0 %v2066, 96
        %v2422 = vpop.permute.xlu0 %2421
        %2423 = vrot.lane.b32.xlu0 %v2067, 96
        %v2424 = vpop.permute.xlu0 %2423
        %2425 = vrot.lane.b32.xlu0 %v2068, 96
        %v2426 = vpop.permute.xlu0 %2425
        %2427 = vrot.lane.b32.xlu0 %v2069, 96
        %v2428 = vpop.permute.xlu0 %2427
        %2429 = vrot.lane.b32.xlu0 %v2070, 96
        %v2430 = vpop.permute.xlu0 %2429
        %2431 = vrot.lane.b32.xlu0 %v2071, 96
        %v2432 = vpop.permute.xlu0 %2431
        %2433 = vrot.lane.b32.xlu0 %v2072, 96
        %v2434 = vpop.permute.xlu0 %2433
        %v2471 = vsel %vm1122, %v1963, %v2110
        %v2472 = vsel %vm1122, %v1964, %v2112
        %v2473 = vsel %vm1122, %v1965, %v2114
        %v2474 = vsel %vm1122, %v1966, %v2116
        %v2475 = vsel %vm1122, %v1967, %v2118
        %v2476 = vsel %vm1122, %v1968, %v2120
        %v2477 = vsel %vm1122, %v1969, %v2122
        %v2478 = vsel %vm1122, %v1970, %v2124
        %v2479 = vsel %vm1122, %v1971, %v2126
        %v2480 = vsel %vm1122, %v1972, %v2128
        %v2481 = vsel %vm1122, %v1973, %v2130
        %v2482 = vsel %vm1122, %v1974, %v2132
        %v2483 = vsel %vm1122, %v1975, %v2134
        %v2484 = vsel %vm1122, %v1976, %v2136
        %v2485 = vsel %vm1122, %v1977, %v2138
        %v2486 = vsel %vm1122, %v1978, %v2140
        %v2487 = vsel %vm1122, %v1979, %v2142
        %v2488 = vsel %vm1122, %v1980, %v2144
        %v2489 = vsel %vm1122, %v1981, %v2146
        %v2490 = vsel %vm1122, %v1982, %v2148
        %v2491 = vsel %vm1122, %v1983, %v2150
        %v2492 = vsel %vm1122, %v1984, %v2152
        %v2493 = vsel %vm1122, %v1985, %v2154
        %v2494 = vsel %vm1122, %v1986, %v2156
        %v2495 = vsel %vm1122, %v1987, %v2158
        %v2496 = vsel %vm1122, %v1988, %v2160
        %v2497 = vsel %vm1122, %v1989, %v2162
        %v2498 = vsel %vm1122, %v1990, %v2164
        %v2499 = vsel %vm1122, %v1991, %v2166
        %v2500 = vsel %vm1122, %v1992, %v2168
        %v2501 = vsel %vm1122, %v1993, %v2170
        %v2502 = vsel %vm1122, %v1994, %v2172
        %v2503 = vsel %vm1122, %v1995, %v2174
        %v2504 = vsel %vm1122, %v1996, %v2176
        %v2505 = vsel %vm1122, %v1997, %v2178
        %v2506 = vsel %vm1122, %v1998, %v2180
        %v2507 = vsel %vm1709, %v2471, %v2220
        %v2508 = vsel %vm1709, %v2472, %v2222
        %v2509 = vsel %vm1709, %v2473, %v2224
        %v2510 = vsel %vm1709, %v2474, %v2226
        %v2511 = vsel %vm1709, %v2475, %v2228
        %v2512 = vsel %vm1709, %v2476, %v2230
        %v2513 = vsel %vm1709, %v2477, %v2232
        %v2514 = vsel %vm1709, %v2478, %v2234
        %v2515 = vsel %vm1709, %v2479, %v2236
        %v2516 = vsel %vm1709, %v2480, %v2238
        %v2517 = vsel %vm1709, %v2481, %v2240
        %v2518 = vsel %vm1709, %v2482, %v2242
        %v2519 = vsel %vm1709, %v2483, %v2244
        %v2520 = vsel %vm1709, %v2484, %v2246
        %v2521 = vsel %vm1709, %v2485, %v2248
        %v2522 = vsel %vm1709, %v2486, %v2250
        %v2523 = vsel %vm1709, %v2487, %v2252
        %v2524 = vsel %vm1709, %v2488, %v2254
        %v2525 = vsel %vm1709, %v2489, %v2256
        %v2526 = vsel %vm1709, %v2490, %v2258
        %v2527 = vsel %vm1709, %v2491, %v2260
        %v2528 = vsel %vm1709, %v2492, %v2262
        %v2529 = vsel %vm1709, %v2493, %v2264
        %v2530 = vsel %vm1709, %v2494, %v2266
        %v2531 = vsel %vm1709, %v2495, %v2268
        %v2532 = vsel %vm1709, %v2496, %v2270
        %v2533 = vsel %vm1709, %v2497, %v2272
        %v2534 = vsel %vm1709, %v2498, %v2274
        %v2535 = vsel %vm1709, %v2499, %v2276
        %v2536 = vsel %vm1709, %v2500, %v2278
        %v2537 = vsel %vm1709, %v2501, %v2280
        %v2538 = vsel %vm1709, %v2502, %v2282
        %v2539 = vsel %vm1709, %v2503, %v2284
        %v2540 = vsel %vm1709, %v2504, %v2286
        %v2541 = vsel %vm1709, %v2505, %v2288
        %v2542 = vsel %vm1709, %v2506, %v2290
        %v2543 = vsel %vm1746, %v2507, %v2364
        %v2544 = vsel %vm1746, %v2508, %v2366
        %v2545 = vsel %vm1746, %v2509, %v2368
        %v2546 = vsel %vm1746, %v2510, %v2370
        %v2547 = vsel %vm1746, %v2511, %v2372
        %v2548 = vsel %vm1746, %v2512, %v2374
        %v2549 = vsel %vm1746, %v2513, %v2376
        %v2550 = vsel %vm1746, %v2514, %v2378
        %v2551 = vsel %vm1746, %v2515, %v2380
        %v2552 = vsel %vm1746, %v2516, %v2382
        %v2553 = vsel %vm1746, %v2517, %v2384
        %v2554 = vsel %vm1746, %v2518, %v2386
        %v2555 = vsel %vm1746, %v2519, %v2388
        %v2556 = vsel %vm1746, %v2520, %v2390
        %v2557 = vsel %vm1746, %v2521, %v2392
        %v2558 = vsel %vm1746, %v2522, %v2394
        %v2559 = vsel %vm1746, %v2523, %v2396
        %v2560 = vsel %vm1746, %v2524, %v2398
        %v2561 = vsel %vm1746, %v2525, %v2400
        %v2562 = vsel %vm1746, %v2526, %v2402
        %v2563 = vsel %vm1746, %v2527, %v2404
        %v2564 = vsel %vm1746, %v2528, %v2406
        %v2565 = vsel %vm1746, %v2529, %v2408
        %v2566 = vsel %vm1746, %v2530, %v2410
        %v2567 = vsel %vm1746, %v2531, %v2412
        %v2568 = vsel %vm1746, %v2532, %v2414
        %v2569 = vsel %vm1746, %v2533, %v2416
        %v2570 = vsel %vm1746, %v2534, %v2418
        %v2571 = vsel %vm1746, %v2535, %v2420
        %v2572 = vsel %vm1746, %v2536, %v2422
        %v2573 = vsel %vm1746, %v2537, %v2424
        %v2574 = vsel %vm1746, %v2538, %v2426
        %v2575 = vsel %vm1746, %v2539, %v2428
        %v2576 = vsel %vm1746, %v2540, %v2430
        %v2577 = vsel %vm1746, %v2541, %v2432
        %v2578 = vsel %vm1746, %v2542, %v2434
        %v2579 = vpack.c.bf16 %v2544, %v2543
        %v2580 = vpack.c.bf16 %v2546, %v2545
        %v2581 = vpack.c.bf16 %v2548, %v2547
        %v2582 = vpack.c.bf16 %v2550, %v2549
        %v2583 = vpack.c.bf16 %v2552, %v2551
        %v2584 = vpack.c.bf16 %v2554, %v2553
        %v2585 = vpack.c.bf16 %v2556, %v2555
        %v2586 = vpack.c.bf16 %v2558, %v2557
        %v2587 = vpack.c.bf16 %v2560, %v2559
        %v2588 = vpack.c.bf16 %v2562, %v2561
        %v2589 = vpack.c.bf16 %v2564, %v2563
        %v2590 = vpack.c.bf16 %v2566, %v2565
        %v2591 = vpack.c.bf16 %v2568, %v2567
        %v2592 = vpack.c.bf16 %v2570, %v2569
        %v2593 = vpack.c.bf16 %v2572, %v2571
        %v2594 = vpack.c.bf16 %v2574, %v2573
        %v2595 = vpack.c.bf16 %v2576, %v2575
        %v2596 = vpack.c.bf16 %v2578, %v2577
        %v2615 = vunpack.c.l.b16 %v2579
        %v2616 = vunpack.c.h.b16 %v2579
        %v2617 = vunpack.c.l.b16 %v2580
        %v2618 = vunpack.c.h.b16 %v2580
        %v2619 = vunpack.c.l.b16 %v2581
        %v2620 = vunpack.c.h.b16 %v2581
        %v2621 = vunpack.c.l.b16 %v2582
        %v2622 = vunpack.c.h.b16 %v2582
        %v2623 = vunpack.c.l.b16 %v2583
        %v2624 = vunpack.c.h.b16 %v2583
        %v2625 = vunpack.c.l.b16 %v2584
        %v2626 = vunpack.c.h.b16 %v2584
        %v2627 = vunpack.c.l.b16 %v2585
        %v2628 = vunpack.c.h.b16 %v2585
        %v2629 = vunpack.c.l.b16 %v2586
        %v2630 = vunpack.c.h.b16 %v2586
        %v2631 = vunpack.c.l.b16 %v2587
        %v2632 = vunpack.c.h.b16 %v2587
        %v2633 = vunpack.c.l.b16 %v2588
        %v2634 = vunpack.c.h.b16 %v2588
        %v2635 = vunpack.c.l.b16 %v2589
        %v2636 = vunpack.c.h.b16 %v2589
        %v2637 = vunpack.c.l.b16 %v2590
        %v2638 = vunpack.c.h.b16 %v2590
        %v2639 = vunpack.c.l.b16 %v2591
        %v2640 = vunpack.c.h.b16 %v2591
        %v2641 = vunpack.c.l.b16 %v2592
        %v2642 = vunpack.c.h.b16 %v2592
        %v2643 = vunpack.c.l.b16 %v2593
        %v2644 = vunpack.c.h.b16 %v2593
        %v2645 = vunpack.c.l.b16 %v2594
        %v2646 = vunpack.c.h.b16 %v2594
        %v2647 = vunpack.c.l.b16 %v2595
        %v2648 = vunpack.c.h.b16 %v2595
        %v2649 = vunpack.c.l.b16 %v2596
        %v2650 = vunpack.c.h.b16 %v2596
        %v2651 = vpack.c.b16 %v2615, %v2615
        %v2652 = vpack.c.b16 %v2616, %v2616
        %v2653 = vpack.c.b16 %v2617, %v2617
        %v2654 = vpack.c.b16 %v2618, %v2618
        %v2655 = vpack.c.b16 %v2619, %v2619
        %v2656 = vpack.c.b16 %v2620, %v2620
        %v2657 = vpack.c.b16 %v2621, %v2621
        %v2658 = vpack.c.b16 %v2622, %v2622
        %v2659 = vpack.c.b16 %v2623, %v2623
        %v2660 = vpack.c.b16 %v2624, %v2624
        %v2661 = vpack.c.b16 %v2625, %v2625
        %v2662 = vpack.c.b16 %v2626, %v2626
        %v2663 = vpack.c.b16 %v2627, %v2627
        %v2664 = vpack.c.b16 %v2628, %v2628
        %v2665 = vpack.c.b16 %v2629, %v2629
        %v2666 = vpack.c.b16 %v2630, %v2630
        %v2667 = vpack.c.b16 %v2631, %v2631
        %v2668 = vpack.c.b16 %v2632, %v2632
        %v2669 = vpack.c.b16 %v2633, %v2633
        %v2670 = vpack.c.b16 %v2634, %v2634
        %v2671 = vpack.c.b16 %v2635, %v2635
        %v2672 = vpack.c.b16 %v2636, %v2636
        %v2673 = vpack.c.b16 %v2637, %v2637
        %v2674 = vpack.c.b16 %v2638, %v2638
        %v2675 = vpack.c.b16 %v2639, %v2639
        %v2676 = vpack.c.b16 %v2640, %v2640
        %v2677 = vpack.c.b16 %v2641, %v2641
        %v2678 = vpack.c.b16 %v2642, %v2642
        %v2679 = vpack.c.b16 %v2643, %v2643
        %v2680 = vpack.c.b16 %v2644, %v2644
        %v2681 = vpack.c.b16 %v2645, %v2645
        %v2682 = vpack.c.b16 %v2646, %v2646
        %v2683 = vpack.c.b16 %v2647, %v2647
        %v2684 = vpack.c.b16 %v2648, %v2648
        %v2685 = vpack.c.b16 %v2649, %v2649
        %v2686 = vpack.c.b16 %v2650, %v2650
        %2723 = vst [vmem:[#allocation3 + $0x4] sm:$0xf] %v2651
        %2724 = vst [vmem:[#allocation3 + $0x10] sm:$0xf] %v2652
        %2725 = vst [vmem:[#allocation3 + $0x1c] sm:$0xf] %v2653
        %2726 = vst [vmem:[#allocation3 + $0x28] sm:$0xf] %v2654
        %2727 = vst [vmem:[#allocation3 + $0x34] sm:$0xf] %v2655
        %2728 = vst [vmem:[#allocation3 + $0x40] sm:$0xf] %v2656
        %2729 = vst [vmem:[#allocation3 + $0x4c] sm:$0xf] %v2657
        %2730 = vst [vmem:[#allocation3 + $0x58] sm:$0xf] %v2658
        %2731 = vst [vmem:[#allocation3 + $0x64] sm:$0xf] %v2659
        %2732 = vst [vmem:[#allocation3 + $0x70] sm:$0xf] %v2660
        %2733 = vst [vmem:[#allocation3 + $0x7c] sm:$0xf] %v2661
        %2734 = vst [vmem:[#allocation3 + $0x88] sm:$0xf] %v2662
        %2735 = vst [vmem:[#allocation3 + $0x94] sm:$0xf] %v2663
        %2736 = vst [vmem:[#allocation3 + $0xa0] sm:$0xf] %v2664
        %2737 = vst [vmem:[#allocation3 + $0xac] sm:$0xf] %v2665
        %2738 = vst [vmem:[#allocation3 + $0xb8] sm:$0xf] %v2666
        %2739 = vst [vmem:[#allocation3 + $0xc4] sm:$0xf] %v2667
        %2740 = vst [vmem:[#allocation3 + $0xd0] sm:$0xf] %v2668
        %2741 = vst [vmem:[#allocation3 + $0xdc] sm:$0xf] %v2669
        %2742 = vst [vmem:[#allocation3 + $0xe8] sm:$0xf] %v2670
        %2743 = vst [vmem:[#allocation3 + $0xf4] sm:$0xf] %v2671
        %2744 = vst [vmem:[#allocation3 + $0x100] sm:$0xf] %v2672
        %2745 = vst [vmem:[#allocation3 + $0x10c] sm:$0xf] %v2673
        %2746 = vst [vmem:[#allocation3 + $0x118] sm:$0xf] %v2674
        %2747 = vst [vmem:[#allocation3 + $0x124] sm:$0xf] %v2675
        %2748 = vst [vmem:[#allocation3 + $0x130] sm:$0xf] %v2676
        %2749 = vst [vmem:[#allocation3 + $0x13c] sm:$0xf] %v2677
        %2750 = vst [vmem:[#allocation3 + $0x148] sm:$0xf] %v2678
        %2751 = vst [vmem:[#allocation3 + $0x154] sm:$0xf] %v2679
        %2752 = vst [vmem:[#allocation3 + $0x160] sm:$0xf] %v2680
        %2753 = vst [vmem:[#allocation3 + $0x16c] sm:$0xf] %v2681
        %2754 = vst [vmem:[#allocation3 + $0x178] sm:$0xf] %v2682
        %2755 = vst [vmem:[#allocation3 + $0x184] sm:$0xf] %v2683
        %2756 = vst [vmem:[#allocation3 + $0x190] sm:$0xf] %v2684
        %2757 = vst [vmem:[#allocation3 + $0x19c] sm:$0xf] %v2685
        %2758 = vst [vmem:[#allocation3 + $0x1a8] sm:$0xf] %v2686
        %v2759 = vld [vmem:[#allocation2 + $0x2b] sm:$0xff]
        %v2760 = vld [vmem:[#allocation2 + $0x33] sm:$0xff]
        %v2761 = vld [vmem:[#allocation2 + $0x3b] sm:$0xff]
        %v2762 = vld [vmem:[#allocation2 + $0x43] sm:$0xff]
        %v2763 = vld [vmem:[#allocation2 + $0x4b] sm:$0xff]
        %v2764 = vld [vmem:[#allocation2 + $0x53] sm:$0xff]
        %v2765 = vld [vmem:[#allocation2 + $0x5b] sm:$0xff]
        %v2766 = vld [vmem:[#allocation2 + $0x63] sm:$0xff]
        %v2767 = vld [vmem:[#allocation2 + $0x6b] sm:$0xff]
        %v2768 = vld [vmem:[#allocation2 + $0x73] sm:$0xff]
        %v2769 = vld [vmem:[#allocation2 + $0x7b] sm:$0xff]
        %v2770 = vld [vmem:[#allocation2 + $0x83] sm:$0xff]
        %v2771 = vld [vmem:[#allocation2 + $0x8b] sm:$0xff]
        %v2772 = vld [vmem:[#allocation2 + $0x93] sm:$0xff]
        %v2773 = vld [vmem:[#allocation2 + $0x9b] sm:$0xff]
        %v2774 = vld [vmem:[#allocation2 + $0xa3] sm:$0xff]
        %v2775 = vld [vmem:[#allocation2 + $0xab] sm:$0xff]
        %v2776 = vld [vmem:[#allocation2 + $0xb3] sm:$0xff]
        %v2777 = vld [vmem:[#allocation2 + $0xbb] sm:$0xff]
        %v2778 = vld [vmem:[#allocation2 + $0xc3] sm:$0xff]
        %v2779 = vld [vmem:[#allocation2 + $0xcb] sm:$0xff]
        %v2780 = vld [vmem:[#allocation2 + $0xd3] sm:$0xff]
        %v2781 = vld [vmem:[#allocation2 + $0xdb] sm:$0xff]
        %v2782 = vld [vmem:[#allocation2 + $0xe3] sm:$0xff]
        %v2783 = vld [vmem:[#allocation2 + $0xeb] sm:$0xff]
        %v2784 = vld [vmem:[#allocation2 + $0xf3] sm:$0xff]
        %v2785 = vld [vmem:[#allocation2 + $0xfb] sm:$0xff]
        %v2786 = vld [vmem:[#allocation2 + $0x103] sm:$0xff]
        %v2787 = vld [vmem:[#allocation2 + $0x10b] sm:$0xff]
        %v2788 = vld [vmem:[#allocation2 + $0x113] sm:$0xff]
        %v2789 = vld [vmem:[#allocation2 + $0x11b] sm:$0xff]
        %v2790 = vld [vmem:[#allocation2 + $0x123] sm:$0xff]
        %v2791 = vld [vmem:[#allocation2 + $0x12b] sm:$0xff]
        %v2792 = vld [vmem:[#allocation2 + $0x133] sm:$0xff]
        %v2793 = vld [vmem:[#allocation2 + $0x13b] sm:$0xff]
        %v2794 = vld [vmem:[#allocation2 + $0x143] sm:$0xff]
        %v2795 = vpack.c.bf16 %v2760, %v2759
        %v2796 = vpack.c.bf16 %v2762, %v2761
        %v2797 = vpack.c.bf16 %v2764, %v2763
        %v2798 = vpack.c.bf16 %v2766, %v2765
        %v2799 = vpack.c.bf16 %v2768, %v2767
        %v2800 = vpack.c.bf16 %v2770, %v2769
        %v2801 = vpack.c.bf16 %v2772, %v2771
        %v2802 = vpack.c.bf16 %v2774, %v2773
        %v2803 = vpack.c.bf16 %v2776, %v2775
        %v2804 = vpack.c.bf16 %v2778, %v2777
        %v2805 = vpack.c.bf16 %v2780, %v2779
        %v2806 = vpack.c.bf16 %v2782, %v2781
        %v2807 = vpack.c.bf16 %v2784, %v2783
        %v2808 = vpack.c.bf16 %v2786, %v2785
        %v2809 = vpack.c.bf16 %v2788, %v2787
        %v2810 = vpack.c.bf16 %v2790, %v2789
        %v2811 = vpack.c.bf16 %v2792, %v2791
        %v2812 = vpack.c.bf16 %v2794, %v2793
        %v2831 = vunpack.c.l.b16 %v2795
        %v2832 = vunpack.c.h.b16 %v2795
        %v2833 = vunpack.c.l.b16 %v2796
        %v2834 = vunpack.c.h.b16 %v2796
        %v2835 = vunpack.c.l.b16 %v2797
        %v2836 = vunpack.c.h.b16 %v2797
        %v2837 = vunpack.c.l.b16 %v2798
        %v2838 = vunpack.c.h.b16 %v2798
        %v2839 = vunpack.c.l.b16 %v2799
        %v2840 = vunpack.c.h.b16 %v2799
        %v2841 = vunpack.c.l.b16 %v2800
        %v2842 = vunpack.c.h.b16 %v2800
        %v2843 = vunpack.c.l.b16 %v2801
        %v2844 = vunpack.c.h.b16 %v2801
        %v2845 = vunpack.c.l.b16 %v2802
        %v2846 = vunpack.c.h.b16 %v2802
        %v2847 = vunpack.c.l.b16 %v2803
        %v2848 = vunpack.c.h.b16 %v2803
        %v2849 = vunpack.c.l.b16 %v2804
        %v2850 = vunpack.c.h.b16 %v2804
        %v2851 = vunpack.c.l.b16 %v2805
        %v2852 = vunpack.c.h.b16 %v2805
        %v2853 = vunpack.c.l.b16 %v2806
        %v2854 = vunpack.c.h.b16 %v2806
        %v2855 = vunpack.c.l.b16 %v2807
        %v2856 = vunpack.c.h.b16 %v2807
        %v2857 = vunpack.c.l.b16 %v2808
        %v2858 = vunpack.c.h.b16 %v2808
        %v2859 = vunpack.c.l.b16 %v2809
        %v2860 = vunpack.c.h.b16 %v2809
        %v2861 = vunpack.c.l.b16 %v2810
        %v2862 = vunpack.c.h.b16 %v2810
        %v2863 = vunpack.c.l.b16 %v2811
        %v2864 = vunpack.c.h.b16 %v2811
        %v2865 = vunpack.c.l.b16 %v2812
        %v2866 = vunpack.c.h.b16 %v2812
        %v2867 = vpack.c.b16 %v2831, %v2831
        %v2868 = vpack.c.b16 %v2832, %v2832
        %v2869 = vpack.c.b16 %v2833, %v2833
        %v2870 = vpack.c.b16 %v2834, %v2834
        %v2871 = vpack.c.b16 %v2835, %v2835
        %v2872 = vpack.c.b16 %v2836, %v2836
        %v2873 = vpack.c.b16 %v2837, %v2837
        %v2874 = vpack.c.b16 %v2838, %v2838
        %v2875 = vpack.c.b16 %v2839, %v2839
        %v2876 = vpack.c.b16 %v2840, %v2840
        %v2877 = vpack.c.b16 %v2841, %v2841
        %v2878 = vpack.c.b16 %v2842, %v2842
        %v2879 = vpack.c.b16 %v2843, %v2843
        %v2880 = vpack.c.b16 %v2844, %v2844
        %v2881 = vpack.c.b16 %v2845, %v2845
        %v2882 = vpack.c.b16 %v2846, %v2846
        %v2883 = vpack.c.b16 %v2847, %v2847
        %v2884 = vpack.c.b16 %v2848, %v2848
        %v2885 = vpack.c.b16 %v2849, %v2849
        %v2886 = vpack.c.b16 %v2850, %v2850
        %v2887 = vpack.c.b16 %v2851, %v2851
        %v2888 = vpack.c.b16 %v2852, %v2852
        %v2889 = vpack.c.b16 %v2853, %v2853
        %v2890 = vpack.c.b16 %v2854, %v2854
        %v2891 = vpack.c.b16 %v2855, %v2855
        %v2892 = vpack.c.b16 %v2856, %v2856
        %v2893 = vpack.c.b16 %v2857, %v2857
        %v2894 = vpack.c.b16 %v2858, %v2858
        %v2895 = vpack.c.b16 %v2859, %v2859
        %v2896 = vpack.c.b16 %v2860, %v2860
        %v2897 = vpack.c.b16 %v2861, %v2861
        %v2898 = vpack.c.b16 %v2862, %v2862
        %v2899 = vpack.c.b16 %v2863, %v2863
        %v2900 = vpack.c.b16 %v2864, %v2864
        %v2901 = vpack.c.b16 %v2865, %v2865
        %v2902 = vpack.c.b16 %v2866, %v2866
        %vm2939 = vcmask 257024
        %2940 = vst.msk [vmem:[#allocation3 + $0x8] sm:$0xf] %vm2939, %v2867
        %2941 = vst.msk [vmem:[#allocation3 + $0x14] sm:$0xf] %vm2939, %v2868
        %2942 = vst.msk [vmem:[#allocation3 + $0x20] sm:$0xf] %vm2939, %v2869
        %2943 = vst.msk [vmem:[#allocation3 + $0x2c] sm:$0xf] %vm2939, %v2870
        %2944 = vst.msk [vmem:[#allocation3 + $0x38] sm:$0xf] %vm2939, %v2871
        %2945 = vst.msk [vmem:[#allocation3 + $0x44] sm:$0xf] %vm2939, %v2872
        %2946 = vst.msk [vmem:[#allocation3 + $0x50] sm:$0xf] %vm2939, %v2873
        %2947 = vst.msk [vmem:[#allocation3 + $0x5c] sm:$0xf] %vm2939, %v2874
        %2948 = vst.msk [vmem:[#allocation3 + $0x68] sm:$0xf] %vm2939, %v2875
        %2949 = vst.msk [vmem:[#allocation3 + $0x74] sm:$0xf] %vm2939, %v2876
        %2950 = vst.msk [vmem:[#allocation3 + $0x80] sm:$0xf] %vm2939, %v2877
        %2951 = vst.msk [vmem:[#allocation3 + $0x8c] sm:$0xf] %vm2939, %v2878
        %2952 = vst.msk [vmem:[#allocation3 + $0x98] sm:$0xf] %vm2939, %v2879
        %2953 = vst.msk [vmem:[#allocation3 + $0xa4] sm:$0xf] %vm2939, %v2880
        %2954 = vst.msk [vmem:[#allocation3 + $0xb0] sm:$0xf] %vm2939, %v2881
        %2955 = vst.msk [vmem:[#allocation3 + $0xbc] sm:$0xf] %vm2939, %v2882
        %2956 = vst.msk [vmem:[#allocation3 + $0xc8] sm:$0xf] %vm2939, %v2883
        %2957 = vst.msk [vmem:[#allocation3 + $0xd4] sm:$0xf] %vm2939, %v2884
        %2958 = vst.msk [vmem:[#allocation3 + $0xe0] sm:$0xf] %vm2939, %v2885
        %2959 = vst.msk [vmem:[#allocation3 + $0xec] sm:$0xf] %vm2939, %v2886
        %2960 = vst.msk [vmem:[#allocation3 + $0xf8] sm:$0xf] %vm2939, %v2887
        %2961 = vst.msk [vmem:[#allocation3 + $0x104] sm:$0xf] %vm2939, %v2888
        %2962 = vst.msk [vmem:[#allocation3 + $0x110] sm:$0xf] %vm2939, %v2889
        %2963 = vst.msk [vmem:[#allocation3 + $0x11c] sm:$0xf] %vm2939, %v2890
        %2964 = vst.msk [vmem:[#allocation3 + $0x128] sm:$0xf] %vm2939, %v2891
        %2965 = vst.msk [vmem:[#allocation3 + $0x134] sm:$0xf] %vm2939, %v2892
        %2966 = vst.msk [vmem:[#allocation3 + $0x140] sm:$0xf] %vm2939, %v2893
        %2967 = vst.msk [vmem:[#allocation3 + $0x14c] sm:$0xf] %vm2939, %v2894
        %2968 = vst.msk [vmem:[#allocation3 + $0x158] sm:$0xf] %vm2939, %v2895
        %2969 = vst.msk [vmem:[#allocation3 + $0x164] sm:$0xf] %vm2939, %v2896
        %2970 = vst.msk [vmem:[#allocation3 + $0x170] sm:$0xf] %vm2939, %v2897
        %2971 = vst.msk [vmem:[#allocation3 + $0x17c] sm:$0xf] %vm2939, %v2898
        %2972 = vst.msk [vmem:[#allocation3 + $0x188] sm:$0xf] %vm2939, %v2899
        %2973 = vst.msk [vmem:[#allocation3 + $0x194] sm:$0xf] %vm2939, %v2900
        %2974 = vst.msk [vmem:[#allocation3 + $0x1a0] sm:$0xf] %vm2939, %v2901
        %2975 = vst.msk [vmem:[#allocation3 + $0x1ac] sm:$0xf] %vm2939, %v2902
        %v2976 = vld [vmem:[#allocation3] sm:$0xff]
        %v2977 = vld [vmem:[#allocation3 + $0x8] sm:$0xf]
        %v2978 = vld [vmem:[#allocation3 + $0xc] sm:$0xff]
        %v2979 = vld [vmem:[#allocation3 + $0x14] sm:$0xf]
        %v2980 = vld [vmem:[#allocation3 + $0x18] sm:$0xff]
        %v2981 = vld [vmem:[#allocation3 + $0x20] sm:$0xf]
        %v2982 = vld [vmem:[#allocation3 + $0x24] sm:$0xff]
        %v2983 = vld [vmem:[#allocation3 + $0x2c] sm:$0xf]
        %v2984 = vld [vmem:[#allocation3 + $0x30] sm:$0xff]
        %v2985 = vld [vmem:[#allocation3 + $0x38] sm:$0xf]
        %v2986 = vld [vmem:[#allocation3 + $0x3c] sm:$0xff]
        %v2987 = vld [vmem:[#allocation3 + $0x44] sm:$0xf]
        %v2988 = vld [vmem:[#allocation3 + $0x48] sm:$0xff]
        %v2989 = vld [vmem:[#allocation3 + $0x50] sm:$0xf]
        %v2990 = vld [vmem:[#allocation3 + $0x54] sm:$0xff]
        %v2991 = vld [vmem:[#allocation3 + $0x5c] sm:$0xf]
        %v2992 = vld [vmem:[#allocation3 + $0x60] sm:$0xff]
        %v2993 = vld [vmem:[#allocation3 + $0x68] sm:$0xf]
        %v2994 = vld [vmem:[#allocation3 + $0x6c] sm:$0xff]
        %v2995 = vld [vmem:[#allocation3 + $0x74] sm:$0xf]
        %v2996 = vld [vmem:[#allocation3 + $0x78] sm:$0xff]
        %v2997 = vld [vmem:[#allocation3 + $0x80] sm:$0xf]
        %v2998 = vld [vmem:[#allocation3 + $0x84] sm:$0xff]
        %v2999 = vld [vmem:[#allocation3 + $0x8c] sm:$0xf]
        %v3000 = vld [vmem:[#allocation3 + $0x90] sm:$0xff]
        %v3001 = vld [vmem:[#allocation3 + $0x98] sm:$0xf]
        %v3002 = vld [vmem:[#allocation3 + $0x9c] sm:$0xff]
        %v3003 = vld [vmem:[#allocation3 + $0xa4] sm:$0xf]
        %v3004 = vld [vmem:[#allocation3 + $0xa8] sm:$0xff]
        %v3005 = vld [vmem:[#allocation3 + $0xb0] sm:$0xf]
        %v3006 = vld [vmem:[#allocation3 + $0xb4] sm:$0xff]
        %v3007 = vld [vmem:[#allocation3 + $0xbc] sm:$0xf]
        %v3008 = vld [vmem:[#allocation3 + $0xc0] sm:$0xff]
        %v3009 = vld [vmem:[#allocation3 + $0xc8] sm:$0xf]
        %v3010 = vld [vmem:[#allocation3 + $0xcc] sm:$0xff]
        %v3011 = vld [vmem:[#allocation3 + $0xd4] sm:$0xf]
        %v3012 = vld [vmem:[#allocation3 + $0xd8] sm:$0xff]
        %v3013 = vld [vmem:[#allocation3 + $0xe0] sm:$0xf]
        %v3014 = vld [vmem:[#allocation3 + $0xe4] sm:$0xff]
        %v3015 = vld [vmem:[#allocation3 + $0xec] sm:$0xf]
        %v3016 = vld [vmem:[#allocation3 + $0xf0] sm:$0xff]
        %v3017 = vld [vmem:[#allocation3 + $0xf8] sm:$0xf]
        %v3018 = vld [vmem:[#allocation3 + $0xfc] sm:$0xff]
        %v3019 = vld [vmem:[#allocation3 + $0x104] sm:$0xf]
        %v3020 = vld [vmem:[#allocation3 + $0x108] sm:$0xff]
        %v3021 = vld [vmem:[#allocation3 + $0x110] sm:$0xf]
        %v3022 = vld [vmem:[#allocation3 + $0x114] sm:$0xff]
        %v3023 = vld [vmem:[#allocation3 + $0x11c] sm:$0xf]
        %v3024 = vld [vmem:[#allocation3 + $0x120] sm:$0xff]
        %v3025 = vld [vmem:[#allocation3 + $0x128] sm:$0xf]
        %v3026 = vld [vmem:[#allocation3 + $0x12c] sm:$0xff]
        %v3027 = vld [vmem:[#allocation3 + $0x134] sm:$0xf]
        %v3028 = vld [vmem:[#allocation3 + $0x138] sm:$0xff]
        %v3029 = vld [vmem:[#allocation3 + $0x140] sm:$0xf]
        %v3030 = vld [vmem:[#allocation3 + $0x144] sm:$0xff]
        %v3031 = vld [vmem:[#allocation3 + $0x14c] sm:$0xf]
        %v3032 = vld [vmem:[#allocation3 + $0x150] sm:$0xff]
        %v3033 = vld [vmem:[#allocation3 + $0x158] sm:$0xf]
        %v3034 = vld [vmem:[#allocation3 + $0x15c] sm:$0xff]
        %v3035 = vld [vmem:[#allocation3 + $0x164] sm:$0xf]
        %v3036 = vld [vmem:[#allocation3 + $0x168] sm:$0xff]
        %v3037 = vld [vmem:[#allocation3 + $0x170] sm:$0xf]
        %v3038 = vld [vmem:[#allocation3 + $0x174] sm:$0xff]
        %v3039 = vld [vmem:[#allocation3 + $0x17c] sm:$0xf]
        %v3040 = vld [vmem:[#allocation3 + $0x180] sm:$0xff]
        %v3041 = vld [vmem:[#allocation3 + $0x188] sm:$0xf]
        %v3042 = vld [vmem:[#allocation3 + $0x18c] sm:$0xff]
        %v3043 = vld [vmem:[#allocation3 + $0x194] sm:$0xf]
        %v3044 = vld [vmem:[#allocation3 + $0x198] sm:$0xff]
        %v3045 = vld [vmem:[#allocation3 + $0x1a0] sm:$0xf]
        %v3046 = vld [vmem:[#allocation3 + $0x1a4] sm:$0xff]
        %v3047 = vld [vmem:[#allocation3 + $0x1ac] sm:$0xf]
        %v3048 = vld [vmem:[%s4] sm:$0xf]
        %v3049 = vld [vmem:[%s4 + $0x4] sm:$0xf]
        %v3050 = vld [vmem:[%s4 + $0x8] sm:$0xf]
        %v3051 = vld [vmem:[%s4 + $0xc] sm:$0xf]
        %v3052 = vld [vmem:[%s4 + $0x10] sm:$0xf]
        %v3053 = vld [vmem:[%s4 + $0x14] sm:$0xf]
        %v3054 = vld [vmem:[%s4 + $0x18] sm:$0xf]
        %v3055 = vld [vmem:[%s4 + $0x1c] sm:$0xf]
        %v3056 = vld [vmem:[%s4 + $0x20] sm:$0xf]
        %v3057 = vld [vmem:[%s4 + $0x24] sm:$0xf]
        %v3058 = vld [vmem:[%s4 + $0x28] sm:$0xf]
        %v3059 = vld [vmem:[%s4 + $0x2c] sm:$0xf]
        %v3060 = vld [vmem:[%s4 + $0x30] sm:$0xf]
        %v3061 = vld [vmem:[%s4 + $0x34] sm:$0xf]
        %v3062 = vld [vmem:[%s4 + $0x38] sm:$0xf]
        %v3063 = vld [vmem:[%s4 + $0x3c] sm:$0xf]
        %v3064 = vld [vmem:[%s4 + $0x40] sm:$0xf]
        %v3065 = vld [vmem:[%s4 + $0x44] sm:$0xf]
        %v3066 = vld [vmem:[%s4 + $0x48] sm:$0xf]
        %v3067 = vld [vmem:[%s4 + $0x4c] sm:$0xf]
        %v3068 = vld [vmem:[%s4 + $0x50] sm:$0xf]
        %v3069 = vld [vmem:[%s4 + $0x54] sm:$0xf]
        %v3070 = vld [vmem:[%s4 + $0x58] sm:$0xf]
        %v3071 = vld [vmem:[%s4 + $0x5c] sm:$0xf]
        %v3072 = vld [vmem:[%s4 + $0x60] sm:$0xf]
        %v3073 = vld [vmem:[%s4 + $0x64] sm:$0xf]
        %v3074 = vld [vmem:[%s4 + $0x68] sm:$0xf]
        %v3075 = vld [vmem:[%s4 + $0x6c] sm:$0xf]
        %v3076 = vld [vmem:[%s4 + $0x70] sm:$0xf]
        %v3077 = vld [vmem:[%s4 + $0x74] sm:$0xf]
        %v3078 = vld [vmem:[%s4 + $0x78] sm:$0xf]
        %v3079 = vld [vmem:[%s4 + $0x7c] sm:$0xf]
        %v3080 = vld [vmem:[%s4 + $0x80] sm:$0xf]
        %v3081 = vld [vmem:[%s4 + $0x84] sm:$0xf]
        %v3082 = vld [vmem:[%s4 + $0x88] sm:$0xf]
        %v3083 = vld [vmem:[%s4 + $0x8c] sm:$0xf]
        %v3084 = vld [vmem:[%s5] sm:$0x1]
        %v3086 = vlaneseq
        %v3087 = vshrl.u32 %v3086, 7
        %v3088 = vsub.s32 0, %v3087
        %v3089 = vrot.slane %v3084, %v3088
        %v3163 = vunpack.c.l.b16 %v2976
        %v3164 = vunpack.c.h.b16 %v2976
        %v3165 = vunpack.c.l.b16 %v2977
        %v3166 = vunpack.c.l.b16 %v2978
        %v3167 = vunpack.c.h.b16 %v2978
        %v3168 = vunpack.c.l.b16 %v2979
        %v3169 = vunpack.c.l.b16 %v2980
        %v3170 = vunpack.c.h.b16 %v2980
        %v3171 = vunpack.c.l.b16 %v2981
        %v3172 = vunpack.c.l.b16 %v2982
        %v3173 = vunpack.c.h.b16 %v2982
        %v3174 = vunpack.c.l.b16 %v2983
        %v3175 = vunpack.c.l.b16 %v2984
        %v3176 = vunpack.c.h.b16 %v2984
        %v3177 = vunpack.c.l.b16 %v2985
        %v3178 = vunpack.c.l.b16 %v2986
        %v3179 = vunpack.c.h.b16 %v2986
        %v3180 = vunpack.c.l.b16 %v2987
        %v3181 = vunpack.c.l.b16 %v2988
        %v3182 = vunpack.c.h.b16 %v2988
        %v3183 = vunpack.c.l.b16 %v2989
        %v3184 = vunpack.c.l.b16 %v2990
        %v3185 = vunpack.c.h.b16 %v2990
        %v3186 = vunpack.c.l.b16 %v2991
        %v3187 = vunpack.c.l.b16 %v2992
        %v3188 = vunpack.c.h.b16 %v2992
        %v3189 = vunpack.c.l.b16 %v2993
        %v3190 = vunpack.c.l.b16 %v2994
        %v3191 = vunpack.c.h.b16 %v2994
        %v3192 = vunpack.c.l.b16 %v2995
        %v3193 = vunpack.c.l.b16 %v2996
        %v3194 = vunpack.c.h.b16 %v2996
        %v3195 = vunpack.c.l.b16 %v2997
        %v3196 = vunpack.c.l.b16 %v2998
        %v3197 = vunpack.c.h.b16 %v2998
        %v3198 = vunpack.c.l.b16 %v2999
        %v3199 = vunpack.c.l.b16 %v3000
        %v3200 = vunpack.c.h.b16 %v3000
        %v3201 = vunpack.c.l.b16 %v3001
        %v3202 = vunpack.c.l.b16 %v3002
        %v3203 = vunpack.c.h.b16 %v3002
        %v3204 = vunpack.c.l.b16 %v3003
        %v3205 = vunpack.c.l.b16 %v3004
        %v3206 = vunpack.c.h.b16 %v3004
        %v3207 = vunpack.c.l.b16 %v3005
        %v3208 = vunpack.c.l.b16 %v3006
        %v3209 = vunpack.c.h.b16 %v3006
        %v3210 = vunpack.c.l.b16 %v3007
        %v3211 = vunpack.c.l.b16 %v3008
        %v3212 = vunpack.c.h.b16 %v3008
        %v3213 = vunpack.c.l.b16 %v3009
        %v3214 = vunpack.c.l.b16 %v3010
        %v3215 = vunpack.c.h.b16 %v3010
        %v3216 = vunpack.c.l.b16 %v3011
        %v3217 = vunpack.c.l.b16 %v3012
        %v3218 = vunpack.c.h.b16 %v3012
        %v3219 = vunpack.c.l.b16 %v3013
        %v3220 = vunpack.c.l.b16 %v3014
        %v3221 = vunpack.c.h.b16 %v3014
        %v3222 = vunpack.c.l.b16 %v3015
        %v3223 = vunpack.c.l.b16 %v3016
        %v3224 = vunpack.c.h.b16 %v3016
        %v3225 = vunpack.c.l.b16 %v3017
        %v3226 = vunpack.c.l.b16 %v3018
        %v3227 = vunpack.c.h.b16 %v3018
        %v3228 = vunpack.c.l.b16 %v3019
        %v3229 = vunpack.c.l.b16 %v3020
        %v3230 = vunpack.c.h.b16 %v3020
        %v3231 = vunpack.c.l.b16 %v3021
        %v3232 = vunpack.c.l.b16 %v3022
        %v3233 = vunpack.c.h.b16 %v3022
        %v3234 = vunpack.c.l.b16 %v3023
        %v3235 = vunpack.c.l.b16 %v3024
        %v3236 = vunpack.c.h.b16 %v3024
        %v3237 = vunpack.c.l.b16 %v3025
        %v3238 = vunpack.c.l.b16 %v3026
        %v3239 = vunpack.c.h.b16 %v3026
        %v3240 = vunpack.c.l.b16 %v3027
        %v3241 = vunpack.c.l.b16 %v3028
        %v3242 = vunpack.c.h.b16 %v3028
        %v3243 = vunpack.c.l.b16 %v3029
        %v3244 = vunpack.c.l.b16 %v3030
        %v3245 = vunpack.c.h.b16 %v3030
        %v3246 = vunpack.c.l.b16 %v3031
        %v3247 = vunpack.c.l.b16 %v3032
        %v3248 = vunpack.c.h.b16 %v3032
        %v3249 = vunpack.c.l.b16 %v3033
        %v3250 = vunpack.c.l.b16 %v3034
        %v3251 = vunpack.c.h.b16 %v3034
        %v3252 = vunpack.c.l.b16 %v3035
        %v3253 = vunpack.c.l.b16 %v3036
        %v3254 = vunpack.c.h.b16 %v3036
        %v3255 = vunpack.c.l.b16 %v3037
        %v3256 = vunpack.c.l.b16 %v3038
        %v3257 = vunpack.c.h.b16 %v3038
        %v3258 = vunpack.c.l.b16 %v3039
        %v3259 = vunpack.c.l.b16 %v3040
        %v3260 = vunpack.c.h.b16 %v3040
        %v3261 = vunpack.c.l.b16 %v3041
        %v3262 = vunpack.c.l.b16 %v3042
        %v3263 = vunpack.c.h.b16 %v3042
        %v3264 = vunpack.c.l.b16 %v3043
        %v3265 = vunpack.c.l.b16 %v3044
        %v3266 = vunpack.c.h.b16 %v3044
        %v3267 = vunpack.c.l.b16 %v3045
        %v3268 = vunpack.c.l.b16 %v3046
        %v3269 = vunpack.c.h.b16 %v3046
        %v3270 = vunpack.c.l.b16 %v3047
        %v3271 = vpack.c.b16 %v3166, %v3163
        %v3272 = vpack.c.b16 %v3167, %v3164
        %v3273 = vpack.c.b16 %v3168, %v3165
        %v3274 = vpack.c.b16 %v3172, %v3169
        %v3275 = vpack.c.b16 %v3173, %v3170
        %v3276 = vpack.c.b16 %v3174, %v3171
        %v3277 = vpack.c.b16 %v3178, %v3175
        %v3278 = vpack.c.b16 %v3179, %v3176
        %v3279 = vpack.c.b16 %v3180, %v3177
        %v3280 = vpack.c.b16 %v3184, %v3181
        %v3281 = vpack.c.b16 %v3185, %v3182
        %v3282 = vpack.c.b16 %v3186, %v3183
        %v3283 = vpack.c.b16 %v3190, %v3187
        %v3284 = vpack.c.b16 %v3191, %v3188
        %v3285 = vpack.c.b16 %v3192, %v3189
        %v3286 = vpack.c.b16 %v3196, %v3193
        %v3287 = vpack.c.b16 %v3197, %v3194
        %v3288 = vpack.c.b16 %v3198, %v3195
        %v3289 = vpack.c.b16 %v3202, %v3199
        %v3290 = vpack.c.b16 %v3203, %v3200
        %v3291 = vpack.c.b16 %v3204, %v3201
        %v3292 = vpack.c.b16 %v3208, %v3205
        %v3293 = vpack.c.b16 %v3209, %v3206
        %v3294 = vpack.c.b16 %v3210, %v3207
        %v3295 = vpack.c.b16 %v3214, %v3211
        %v3296 = vpack.c.b16 %v3215, %v3212
        %v3297 = vpack.c.b16 %v3216, %v3213
        %v3298 = vpack.c.b16 %v3220, %v3217
        %v3299 = vpack.c.b16 %v3221, %v3218
        %v3300 = vpack.c.b16 %v3222, %v3219
        %v3301 = vpack.c.b16 %v3226, %v3223
        %v3302 = vpack.c.b16 %v3227, %v3224
        %v3303 = vpack.c.b16 %v3228, %v3225
        %v3304 = vpack.c.b16 %v3232, %v3229
        %v3305 = vpack.c.b16 %v3233, %v3230
        %v3306 = vpack.c.b16 %v3234, %v3231
        %v3307 = vpack.c.b16 %v3238, %v3235
        %v3308 = vpack.c.b16 %v3239, %v3236
        %v3309 = vpack.c.b16 %v3240, %v3237
        %v3310 = vpack.c.b16 %v3244, %v3241
        %v3311 = vpack.c.b16 %v3245, %v3242
        %v3312 = vpack.c.b16 %v3246, %v3243
        %v3313 = vpack.c.b16 %v3250, %v3247
        %v3314 = vpack.c.b16 %v3251, %v3248
        %v3315 = vpack.c.b16 %v3252, %v3249
        %v3316 = vpack.c.b16 %v3256, %v3253
        %v3317 = vpack.c.b16 %v3257, %v3254
        %v3318 = vpack.c.b16 %v3258, %v3255
        %v3319 = vpack.c.b16 %v3262, %v3259
        %v3320 = vpack.c.b16 %v3263, %v3260
        %v3321 = vpack.c.b16 %v3264, %v3261
        %v3322 = vpack.c.b16 %v3268, %v3265
        %v3323 = vpack.c.b16 %v3269, %v3266
        %v3324 = vpack.c.b16 %v3270, %v3267
        %v3397 = vunpack.c.l.b16 %v3048
        %v3398 = vunpack.c.l.b16 %v3049
        %v3399 = vunpack.c.l.b16 %v3050
        %v3400 = vunpack.c.l.b16 %v3051
        %v3401 = vunpack.c.l.b16 %v3052
        %v3402 = vunpack.c.l.b16 %v3053
        %v3403 = vunpack.c.l.b16 %v3054
        %v3404 = vunpack.c.l.b16 %v3055
        %v3405 = vunpack.c.l.b16 %v3056
        %v3406 = vunpack.c.l.b16 %v3057
        %v3407 = vunpack.c.l.b16 %v3058
        %v3408 = vunpack.c.l.b16 %v3059
        %v3409 = vunpack.c.l.b16 %v3060
        %v3410 = vunpack.c.l.b16 %v3061
        %v3411 = vunpack.c.l.b16 %v3062
        %v3412 = vunpack.c.l.b16 %v3063
        %v3413 = vunpack.c.l.b16 %v3064
        %v3414 = vunpack.c.l.b16 %v3065
        %v3415 = vunpack.c.l.b16 %v3066
        %v3416 = vunpack.c.l.b16 %v3067
        %v3417 = vunpack.c.l.b16 %v3068
        %v3418 = vunpack.c.l.b16 %v3069
        %v3419 = vunpack.c.l.b16 %v3070
        %v3420 = vunpack.c.l.b16 %v3071
        %v3421 = vunpack.c.l.b16 %v3072
        %v3422 = vunpack.c.l.b16 %v3073
        %v3423 = vunpack.c.l.b16 %v3074
        %v3424 = vunpack.c.l.b16 %v3075
        %v3425 = vunpack.c.l.b16 %v3076
        %v3426 = vunpack.c.l.b16 %v3077
        %v3427 = vunpack.c.l.b16 %v3078
        %v3428 = vunpack.c.l.b16 %v3079
        %v3429 = vunpack.c.l.b16 %v3080
        %v3430 = vunpack.c.l.b16 %v3081
        %v3431 = vunpack.c.l.b16 %v3082
        %v3432 = vunpack.c.l.b16 %v3083
        %v3433 = vpack.c.b16 %v3398, %v3397
        %v3434 = vpack.c.b16 %v3400, %v3399
        %v3435 = vpack.c.b16 %v3402, %v3401
        %v3436 = vpack.c.b16 %v3404, %v3403
        %v3437 = vpack.c.b16 %v3406, %v3405
        %v3438 = vpack.c.b16 %v3408, %v3407
        %v3439 = vpack.c.b16 %v3410, %v3409
        %v3440 = vpack.c.b16 %v3412, %v3411
        %v3441 = vpack.c.b16 %v3414, %v3413
        %v3442 = vpack.c.b16 %v3416, %v3415
        %v3443 = vpack.c.b16 %v3418, %v3417
        %v3444 = vpack.c.b16 %v3420, %v3419
        %v3445 = vpack.c.b16 %v3422, %v3421
        %v3446 = vpack.c.b16 %v3424, %v3423
        %v3447 = vpack.c.b16 %v3426, %v3425
        %v3448 = vpack.c.b16 %v3428, %v3427
        %v3449 = vpack.c.b16 %v3430, %v3429
        %v3450 = vpack.c.b16 %v3432, %v3431
        %v3470 = vsel %vm1122, %v3273, 0
        %v3473 = vsel %vm1122, %v3276, 0
        %v3476 = vsel %vm1122, %v3279, 0
        %v3479 = vsel %vm1122, %v3282, 0
        %v3482 = vsel %vm1122, %v3285, 0
        %v3485 = vsel %vm1122, %v3288, 0
        %v3488 = vsel %vm1122, %v3291, 0
        %v3491 = vsel %vm1122, %v3294, 0
        %v3494 = vsel %vm1122, %v3297, 0
        %v3497 = vsel %vm1122, %v3300, 0
        %v3500 = vsel %vm1122, %v3303, 0
        %v3503 = vsel %vm1122, %v3306, 0
        %v3506 = vsel %vm1122, %v3309, 0
        %v3509 = vsel %vm1122, %v3312, 0
        %v3512 = vsel %vm1122, %v3315, 0
        %v3515 = vsel %vm1122, %v3318, 0
        %v3518 = vsel %vm1122, %v3321, 0
        %v3521 = vsel %vm1122, %v3324, 0
        %3523 = vmatprep.subr.bf16.mxu0 0
        %3524 = vmatpush1.bf16.msra.mxu0 %v3440
        %3525 = vmatprep.subr.bf16.mxu0 0
        %3526 = vmatpush1.bf16.msra.mxu0 %v3439
        %3527 = vmatprep.subr.bf16.mxu0 0
        %3528 = vmatpush1.bf16.msra.mxu0 %v3438
        %3529 = vmatprep.subr.bf16.mxu0 0
        %3530 = vmatpush1.bf16.msra.mxu0 %v3437
        %3531 = vmatprep.subr.bf16.mxu0 0
        %3532 = vmatpush1.bf16.msra.mxu0 %v3436
        %3533 = vmatprep.subr.bf16.mxu0 0
        %3534 = vmatpush1.bf16.msra.mxu0 %v3435
        %3535 = vmatprep.subr.bf16.mxu0 0
        %3536 = vmatpush1.bf16.msra.mxu0 %v3434
        %3537 = vmatprep.subr.bf16.mxu0 0
        %3538 = vmatpush1.bf16.msra.mxu0 %v3433
        %3539 = vmatprep.subr.bf16.mxu0 0
        %3540 = vmatpush2.bf16.msra.mxu0 %v3448
        %3541 = vmatprep.subr.bf16.mxu0 0
        %3542 = vmatpush2.bf16.msra.mxu0 %v3447
        %3543 = vmatprep.subr.bf16.mxu0 0
        %3544 = vmatpush2.bf16.msra.mxu0 %v3446
        %3545 = vmatprep.subr.bf16.mxu0 0
        %3546 = vmatpush2.bf16.msra.mxu0 %v3445
        %3547 = vmatprep.subr.bf16.mxu0 0
        %3548 = vmatpush2.bf16.msra.mxu0 %v3444
        %3549 = vmatprep.subr.bf16.mxu0 0
        %3550 = vmatpush2.bf16.msra.mxu0 %v3443
        %3551 = vmatprep.subr.bf16.mxu0 0
        %3552 = vmatpush2.bf16.msra.mxu0 %v3442
        %3553 = vmatprep.subr.bf16.mxu0 0
        %3554 = vmatpush2.bf16.msra.mxu0 %v3441
        %3555 = vmatprep.mubr.bf16.mxu0 %v3272
        %3556 = vmatmul.mubr.bf16.gmra.mxu0 %v3271
        %v3557 = vpop.f32.mrf.mxu0
        %v3558 = vadd.f32 %v3089, %v3557
        %v3559 = vpop.f32.mrf.mxu0
        %v3560 = vpop.f32.mrf.mxu0
        %v3561 = vadd.f32 %v3089, %v3560
        %v3562 = vpop.f32.mrf.mxu0
        %3563 = vmatprep.mubr.bf16.mxu0 %v3275
        %3564 = vmatmul.mubr.bf16.gmra.mxu0 %v3274
        %v3565 = vpop.f32.mrf.mxu0
        %v3566 = vadd.f32 %v3089, %v3565
        %v3567 = vpop.f32.mrf.mxu0
        %v3568 = vpop.f32.mrf.mxu0
        %v3569 = vadd.f32 %v3089, %v3568
        %v3570 = vpop.f32.mrf.mxu0
        %3571 = vmatprep.mubr.bf16.mxu0 %v3278
        %3572 = vmatmul.mubr.bf16.gmra.mxu0 %v3277
        %v3573 = vpop.f32.mrf.mxu0
        %v3574 = vadd.f32 %v3089, %v3573
        %v3575 = vpop.f32.mrf.mxu0
        %v3576 = vpop.f32.mrf.mxu0
        %v3577 = vadd.f32 %v3089, %v3576
        %v3578 = vpop.f32.mrf.mxu0
        %3579 = vmatprep.mubr.bf16.mxu0 %v3281
        %3580 = vmatmul.mubr.bf16.gmra.mxu0 %v3280
        %v3581 = vpop.f32.mrf.mxu0
        %v3582 = vadd.f32 %v3089, %v3581
        %v3583 = vpop.f32.mrf.mxu0
        %v3584 = vpop.f32.mrf.mxu0
        %v3585 = vadd.f32 %v3089, %v3584
        %v3586 = vpop.f32.mrf.mxu0
        %3587 = vmatprep.mubr.bf16.mxu0 %v3284
        %3588 = vmatmul.mubr.bf16.gmra.mxu0 %v3283
        %v3589 = vpop.f32.mrf.mxu0
        %v3590 = vadd.f32 %v3089, %v3589
        %v3591 = vpop.f32.mrf.mxu0
        %v3592 = vpop.f32.mrf.mxu0
        %v3593 = vadd.f32 %v3089, %v3592
        %v3594 = vpop.f32.mrf.mxu0
        %3595 = vmatprep.mubr.bf16.mxu0 %v3287
        %3596 = vmatmul.mubr.bf16.gmra.mxu0 %v3286
        %v3597 = vpop.f32.mrf.mxu0
        %v3598 = vadd.f32 %v3089, %v3597
        %v3599 = vpop.f32.mrf.mxu0
        %v3600 = vpop.f32.mrf.mxu0
        %v3601 = vadd.f32 %v3089, %v3600
        %v3602 = vpop.f32.mrf.mxu0
        %3603 = vmatprep.mubr.bf16.mxu0 %v3290
        %3604 = vmatmul.mubr.bf16.gmra.mxu0 %v3289
        %v3605 = vpop.f32.mrf.mxu0
        %v3606 = vadd.f32 %v3089, %v3605
        %v3607 = vpop.f32.mrf.mxu0
        %v3608 = vpop.f32.mrf.mxu0
        %v3609 = vadd.f32 %v3089, %v3608
        %v3610 = vpop.f32.mrf.mxu0
        %3611 = vmatprep.mubr.bf16.mxu0 %v3293
        %3612 = vmatmul.mubr.bf16.gmra.mxu0 %v3292
        %v3613 = vpop.f32.mrf.mxu0
        %v3614 = vadd.f32 %v3089, %v3613
        %v3615 = vpop.f32.mrf.mxu0
        %v3616 = vpop.f32.mrf.mxu0
        %v3617 = vadd.f32 %v3089, %v3616
        %v3618 = vpop.f32.mrf.mxu0
        %3619 = vmatprep.mubr.bf16.mxu0 %v3296
        %3620 = vmatmul.mubr.bf16.gmra.mxu0 %v3295
        %v3621 = vpop.f32.mrf.mxu0
        %v3622 = vadd.f32 %v3089, %v3621
        %v3623 = vpop.f32.mrf.mxu0
        %v3624 = vpop.f32.mrf.mxu0
        %v3625 = vadd.f32 %v3089, %v3624
        %v3626 = vpop.f32.mrf.mxu0
        %3627 = vmatprep.mubr.bf16.mxu0 %v3299
        %3628 = vmatmul.mubr.bf16.gmra.mxu0 %v3298
        %v3629 = vpop.f32.mrf.mxu0
        %v3630 = vadd.f32 %v3089, %v3629
        %v3631 = vpop.f32.mrf.mxu0
        %v3632 = vpop.f32.mrf.mxu0
        %v3633 = vadd.f32 %v3089, %v3632
        %v3634 = vpop.f32.mrf.mxu0
        %3635 = vmatprep.mubr.bf16.mxu0 %v3302
        %3636 = vmatmul.mubr.bf16.gmra.mxu0 %v3301
        %v3637 = vpop.f32.mrf.mxu0
        %v3638 = vadd.f32 %v3089, %v3637
        %v3639 = vpop.f32.mrf.mxu0
        %v3640 = vpop.f32.mrf.mxu0
        %v3641 = vadd.f32 %v3089, %v3640
        %v3642 = vpop.f32.mrf.mxu0
        %3643 = vmatprep.mubr.bf16.mxu0 %v3305
        %3644 = vmatmul.mubr.bf16.gmra.mxu0 %v3304
        %v3645 = vpop.f32.mrf.mxu0
        %v3646 = vadd.f32 %v3089, %v3645
        %v3647 = vpop.f32.mrf.mxu0
        %v3648 = vpop.f32.mrf.mxu0
        %v3649 = vadd.f32 %v3089, %v3648
        %v3650 = vpop.f32.mrf.mxu0
        %3651 = vmatprep.mubr.bf16.mxu0 %v3308
        %3652 = vmatmul.mubr.bf16.gmra.mxu0 %v3307
        %v3653 = vpop.f32.mrf.mxu0
        %v3654 = vadd.f32 %v3089, %v3653
        %v3655 = vpop.f32.mrf.mxu0
        %v3656 = vpop.f32.mrf.mxu0
        %v3657 = vadd.f32 %v3089, %v3656
        %v3658 = vpop.f32.mrf.mxu0
        %3659 = vmatprep.mubr.bf16.mxu0 %v3311
        %3660 = vmatmul.mubr.bf16.gmra.mxu0 %v3310
        %v3661 = vpop.f32.mrf.mxu0
        %v3662 = vadd.f32 %v3089, %v3661
        %v3663 = vpop.f32.mrf.mxu0
        %v3664 = vpop.f32.mrf.mxu0
        %v3665 = vadd.f32 %v3089, %v3664
        %v3666 = vpop.f32.mrf.mxu0
        %3667 = vmatprep.mubr.bf16.mxu0 %v3314
        %3668 = vmatmul.mubr.bf16.gmra.mxu0 %v3313
        %v3669 = vpop.f32.mrf.mxu0
        %v3670 = vadd.f32 %v3089, %v3669
        %v3671 = vpop.f32.mrf.mxu0
        %v3672 = vpop.f32.mrf.mxu0
        %v3673 = vadd.f32 %v3089, %v3672
        %v3674 = vpop.f32.mrf.mxu0
        %3675 = vmatprep.mubr.bf16.mxu0 %v3317
        %3676 = vmatmul.mubr.bf16.gmra.mxu0 %v3316
        %v3677 = vpop.f32.mrf.mxu0
        %v3678 = vadd.f32 %v3089, %v3677
        %v3679 = vpop.f32.mrf.mxu0
        %v3680 = vpop.f32.mrf.mxu0
        %v3681 = vadd.f32 %v3089, %v3680
        %v3682 = vpop.f32.mrf.mxu0
        %3683 = vmatprep.mubr.bf16.mxu0 %v3320
        %3684 = vmatmul.mubr.bf16.gmra.mxu0 %v3319
        %v3685 = vpop.f32.mrf.mxu0
        %v3686 = vadd.f32 %v3089, %v3685
        %v3687 = vpop.f32.mrf.mxu0
        %v3688 = vpop.f32.mrf.mxu0
        %v3689 = vadd.f32 %v3089, %v3688
        %v3690 = vpop.f32.mrf.mxu0
        %3691 = vmatprep.mubr.bf16.mxu0 %v3323
        %3692 = vmatmul.mubr.bf16.gmra.mxu0 %v3322
        %v3693 = vpop.f32.mrf.mxu0
        %v3694 = vadd.f32 %v3089, %v3693
        %v3695 = vpop.f32.mrf.mxu0
        %v3696 = vpop.f32.mrf.mxu0
        %v3697 = vadd.f32 %v3089, %v3696
        %v3698 = vpop.f32.mrf.mxu0
        %3699 = vdwg.mxu0
        %3700 = vmatprep.subr.bf16.mxu0 0
        %3701 = vmatpush1.bf16.msra.mxu0 0
        %3702 = vmatprep.subr.bf16.mxu0 0
        %3703 = vmatpush1.bf16.msra.mxu0 0
        %3704 = vmatprep.subr.bf16.mxu0 0
        %3705 = vmatpush1.bf16.msra.mxu0 0
        %3706 = vmatprep.subr.bf16.mxu0 0
        %3707 = vmatpush1.bf16.msra.mxu0 0
        %3708 = vmatprep.subr.bf16.mxu0 0
        %3709 = vmatpush1.bf16.msra.mxu0 0
        %3710 = vmatprep.subr.bf16.mxu0 0
        %3711 = vmatpush1.bf16.msra.mxu0 0
        %3712 = vmatprep.subr.bf16.mxu0 0
        %3713 = vmatpush1.bf16.msra.mxu0 %v3450
        %3714 = vmatprep.subr.bf16.mxu0 0
        %3715 = vmatpush1.bf16.msra.mxu0 %v3449
        %3716 = vmatprep.subr.bf16.mxu0 0
        %3717 = vmatpush2.bf16.msra.mxu0 0
        %3718 = vmatprep.subr.bf16.mxu0 0
        %3719 = vmatpush2.bf16.msra.mxu0 0
        %3720 = vmatprep.subr.bf16.mxu0 0
        %3721 = vmatpush2.bf16.msra.mxu0 0
        %3722 = vmatprep.subr.bf16.mxu0 0
        %3723 = vmatpush2.bf16.msra.mxu0 0
        %3724 = vmatprep.subr.bf16.mxu0 0
        %3725 = vmatpush2.bf16.msra.mxu0 0
        %3726 = vmatprep.subr.bf16.mxu0 0
        %3727 = vmatpush2.bf16.msra.mxu0 0
        %3728 = vmatprep.subr.bf16.mxu0 0
        %3729 = vmatpush2.bf16.msra.mxu0 0
        %3730 = vmatprep.subr.bf16.mxu0 0
        %3731 = vmatpush2.bf16.msra.mxu0 0
        %3732 = vmatprep.mubr.bf16.mxu0 0
        %3733 = vmatmul.mubr.bf16.gmra.mxu0 %v3470
        %v3734 = vpop.f32.mrf.mxu0
        %v3735 = vadd.f32 %v3558, %v3734
        %v3736 = vpop.f32.mrf.mxu0
        %v3737 = vpop.f32.mrf.mxu0
        %v3738 = vadd.f32 %v3561, %v3737
        %v3739 = vpop.f32.mrf.mxu0
        %3740 = vmatprep.mubr.bf16.mxu0 0
        %3741 = vmatmul.mubr.bf16.gmra.mxu0 %v3473
        %v3742 = vpop.f32.mrf.mxu0
        %v3743 = vadd.f32 %v3566, %v3742
        %v3744 = vpop.f32.mrf.mxu0
        %v3745 = vpop.f32.mrf.mxu0
        %v3746 = vadd.f32 %v3569, %v3745
        %v3747 = vpop.f32.mrf.mxu0
        %3748 = vmatprep.mubr.bf16.mxu0 0
        %3749 = vmatmul.mubr.bf16.gmra.mxu0 %v3476
        %v3750 = vpop.f32.mrf.mxu0
        %v3751 = vadd.f32 %v3574, %v3750
        %v3752 = vpop.f32.mrf.mxu0
        %v3753 = vpop.f32.mrf.mxu0
        %v3754 = vadd.f32 %v3577, %v3753
        %v3755 = vpop.f32.mrf.mxu0
        %3756 = vmatprep.mubr.bf16.mxu0 0
        %3757 = vmatmul.mubr.bf16.gmra.mxu0 %v3479
        %v3758 = vpop.f32.mrf.mxu0
        %v3759 = vadd.f32 %v3582, %v3758
        %v3760 = vpop.f32.mrf.mxu0
        %v3761 = vpop.f32.mrf.mxu0
        %v3762 = vadd.f32 %v3585, %v3761
        %v3763 = vpop.f32.mrf.mxu0
        %3764 = vmatprep.mubr.bf16.mxu0 0
        %3765 = vmatmul.mubr.bf16.gmra.mxu0 %v3482
        %v3766 = vpop.f32.mrf.mxu0
        %v3767 = vadd.f32 %v3590, %v3766
        %v3768 = vpop.f32.mrf.mxu0
        %v3769 = vpop.f32.mrf.mxu0
        %v3770 = vadd.f32 %v3593, %v3769
        %v3771 = vpop.f32.mrf.mxu0
        %3772 = vmatprep.mubr.bf16.mxu0 0
        %3773 = vmatmul.mubr.bf16.gmra.mxu0 %v3485
        %v3774 = vpop.f32.mrf.mxu0
        %v3775 = vadd.f32 %v3598, %v3774
        %v3776 = vpop.f32.mrf.mxu0
        %v3777 = vpop.f32.mrf.mxu0
        %v3778 = vadd.f32 %v3601, %v3777
        %v3779 = vpop.f32.mrf.mxu0
        %3780 = vmatprep.mubr.bf16.mxu0 0
        %3781 = vmatmul.mubr.bf16.gmra.mxu0 %v3488
        %v3782 = vpop.f32.mrf.mxu0
        %v3783 = vadd.f32 %v3606, %v3782
        %v3784 = vpop.f32.mrf.mxu0
        %v3785 = vpop.f32.mrf.mxu0
        %v3786 = vadd.f32 %v3609, %v3785
        %v3787 = vpop.f32.mrf.mxu0
        %3788 = vmatprep.mubr.bf16.mxu0 0
        %3789 = vmatmul.mubr.bf16.gmra.mxu0 %v3491
        %v3790 = vpop.f32.mrf.mxu0
        %v3791 = vadd.f32 %v3614, %v3790
        %v3792 = vpop.f32.mrf.mxu0
        %v3793 = vpop.f32.mrf.mxu0
        %v3794 = vadd.f32 %v3617, %v3793
        %v3795 = vpop.f32.mrf.mxu0
        %3796 = vmatprep.mubr.bf16.mxu0 0
        %3797 = vmatmul.mubr.bf16.gmra.mxu0 %v3494
        %v3798 = vpop.f32.mrf.mxu0
        %v3799 = vadd.f32 %v3622, %v3798
        %v3800 = vpop.f32.mrf.mxu0
        %v3801 = vpop.f32.mrf.mxu0
        %v3802 = vadd.f32 %v3625, %v3801
        %v3803 = vpop.f32.mrf.mxu0
        %3804 = vmatprep.mubr.bf16.mxu0 0
        %3805 = vmatmul.mubr.bf16.gmra.mxu0 %v3497
        %v3806 = vpop.f32.mrf.mxu0
        %v3807 = vadd.f32 %v3630, %v3806
        %v3808 = vpop.f32.mrf.mxu0
        %v3809 = vpop.f32.mrf.mxu0
        %v3810 = vadd.f32 %v3633, %v3809
        %v3811 = vpop.f32.mrf.mxu0
        %3812 = vmatprep.mubr.bf16.mxu0 0
        %3813 = vmatmul.mubr.bf16.gmra.mxu0 %v3500
        %v3814 = vpop.f32.mrf.mxu0
        %v3815 = vadd.f32 %v3638, %v3814
        %v3816 = vpop.f32.mrf.mxu0
        %v3817 = vpop.f32.mrf.mxu0
        %v3818 = vadd.f32 %v3641, %v3817
        %v3819 = vpop.f32.mrf.mxu0
        %3820 = vmatprep.mubr.bf16.mxu0 0
        %3821 = vmatmul.mubr.bf16.gmra.mxu0 %v3503
        %v3822 = vpop.f32.mrf.mxu0
        %v3823 = vadd.f32 %v3646, %v3822
        %v3824 = vpop.f32.mrf.mxu0
        %v3825 = vpop.f32.mrf.mxu0
        %v3826 = vadd.f32 %v3649, %v3825
        %v3827 = vpop.f32.mrf.mxu0
        %3828 = vmatprep.mubr.bf16.mxu0 0
        %3829 = vmatmul.mubr.bf16.gmra.mxu0 %v3506
        %v3830 = vpop.f32.mrf.mxu0
        %v3831 = vadd.f32 %v3654, %v3830
        %v3832 = vpop.f32.mrf.mxu0
        %v3833 = vpop.f32.mrf.mxu0
        %v3834 = vadd.f32 %v3657, %v3833
        %v3835 = vpop.f32.mrf.mxu0
        %3836 = vmatprep.mubr.bf16.mxu0 0
        %3837 = vmatmul.mubr.bf16.gmra.mxu0 %v3509
        %v3838 = vpop.f32.mrf.mxu0
        %v3839 = vadd.f32 %v3662, %v3838
        %v3840 = vpop.f32.mrf.mxu0
        %v3841 = vpop.f32.mrf.mxu0
        %v3842 = vadd.f32 %v3665, %v3841
        %v3843 = vpop.f32.mrf.mxu0
        %3844 = vmatprep.mubr.bf16.mxu0 0
        %3845 = vmatmul.mubr.bf16.gmra.mxu0 %v3512
        %v3846 = vpop.f32.mrf.mxu0
        %v3847 = vadd.f32 %v3670, %v3846
        %v3848 = vpop.f32.mrf.mxu0
        %v3849 = vpop.f32.mrf.mxu0
        %v3850 = vadd.f32 %v3673, %v3849
        %v3851 = vpop.f32.mrf.mxu0
        %3852 = vmatprep.mubr.bf16.mxu0 0
        %3853 = vmatmul.mubr.bf16.gmra.mxu0 %v3515
        %v3854 = vpop.f32.mrf.mxu0
        %v3855 = vadd.f32 %v3678, %v3854
        %v3856 = vpop.f32.mrf.mxu0
        %v3857 = vpop.f32.mrf.mxu0
        %v3858 = vadd.f32 %v3681, %v3857
        %v3859 = vpop.f32.mrf.mxu0
        %3860 = vmatprep.mubr.bf16.mxu0 0
        %3861 = vmatmul.mubr.bf16.gmra.mxu0 %v3518
        %v3862 = vpop.f32.mrf.mxu0
        %v3863 = vadd.f32 %v3686, %v3862
        %v3864 = vpop.f32.mrf.mxu0
        %v3865 = vpop.f32.mrf.mxu0
        %v3866 = vadd.f32 %v3689, %v3865
        %v3867 = vpop.f32.mrf.mxu0
        %3868 = vmatprep.mubr.bf16.mxu0 0
        %3869 = vmatmul.mubr.bf16.gmra.mxu0 %v3521
        %v3870 = vpop.f32.mrf.mxu0
        %v3871 = vadd.f32 %v3694, %v3870
        %v3872 = vpop.f32.mrf.mxu0
        %v3873 = vpop.f32.mrf.mxu0
        %v3874 = vadd.f32 %v3697, %v3873
        %v3875 = vpop.f32.mrf.mxu0
        %3876 = vdwg.mxu0
        %v3877 = vpack.c.bf16 %v3738, %v3735
        %v3878 = vpack.c.bf16 %v3746, %v3743
        %v3879 = vpack.c.bf16 %v3754, %v3751
        %v3880 = vpack.c.bf16 %v3762, %v3759
        %v3881 = vpack.c.bf16 %v3770, %v3767
        %v3882 = vpack.c.bf16 %v3778, %v3775
        %v3883 = vpack.c.bf16 %v3786, %v3783
        %v3884 = vpack.c.bf16 %v3794, %v3791
        %v3885 = vpack.c.bf16 %v3802, %v3799
        %v3886 = vpack.c.bf16 %v3810, %v3807
        %v3887 = vpack.c.bf16 %v3818, %v3815
        %v3888 = vpack.c.bf16 %v3826, %v3823
        %v3889 = vpack.c.bf16 %v3834, %v3831
        %v3890 = vpack.c.bf16 %v3842, %v3839
        %v3891 = vpack.c.bf16 %v3850, %v3847
        %v3892 = vpack.c.bf16 %v3858, %v3855
        %v3893 = vpack.c.bf16 %v3866, %v3863
        %v3894 = vpack.c.bf16 %v3874, %v3871
        %v3913 = vunpack.c.l.b16 %v3877
        %v3914 = vunpack.c.h.b16 %v3877
        %v3915 = vunpack.c.l.b16 %v3878
        %v3916 = vunpack.c.h.b16 %v3878
        %v3917 = vunpack.c.l.b16 %v3879
        %v3918 = vunpack.c.h.b16 %v3879
        %v3919 = vunpack.c.l.b16 %v3880
        %v3920 = vunpack.c.h.b16 %v3880
        %v3921 = vunpack.c.l.b16 %v3881
        %v3922 = vunpack.c.h.b16 %v3881
        %v3923 = vunpack.c.l.b16 %v3882
        %v3924 = vunpack.c.h.b16 %v3882
        %v3925 = vunpack.c.l.b16 %v3883
        %v3926 = vunpack.c.h.b16 %v3883
        %v3927 = vunpack.c.l.b16 %v3884
        %v3928 = vunpack.c.h.b16 %v3884
        %v3929 = vunpack.c.l.b16 %v3885
        %v3930 = vunpack.c.h.b16 %v3885
        %v3931 = vunpack.c.l.b16 %v3886
        %v3932 = vunpack.c.h.b16 %v3886
        %v3933 = vunpack.c.l.b16 %v3887
        %v3934 = vunpack.c.h.b16 %v3887
        %v3935 = vunpack.c.l.b16 %v3888
        %v3936 = vunpack.c.h.b16 %v3888
        %v3937 = vunpack.c.l.b16 %v3889
        %v3938 = vunpack.c.h.b16 %v3889
        %v3939 = vunpack.c.l.b16 %v3890
        %v3940 = vunpack.c.h.b16 %v3890
        %v3941 = vunpack.c.l.b16 %v3891
        %v3942 = vunpack.c.h.b16 %v3891
        %v3943 = vunpack.c.l.b16 %v3892
        %v3944 = vunpack.c.h.b16 %v3892
        %v3945 = vunpack.c.l.b16 %v3893
        %v3946 = vunpack.c.h.b16 %v3893
        %v3947 = vunpack.c.l.b16 %v3894
        %v3948 = vunpack.c.h.b16 %v3894
        %v3949 = vpack.c.b16 %v3913, %v3913
        %v3950 = vpack.c.b16 %v3914, %v3914
        %v3951 = vpack.c.b16 %v3915, %v3915
        %v3952 = vpack.c.b16 %v3916, %v3916
        %v3953 = vpack.c.b16 %v3917, %v3917
        %v3954 = vpack.c.b16 %v3918, %v3918
        %v3955 = vpack.c.b16 %v3919, %v3919
        %v3956 = vpack.c.b16 %v3920, %v3920
        %v3957 = vpack.c.b16 %v3921, %v3921
        %v3958 = vpack.c.b16 %v3922, %v3922
        %v3959 = vpack.c.b16 %v3923, %v3923
        %v3960 = vpack.c.b16 %v3924, %v3924
        %v3961 = vpack.c.b16 %v3925, %v3925
        %v3962 = vpack.c.b16 %v3926, %v3926
        %v3963 = vpack.c.b16 %v3927, %v3927
        %v3964 = vpack.c.b16 %v3928, %v3928
        %v3965 = vpack.c.b16 %v3929, %v3929
        %v3966 = vpack.c.b16 %v3930, %v3930
        %v3967 = vpack.c.b16 %v3931, %v3931
        %v3968 = vpack.c.b16 %v3932, %v3932
        %v3969 = vpack.c.b16 %v3933, %v3933
        %v3970 = vpack.c.b16 %v3934, %v3934
        %v3971 = vpack.c.b16 %v3935, %v3935
        %v3972 = vpack.c.b16 %v3936, %v3936
        %v3973 = vpack.c.b16 %v3937, %v3937
        %v3974 = vpack.c.b16 %v3938, %v3938
        %v3975 = vpack.c.b16 %v3939, %v3939
        %v3976 = vpack.c.b16 %v3940, %v3940
        %v3977 = vpack.c.b16 %v3941, %v3941
        %v3978 = vpack.c.b16 %v3942, %v3942
        %v3979 = vpack.c.b16 %v3943, %v3943
        %v3980 = vpack.c.b16 %v3944, %v3944
        %v3981 = vpack.c.b16 %v3945, %v3945
        %v3982 = vpack.c.b16 %v3946, %v3946
        %v3983 = vpack.c.b16 %v3947, %v3947
        %v3984 = vpack.c.b16 %v3948, %v3948
        %4021 = vst [vmem:[%s255] sm:$0xf] %v3949
        %4022 = vst [vmem:[%s255 + $0x4] sm:$0xf] %v3950
        %4023 = vst [vmem:[%s255 + $0x8] sm:$0xf] %v3951
        %4024 = vst [vmem:[%s255 + $0xc] sm:$0xf] %v3952
        %4025 = vst [vmem:[%s255 + $0x10] sm:$0xf] %v3953
        %4026 = vst [vmem:[%s255 + $0x14] sm:$0xf] %v3954
        %4027 = vst [vmem:[%s255 + $0x18] sm:$0xf] %v3955
        %4028 = vst [vmem:[%s255 + $0x1c] sm:$0xf] %v3956
        %4029 = vst [vmem:[%s255 + $0x20] sm:$0xf] %v3957
        %4030 = vst [vmem:[%s255 + $0x24] sm:$0xf] %v3958
        %4031 = vst [vmem:[%s255 + $0x28] sm:$0xf] %v3959
        %4032 = vst [vmem:[%s255 + $0x2c] sm:$0xf] %v3960
        %4033 = vst [vmem:[%s255 + $0x30] sm:$0xf] %v3961
        %4034 = vst [vmem:[%s255 + $0x34] sm:$0xf] %v3962
        %4035 = vst [vmem:[%s255 + $0x38] sm:$0xf] %v3963
        %4036 = vst [vmem:[%s255 + $0x3c] sm:$0xf] %v3964
        %4037 = vst [vmem:[%s255 + $0x40] sm:$0xf] %v3965
        %4038 = vst [vmem:[%s255 + $0x44] sm:$0xf] %v3966
        %4039 = vst [vmem:[%s255 + $0x48] sm:$0xf] %v3967
        %4040 = vst [vmem:[%s255 + $0x4c] sm:$0xf] %v3968
        %4041 = vst [vmem:[%s255 + $0x50] sm:$0xf] %v3969
        %4042 = vst [vmem:[%s255 + $0x54] sm:$0xf] %v3970
        %4043 = vst [vmem:[%s255 + $0x58] sm:$0xf] %v3971
        %4044 = vst [vmem:[%s255 + $0x5c] sm:$0xf] %v3972
        %4045 = vst [vmem:[%s255 + $0x60] sm:$0xf] %v3973
        %4046 = vst [vmem:[%s255 + $0x64] sm:$0xf] %v3974
        %4047 = vst [vmem:[%s255 + $0x68] sm:$0xf] %v3975
        %4048 = vst [vmem:[%s255 + $0x6c] sm:$0xf] %v3976
        %4049 = vst [vmem:[%s255 + $0x70] sm:$0xf] %v3977
        %4050 = vst [vmem:[%s255 + $0x74] sm:$0xf] %v3978
        %4051 = vst [vmem:[%s255 + $0x78] sm:$0xf] %v3979
        %4052 = vst [vmem:[%s255 + $0x7c] sm:$0xf] %v3980
        %4053 = vst [vmem:[%s255 + $0x80] sm:$0xf] %v3981
        %4054 = vst [vmem:[%s255 + $0x84] sm:$0xf] %v3982
        %4055 = vst [vmem:[%s255 + $0x88] sm:$0xf] %v3983
        %4056 = vst [vmem:[%s255 + $0x8c] sm:$0xf] %v3984
        %s4057 = sand.u32 %s164, 1
        %s4058 = scalar_lea.sflag [#allocation5], %s4057
        %s4059 = sand.u32 %s164, 1
        %s4060 = smul.addr %s4059, 144
        %s4061 = scalar_lea.vmem [#allocation4], %s4060
        // Predicated region
        $region45: #{tpu_custom_call.1} parent=43 // pred_check
          %p4062 = pneg %p174
        $region46: #{tpu_custom_call.1} parent=43 // pred_check_branch
          %4064 = sbr.rel (%p4062) target = $region48
        $region47: #{tpu_custom_call.1} parent=43 // pred_region
          %s4066 = ssub.s32 2304, 2304
          %4067 = vsyncadd %s4058, %s4066
          %s4068 = smul.addr %s20, 36
          %s4069 = smul.addr %s4068, 64
          %s4070 = scalar_lea.hbm %s6, %s4069
          %s4071 = sshll.u32 %s4061, 4
          %s4072 = int_to_ptr.vmem [resolvable:$true] %s4071
          %4077 = dma.vmem_to_hbm [thread:$0]  %s4072, 2304, %s4070, %s4058, 64, 64, 4
        $region48: #{tpu_custom_call.1} parent=43 // pred_fallthru
          _
      $region44: #{tpu_custom_call.1} parent=5 // pred_fallthru
        _
      %p4078 = scmp.le.s32.totalorder 2, %s15
      // Predicated region
      $region49: #{tpu_custom_call.1} parent=5 // pred_check
        %p4079 = pneg %p4078
      $region50: #{tpu_custom_call.1} parent=5 // pred_check_branch
        %4081 = sbr.rel (%p4079) target = $region52
      $region51: #{tpu_custom_call.1} parent=5 // pred_region
        %s4082 = ssub.s32 %s15, 2
        // Predicated region
        $region53: #{tpu_custom_call.1} parent=51 // pred_check
          %p4083 = pneg %p180
        $region54: #{tpu_custom_call.1} parent=51 // pred_check_branch
          %4085 = sbr.rel (%p4083) target = $region56
        $region55: #{tpu_custom_call.1} parent=51 // pred_region
          %s4086 = sand.u32 %s165, 1
          %s4087 = scalar_lea.sflag [#allocation5], %s4086
          %s4088 = sand.u32 %s165, 1
          %s4089 = smul.addr %s4088, 144
          %s4090 = scalar_lea.vmem [#allocation4], %s4089
          %4091 = dma.done %s4087, 2304
        $region56: #{tpu_custom_call.1} parent=51 // pred_fallthru
          _
      $region52: #{tpu_custom_call.1} parent=5 // pred_fallthru
        _
    $region6: #{tpu_custom_call.1} parent=1 // loop_footer
      %s19 = sadd.s32 1, %s15
    $region7: #{tpu_custom_call.1} parent=1 // loop_footer_branch
      %14 = sbr.rel target = $region3
    $region8: #{tpu_custom_call.1} parent=1 // loop_exit
      _
    %4092 = vsyncpa [#allocation5], 1
    %s4093 = scalar_lea.sflag [#allocation5], 1
    %4094 = vsyncpa %s4093, 1

</llo_original>
